<compile_context>
chip_gen: v7x
topology: tpu7x:2x2x1
jax: 0.10.0
libtpu: 0.0.40
codegen_flags: <defaults>
</compile_context>

<pallas_src>
import numpy as np
import jax
import jax.numpy as jnp
from jax import lax
from jax.experimental import pallas as pl
from jax.experimental.pallas import tpu as pltpu

# ---------------- scaled-down ViT-MAE config ----------------
INPUT_RES = 32          # module: 1024
PATCH = 8               # module: 16
CHANNELS = 3
EMBED_DIM = 128         # module: 768  (lane multiple of 128)
NUM_HEADS = 4           # module: 12
HEAD_DIM = EMBED_DIM // NUM_HEADS
NUM_LAYERS = 2          # module: 12
MLP_DIM = 4 * EMBED_DIM
GRID = INPUT_RES // PATCH       # module: 64
NUM_PATCHES = GRID * GRID
SEQ = NUM_PATCHES + 1
SEQ_PAD = ((SEQ + 15) // 16) * 16   # 32: bf16 sublane-tile & MXU-M friendly
CPP = CHANNELS * PATCH * PATCH      # conv-as-matmul contraction dim
LN_EPS = 1e-12                      # HF ViT layer_norm_eps

PIXEL_MEAN = np.array([0.485, 0.456, 0.406], np.float32) * 255.0
PIXEL_STD = np.array([0.229, 0.224, 0.225], np.float32) * 255.0


# ---------------- 2D sincos position embeddings (as in MAE) ----------------
def _get_1d_sincos(embed_dim, pos):
    omega = np.arange(embed_dim // 2, dtype=np.float32)
    omega /= embed_dim / 2.0
    omega = 1.0 / 10000 ** omega
    out = np.einsum("m,d->md", pos.reshape(-1), omega)
    return np.concatenate([np.sin(out), np.cos(out)], axis=1)


def get_2d_sincos_pos_embed(embed_dim, grid_size, add_cls_token=False):
    grid_h = np.arange(grid_size, dtype=np.float32)
    grid_w = np.arange(grid_size, dtype=np.float32)
    grid = np.meshgrid(grid_w, grid_h)
    grid = np.stack(grid, axis=0).reshape([2, 1, grid_size, grid_size])
    emb_h = _get_1d_sincos(embed_dim // 2, grid[0])
    emb_w = _get_1d_sincos(embed_dim // 2, grid[1])
    pos = np.concatenate([emb_h, emb_w], axis=1)
    if add_cls_token:
        pos = np.concatenate([np.zeros([1, embed_dim], np.float32), pos], axis=0)
    return pos.astype(np.float32)


# ---------------- fused encoder kernel ----------------
def _vit_encoder_kernel(
    patches_ref,           # (SEQ_PAD, CPP) bf16; row 0 zeros (cls), rows SEQ.. zeros (pad)
    patch_w_ref,           # (CPP, D)       bf16
    add_in_ref,            # (SEQ_PAD, D)   f32  [cls+pos0 ; bias+pos[1:] ; 0 pad rows]
    ln1_g_ref, ln1_b_ref,  # (L, 1, D)      f32
    qkv_w_ref,             # (L, D, 3D)     bf16 (1/sqrt(Dh) pre-folded into Q columns)
    qkv_b_ref,             # (L, 1, 3D)     f32  (Q part pre-scaled too)
    wo_ref,                # (L, D, D)      bf16
    bo_ref,                # (L, 1, D)      f32
    ln2_g_ref, ln2_b_ref,  # (L, 1, D)      f32
    w1_ref,                # (L, D, M)      bf16
    b1_ref,                # (L, 1, M)      f32
    w2_ref,                # (L, M, D)      bf16
    b2_ref,                # (L, 1, D)      f32
    lnf_g_ref, lnf_b_ref,  # (1, D)         f32
    out_ref,               # (SEQ_PAD, D)   f32
    ctx_ref,               # scratch (SEQ_PAD, D) bf16 — per-head context accumulator
):
    f32 = jnp.float32
    bf16 = jnp.bfloat16
    inv_sqrt2 = 0.7071067811865476

    def layernorm(x, g, b):  # stats in f32 (LN_EPS=1e-12 semantics)
        mean = jnp.mean(x, axis=-1, keepdims=True)
        var = jnp.mean(jnp.square(x - mean), axis=-1, keepdims=True)
        return (x - mean) * lax.rsqrt(var + LN_EPS) * g + b

    # additive mask for padded key columns (cols >= SEQ never receive weight)
    col = lax.broadcasted_iota(jnp.int32, (1, SEQ_PAD), 1)
    key_bias = jnp.where(col < SEQ, 0.0, -1e30)                  # (1, SEQ_PAD) f32

    # --- patch embedding (Conv2d(C, D, P, stride=P) as matmul) + cls/pos ---
    # Row 0 of `patches` is all zeros, so its matmul contribution is 0 and the
    # additive term supplies cls_token + pos[0]; rows 1..SEQ-1 get bias+pos[1:];
    # padded rows stay zero (masked as attention keys, sliced off outside).
    h = jnp.dot(patches_ref[...], patch_w_ref[...], preferred_element_type=f32)
    h = h + add_in_ref[...]                                      # (SEQ_PAD, D) f32

    # TODO(synk): at 12 layers / D=768, stream stacked per-layer weights via a
    # layer grid axis ("arbitrary") with pl.Buffered(2) double-buffered DMA
    # instead of holding all layers resident in VMEM.
    for l in range(NUM_LAYERS):
        # ---- self-attention block (pre-LN, fused QKV projection) ----
        x_ln = layernorm(h, ln1_g_ref[l], ln1_b_ref[l]).astype(bf16)
        # bias added once, then a single cast to bf16; per-head q/k/v are
        # lane slices of this bf16 buffer (no per-head casts, half the VMEM).
        qkv = (jnp.dot(x_ln, qkv_w_ref[l], preferred_element_type=f32)
               + qkv_b_ref[l]).astype(bf16)                      # (SEQ_PAD, 3D)
        for hd in range(NUM_HEADS):
            lo = hd * HEAD_DIM
            hi = lo + HEAD_DIM
            q = qkv[:, lo:hi]                                    # already scaled
            k = qkv[:, EMBED_DIM + lo:EMBED_DIM + hi]
            v = qkv[:, 2 * EMBED_DIM + lo:2 * EMBED_DIM + hi]
            # q @ k^T without materializing a transpose of k
            s = lax.dot_general(q, k, (((1,), (1,)), ((), ())),
                                preferred_element_type=f32)      # (S, S) f32
            s = s + key_bias
            m = jnp.max(s, axis=-1, keepdims=True)
            p = jnp.exp(s - m)
            p = p * (1.0 / jnp.sum(p, axis=-1, keepdims=True))   # exact recip (S,1)
            ctx = jnp.dot(p.astype(bf16), v, preferred_element_type=f32)
            ctx_ref[:, lo:hi] = ctx.astype(bf16)                 # lane-slice write
        # single full-K output projection + single residual add
        h = h + jnp.dot(ctx_ref[...], wo_ref[l],
                        preferred_element_type=f32) + bo_ref[l]

        # ---- MLP block (pre-LN, fused bias + exact-erf GELU + residual) ----
        x_ln2 = layernorm(h, ln2_g_ref[l], ln2_b_ref[l]).astype(bf16)
        ff = jnp.dot(x_ln2, w1_ref[l], preferred_element_type=f32) + b1_ref[l]
        ff = 0.5 * ff * (1.0 + lax.erf(ff * inv_sqrt2))          # exact GELU (HF parity)
        h = h + jnp.dot(ff.astype(bf16), w2_ref[l],
                        preferred_element_type=f32) + b2_ref[l]

    out_ref[...] = layernorm(h, lnf_g_ref[...], lnf_b_ref[...])


def _batched_spec(*inner_shape):
    """Per-image block: squeeze the leading batch dim."""
    n = len(inner_shape)
    return pl.BlockSpec((None,) + tuple(inner_shape),
                        lambda b, _n=n: (b,) + (0,) * _n)


def _resident_spec(*shape):
    """Same (full-array) block every grid step -> weights stay in VMEM."""
    n = len(shape)
    return pl.BlockSpec(tuple(shape), lambda b, _n=n: (0,) * _n)


@jax.jit
def _forward_padded(images, params):
    """images: (B, C, INPUT_RES, INPUT_RES) normalized & padded, f32."""
    B = images.shape[0]
    # patchify == Conv2d(C, D, P, stride=P) on NCHW; flatten order (c, ph, pw)
    patches = images.reshape(B, CHANNELS, GRID, PATCH, GRID, PATCH)
    patches = patches.transpose(0, 2, 4, 1, 3, 5).reshape(B, NUM_PATCHES, CPP)
    # row 0: zero cls placeholder; rows SEQ..SEQ_PAD-1: zero padding
    patches = jnp.pad(patches, ((0, 0), (1, SEQ_PAD - SEQ), (0, 0)))
    patches = patches.astype(jnp.bfloat16)

    D, L, M = EMBED_DIM, NUM_LAYERS, MLP_DIM
    # TODO(synk): at prod scale set vmem_limit_bytes explicitly and use
    # pipeline_mode=pl.Buffered(1) on the resident weight specs.
    hidden = pl.pallas_call(
        _vit_encoder_kernel,
        grid=(B,),
        in_specs=[
            _batched_spec(SEQ_PAD, CPP),      # patches
            _resident_spec(CPP, D),           # patch_w
            _resident_spec(SEQ_PAD, D),       # add_in
            _resident_spec(L, 1, D),          # ln1_g
            _resident_spec(L, 1, D),          # ln1_b
            _resident_spec(L, D, 3 * D),      # qkv_w
            _resident_spec(L, 1, 3 * D),      # qkv_b
            _resident_spec(L, D, D),          # wo
            _resident_spec(L, 1, D),          # bo
            _resident_spec(L, 1, D),          # ln2_g
            _resident_spec(L, 1, D),          # ln2_b
            _resident_spec(L, D, M),          # w1
            _resident_spec(L, 1, M),          # b1
            _resident_spec(L, M, D),          # w2
            _resident_spec(L, 1, D),          # b2
            _resident_spec(1, D),             # lnf_g
            _resident_spec(1, D),             # lnf_b
        ],
        out_specs=_batched_spec(SEQ_PAD, D),
        out_shape=jax.ShapeDtypeStruct((B, SEQ_PAD, D), jnp.float32),
        scratch_shapes=[pltpu.VMEM((SEQ_PAD, D), jnp.bfloat16)],   # ctx accumulator
        compiler_params=pltpu.CompilerParams(
            dimension_semantics=("parallel",),   # batch shards across TCs (v7x)
        ),
    )(
        patches,
        params["patch_w"], params["add_in"],
        params["ln1_g"], params["ln1_b"],
        params["qkv_w"], params["qkv_b"],
        params["wo"], params["bo"],
        params["ln2_g"], params["ln2_b"],
        params["w1"], params["b1"],
        params["w2"], params["b2"],
        params["lnf_g"], params["lnf_b"],
    )

    cls_token = hidden[:, 0, :]                                        # (B, D)
    spatial = hidden[:, 1:SEQ, :].reshape(B, GRID, GRID, D).transpose(0, 3, 1, 2)
    return {"cls_token": cls_token, "spatial": spatial}


# ---------------- parameters ----------------
def init_params(key):
    keys = jax.random.split(key, 64)
    it = iter(keys)

    def nrm(shape, scale=0.02):
        return scale * jax.random.normal(next(it), shape, jnp.float32)

    def stack(make):
        return jnp.stack([make() for _ in range(NUM_LAYERS)], axis=0)

    pos = jnp.asarray(get_2d_sincos_pos_embed(EMBED_DIM, GRID, add_cls_token=True))
    cls_token = nrm((1, EMBED_DIM))
    patch_b = nrm((1, EMBED_DIM))

    # additive term fused with the patch-embed matmul:
    #   row 0 (cls placeholder): cls_token + pos[0]
    #   rows 1..SEQ-1 (patch tokens): conv bias + pos[1:]
    #   rows SEQ..SEQ_PAD-1: zeros (masked padding)
    add_in = jnp.concatenate([cls_token + pos[:1], patch_b + pos[1:]], axis=0)
    add_in = jnp.pad(add_in, ((0, SEQ_PAD - SEQ), (0, 0)))

    # fused QKV: [Wq | Wk | Wv]; fold the 1/sqrt(head_dim) attention scale
    # into the Q columns (in f32, BEFORE the bf16 cast) so no per-score scale
    # multiply is needed inside the kernel.
    qkv_w = stack(lambda: nrm((EMBED_DIM, 3 * EMBED_DIM)))
    qkv_b = stack(lambda: nrm((1, 3 * EMBED_DIM)))
    col_scale = np.ones((3 * EMBED_DIM,), np.float32)
    col_scale[:EMBED_DIM] = 1.0 / np.sqrt(HEAD_DIM)
    col_scale = jnp.asarray(col_scale)

    params = {
        # conv weight (D, C, P, P) flattened to (C*P*P, D); bf16 for the MXU
        "patch_w": nrm((CPP, EMBED_DIM)).astype(jnp.bfloat16),
        "add_in": add_in,
        "ln1_g": jnp.ones((NUM_LAYERS, 1, EMBED_DIM), jnp.float32),
        "ln1_b": jnp.zeros((NUM_LAYERS, 1, EMBED_DIM), jnp.float32),
        "qkv_w": (qkv_w * col_scale).astype(jnp.bfloat16),
        "qkv_b": qkv_b * col_scale,
        "wo": stack(lambda: nrm((EMBED_DIM, EMBED_DIM))).astype(jnp.bfloat16),
        "bo": stack(lambda: nrm((1, EMBED_DIM))),
        "ln2_g": jnp.ones((NUM_LAYERS, 1, EMBED_DIM), jnp.float32),
        "ln2_b": jnp.zeros((NUM_LAYERS, 1, EMBED_DIM), jnp.float32),
        "w1": stack(lambda: nrm((EMBED_DIM, MLP_DIM))).astype(jnp.bfloat16),
        "b1": stack(lambda: nrm((1, MLP_DIM))),
        "w2": stack(lambda: nrm((MLP_DIM, EMBED_DIM))).astype(jnp.bfloat16),
        "b2": stack(lambda: nrm((1, EMBED_DIM))),
        "lnf_g": jnp.ones((1, EMBED_DIM), jnp.float32),
        "lnf_b": jnp.zeros((1, EMBED_DIM), jnp.float32),
    }
    return params


# ---------------- module-equivalent forward ----------------
def frozen_mae_vit_forward(batched_inputs, params):
    mean = jnp.asarray(PIXEL_MEAN).reshape(-1, 1, 1)
    std = jnp.asarray(PIXEL_STD).reshape(-1, 1, 1)
    imgs = []
    for inst in batched_inputs:
        image = inst["clip_image"] if "clip_image" in inst else inst["image"]
        x = (image - mean) / std                       # normalize, THEN pad with 0
        padh = INPUT_RES - x.shape[-2]
        padw = INPUT_RES - x.shape[-1]
        x = jnp.pad(x, ((0, 0), (0, padh), (0, padw)))
        imgs.append(x)
    images = jnp.stack(imgs, axis=0)                   # (B, C, R, R)
    return _forward_padded(images, params)


if __name__ == "__main__":
    key = jax.random.PRNGKey(0)
    pkey, ikey1, ikey2 = jax.random.split(key, 3)
    params = init_params(pkey)

    # two images of different sizes (smaller one gets zero-padded to INPUT_RES)
    img1 = jax.random.uniform(ikey1, (CHANNELS, 28, 30), jnp.float32, 0.0, 255.0)
    img2 = jax.random.uniform(
        ikey2, (CHANNELS, INPUT_RES, INPUT_RES), jnp.float32, 0.0, 255.0
    )
    batched_inputs = [{"image": img1}, {"image": img2}]

    out = frozen_mae_vit_forward(batched_inputs, params)
    out = jax.block_until_ready(out)

    assert out["cls_token"].shape == (2, EMBED_DIM)
    assert out["spatial"].shape == (2, EMBED_DIM, GRID, GRID)
    assert bool(jnp.all(jnp.isfinite(out["cls_token"])))
    assert bool(jnp.all(jnp.isfinite(out["spatial"])))
    print("KERNEL_OK")
</pallas_src>

<mosaic_0001>
module attributes {stable_mosaic.version = 11 : i64} {
  func.func @_vit_encoder_kernel(%arg0: i32, %arg1: memref<1x32x192xbf16, #tpu.memory_space<vmem>>, %arg2: memref<192x128xbf16, #tpu.memory_space<vmem>>, %arg3: memref<32x128xf32, #tpu.memory_space<vmem>>, %arg4: memref<2x1x128xf32, #tpu.memory_space<vmem>>, %arg5: memref<2x1x128xf32, #tpu.memory_space<vmem>>, %arg6: memref<2x128x384xbf16, #tpu.memory_space<vmem>>, %arg7: memref<2x1x384xf32, #tpu.memory_space<vmem>>, %arg8: memref<2x128x128xbf16, #tpu.memory_space<vmem>>, %arg9: memref<2x1x128xf32, #tpu.memory_space<vmem>>, %arg10: memref<2x1x128xf32, #tpu.memory_space<vmem>>, %arg11: memref<2x1x128xf32, #tpu.memory_space<vmem>>, %arg12: memref<2x128x512xbf16, #tpu.memory_space<vmem>>, %arg13: memref<2x1x512xf32, #tpu.memory_space<vmem>>, %arg14: memref<2x512x128xbf16, #tpu.memory_space<vmem>>, %arg15: memref<2x1x128xf32, #tpu.memory_space<vmem>>, %arg16: memref<1x128xf32, #tpu.memory_space<vmem>>, %arg17: memref<1x128xf32, #tpu.memory_space<vmem>>, %arg18: memref<1x32x128xf32, #tpu.memory_space<vmem>>, %arg19: memref<32x128xbf16, #tpu.memory_space<vmem>>) attributes {dimension_semantics = [#tpu.dimension_semantics<parallel>], iteration_bounds = array<i64: 2>, scalar_prefetch = 0 : i64, scratch_operands = 1 : i64, tpu.core_type = #tpu.core_type<tc>, window_params = [{transform_indices = @transform_0, window_bounds = array<i64: 1, 32, 192>}, {pipeline_mode = #tpu.pipeline_mode<synchronous>, transform_indices = @transform_1, window_bounds = array<i64: 192, 128>}, {pipeline_mode = #tpu.pipeline_mode<synchronous>, transform_indices = @transform_2, window_bounds = array<i64: 32, 128>}, {pipeline_mode = #tpu.pipeline_mode<synchronous>, transform_indices = @transform_3, window_bounds = array<i64: 2, 1, 128>}, {pipeline_mode = #tpu.pipeline_mode<synchronous>, transform_indices = @transform_4, window_bounds = array<i64: 2, 1, 128>}, {pipeline_mode = #tpu.pipeline_mode<synchronous>, transform_indices = @transform_5, window_bounds = array<i64: 2, 128, 384>}, {pipeline_mode = #tpu.pipeline_mode<synchronous>, transform_indices = @transform_6, window_bounds = array<i64: 2, 1, 384>}, {pipeline_mode = #tpu.pipeline_mode<synchronous>, transform_indices = @transform_7, window_bounds = array<i64: 2, 128, 128>}, {pipeline_mode = #tpu.pipeline_mode<synchronous>, transform_indices = @transform_8, window_bounds = array<i64: 2, 1, 128>}, {pipeline_mode = #tpu.pipeline_mode<synchronous>, transform_indices = @transform_9, window_bounds = array<i64: 2, 1, 128>}, {pipeline_mode = #tpu.pipeline_mode<synchronous>, transform_indices = @transform_10, window_bounds = array<i64: 2, 1, 128>}, {pipeline_mode = #tpu.pipeline_mode<synchronous>, transform_indices = @transform_11, window_bounds = array<i64: 2, 128, 512>}, {pipeline_mode = #tpu.pipeline_mode<synchronous>, transform_indices = @transform_12, window_bounds = array<i64: 2, 1, 512>}, {pipeline_mode = #tpu.pipeline_mode<synchronous>, transform_indices = @transform_13, window_bounds = array<i64: 2, 512, 128>}, {pipeline_mode = #tpu.pipeline_mode<synchronous>, transform_indices = @transform_14, window_bounds = array<i64: 2, 1, 128>}, {pipeline_mode = #tpu.pipeline_mode<synchronous>, transform_indices = @transform_15, window_bounds = array<i64: 1, 128>}, {pipeline_mode = #tpu.pipeline_mode<synchronous>, transform_indices = @transform_16, window_bounds = array<i64: 1, 128>}, {transform_indices = @transform_17, window_bounds = array<i64: 1, 32, 128>}]} {
    %0 = tpu.iota {dimensions = array<i32: 1>} : vector<1x32xi32>
    %c17_i32 = arith.constant 17 : i32
    %1 = vector.broadcast %c17_i32 : i32 to vector<1x32xi32>
    %2 = arith.cmpi slt, %0, %1 : vector<1x32xi32>
    %cst = arith.constant 0.000000e+00 : f32
    %cst_0 = arith.constant -1.000000e+30 : f32
    %3 = vector.broadcast %cst : f32 to vector<1x32xf32>
    %4 = vector.broadcast %cst_0 : f32 to vector<1x32xf32>
    %5 = arith.select %2, %3, %4 : vector<1x32xi1>, vector<1x32xf32>
    %c0 = arith.constant 0 : index
    %c0_1 = arith.constant 0 : index
    %c0_2 = arith.constant 0 : index
    %6 = vector.load %arg1[%c0, %c0_1, %c0_2] : memref<1x32x192xbf16, #tpu.memory_space<vmem>>, vector<1x32x192xbf16>
    %7 = vector.shape_cast %6 : vector<1x32x192xbf16> to vector<32x192xbf16>
    %c0_3 = arith.constant 0 : index
    %c0_4 = arith.constant 0 : index
    %8 = vector.load %arg2[%c0_3, %c0_4] : memref<192x128xbf16, #tpu.memory_space<vmem>>, vector<192x128xbf16>
    %cst_5 = arith.constant dense<0.000000e+00> : vector<32x128xf32>
    %9 = tpu.matmul %7, %8, %cst_5 {dimension_numbers = #tpu.dot_dimension_numbers<[1], [0], [0], [1], [0, 0, 1, 1], [], []>} : vector<32x192xbf16>, vector<192x128xbf16>, vector<32x128xf32> -> vector<32x128xf32>
    %c0_6 = arith.constant 0 : index
    %c0_7 = arith.constant 0 : index
    %10 = vector.load %arg3[%c0_6, %c0_7] : memref<32x128xf32, #tpu.memory_space<vmem>>, vector<32x128xf32>
    %11 = arith.addf %9, %10 : vector<32x128xf32>
    %c0_8 = arith.constant 0 : index
    %c0_9 = arith.constant 0 : index
    %c0_10 = arith.constant 0 : index
    %12 = vector.load %arg4[%c0_8, %c0_9, %c0_10] : memref<2x1x128xf32, #tpu.memory_space<vmem>>, vector<1x1x128xf32>
    %13 = vector.shape_cast %12 : vector<1x1x128xf32> to vector<1x128xf32>
    %c0_11 = arith.constant 0 : index
    %c0_12 = arith.constant 0 : index
    %c0_13 = arith.constant 0 : index
    %14 = vector.load %arg5[%c0_11, %c0_12, %c0_13] : memref<2x1x128xf32, #tpu.memory_space<vmem>>, vector<1x1x128xf32>
    %15 = vector.shape_cast %14 : vector<1x1x128xf32> to vector<1x128xf32>
    %cst_14 = arith.constant dense<0.000000e+00> : vector<32xf32>
    %16 = vector.multi_reduction <add>, %11, %cst_14 [1] : vector<32x128xf32> to vector<32xf32>
    %17 = vector.shape_cast %16 : vector<32xf32> to vector<32x1xf32>
    %cst_15 = arith.constant 1.280000e+02 : f32
    %18 = vector.broadcast %cst_15 : f32 to vector<32x1xf32>
    %19 = arith.divf %17, %18 : vector<32x1xf32>
    %20 = vector.broadcast %19 : vector<32x1xf32> to vector<32x128xf32>
    %21 = arith.subf %11, %20 : vector<32x128xf32>
    %22 = arith.mulf %21, %21 : vector<32x128xf32>
    %cst_16 = arith.constant dense<0.000000e+00> : vector<32xf32>
    %23 = vector.multi_reduction <add>, %22, %cst_16 [1] : vector<32x128xf32> to vector<32xf32>
    %24 = vector.shape_cast %23 : vector<32xf32> to vector<32x1xf32>
    %cst_17 = arith.constant 1.280000e+02 : f32
    %25 = vector.broadcast %cst_17 : f32 to vector<32x1xf32>
    %26 = arith.divf %24, %25 : vector<32x1xf32>
    %27 = vector.broadcast %19 : vector<32x1xf32> to vector<32x128xf32>
    %28 = arith.subf %11, %27 : vector<32x128xf32>
    %cst_18 = arith.constant 9.99999996E-13 : f32
    %29 = vector.broadcast %cst_18 : f32 to vector<32x1xf32>
    %30 = arith.addf %26, %29 : vector<32x1xf32>
    %31 = math.rsqrt %30 : vector<32x1xf32>
    %32 = vector.broadcast %31 : vector<32x1xf32> to vector<32x128xf32>
    %33 = arith.mulf %28, %32 : vector<32x128xf32>
    %34 = vector.broadcast %13 : vector<1x128xf32> to vector<32x128xf32>
    %35 = arith.mulf %33, %34 : vector<32x128xf32>
    %36 = vector.broadcast %15 : vector<1x128xf32> to vector<32x128xf32>
    %37 = arith.addf %35, %36 : vector<32x128xf32>
    %38 = arith.truncf %37 : vector<32x128xf32> to vector<32x128xbf16>
    %c0_19 = arith.constant 0 : index
    %c0_20 = arith.constant 0 : index
    %c0_21 = arith.constant 0 : index
    %39 = vector.load %arg6[%c0_19, %c0_20, %c0_21] : memref<2x128x384xbf16, #tpu.memory_space<vmem>>, vector<1x128x384xbf16>
    %40 = vector.shape_cast %39 : vector<1x128x384xbf16> to vector<128x384xbf16>
    %cst_22 = arith.constant dense<0.000000e+00> : vector<32x384xf32>
    %41 = tpu.matmul %38, %40, %cst_22 {dimension_numbers = #tpu.dot_dimension_numbers<[1], [0], [0], [1], [0, 0, 1, 1], [], []>} : vector<32x128xbf16>, vector<128x384xbf16>, vector<32x384xf32> -> vector<32x384xf32>
    %c0_23 = arith.constant 0 : index
    %c0_24 = arith.constant 0 : index
    %c0_25 = arith.constant 0 : index
    %42 = vector.load %arg7[%c0_23, %c0_24, %c0_25] : memref<2x1x384xf32, #tpu.memory_space<vmem>>, vector<1x1x384xf32>
    %43 = vector.shape_cast %42 : vector<1x1x384xf32> to vector<1x384xf32>
    %44 = vector.broadcast %43 : vector<1x384xf32> to vector<32x384xf32>
    %45 = arith.addf %41, %44 : vector<32x384xf32>
    %46 = arith.truncf %45 : vector<32x384xf32> to vector<32x384xbf16>
    %47 = vector.extract_strided_slice %46 {offsets = [0, 0], sizes = [32, 32], strides = [1, 1]} : vector<32x384xbf16> to vector<32x32xbf16>
    %48 = vector.extract_strided_slice %46 {offsets = [0, 128], sizes = [32, 32], strides = [1, 1]} : vector<32x384xbf16> to vector<32x32xbf16>
    %49 = vector.extract_strided_slice %46 {offsets = [0, 256], sizes = [32, 32], strides = [1, 1]} : vector<32x384xbf16> to vector<32x32xbf16>
    %cst_26 = arith.constant dense<0.000000e+00> : vector<32x32xf32>
    %50 = tpu.matmul %47, %48, %cst_26 {dimension_numbers = #tpu.dot_dimension_numbers<[1], [1], [0], [0], [0, 0, 1, 0], [], []>} : vector<32x32xbf16>, vector<32x32xbf16>, vector<32x32xf32> -> vector<32x32xf32>
    %51 = vector.broadcast %5 : vector<1x32xf32> to vector<32x32xf32>
    %52 = arith.addf %50, %51 : vector<32x32xf32>
    %cst_27 = arith.constant dense<0xFF800000> : vector<32xf32>
    %53 = vector.multi_reduction <maximumf>, %52, %cst_27 [1] : vector<32x32xf32> to vector<32xf32>
    %54 = vector.shape_cast %53 : vector<32xf32> to vector<32x1xf32>
    %55 = vector.broadcast %54 : vector<32x1xf32> to vector<32x32xf32>
    %56 = arith.subf %52, %55 : vector<32x32xf32>
    %57 = math.exp %56 : vector<32x32xf32>
    %cst_28 = arith.constant dense<0.000000e+00> : vector<32xf32>
    %58 = vector.multi_reduction <add>, %57, %cst_28 [1] : vector<32x32xf32> to vector<32xf32>
    %59 = vector.shape_cast %58 : vector<32xf32> to vector<32x1xf32>
    %cst_29 = arith.constant 1.000000e+00 : f32
    %60 = vector.broadcast %cst_29 : f32 to vector<32x1xf32>
    %61 = arith.divf %60, %59 : vector<32x1xf32>
    %62 = vector.broadcast %61 : vector<32x1xf32> to vector<32x32xf32>
    %63 = arith.mulf %57, %62 : vector<32x32xf32>
    %64 = arith.truncf %63 : vector<32x32xf32> to vector<32x32xbf16>
    %cst_30 = arith.constant dense<0.000000e+00> : vector<32x32xf32>
    %65 = tpu.matmul %64, %49, %cst_30 {dimension_numbers = #tpu.dot_dimension_numbers<[1], [0], [0], [1], [0, 0, 1, 1], [], []>} : vector<32x32xbf16>, vector<32x32xbf16>, vector<32x32xf32> -> vector<32x32xf32>
    %66 = arith.truncf %65 : vector<32x32xf32> to vector<32x32xbf16>
    %c0_31 = arith.constant 0 : index
    %c0_32 = arith.constant 0 : index
    %67 = vector.load %arg19[%c0_31, %c0_32] : memref<32x128xbf16, #tpu.memory_space<vmem>>, vector<32x32xbf16>
    tpu.vector_store %arg19[%c0_31, %c0_32], %66 {strides = array<i32>} : memref<32x128xbf16, #tpu.memory_space<vmem>>, vector<32x32xbf16>,
    %68 = vector.extract_strided_slice %46 {offsets = [0, 32], sizes = [32, 32], strides = [1, 1]} : vector<32x384xbf16> to vector<32x32xbf16>
    %69 = vector.extract_strided_slice %46 {offsets = [0, 160], sizes = [32, 32], strides = [1, 1]} : vector<32x384xbf16> to vector<32x32xbf16>
    %70 = vector.extract_strided_slice %46 {offsets = [0, 288], sizes = [32, 32], strides = [1, 1]} : vector<32x384xbf16> to vector<32x32xbf16>
    %cst_33 = arith.constant dense<0.000000e+00> : vector<32x32xf32>
    %71 = tpu.matmul %68, %69, %cst_33 {dimension_numbers = #tpu.dot_dimension_numbers<[1], [1], [0], [0], [0, 0, 1, 0], [], []>} : vector<32x32xbf16>, vector<32x32xbf16>, vector<32x32xf32> -> vector<32x32xf32>
    %72 = vector.broadcast %5 : vector<1x32xf32> to vector<32x32xf32>
    %73 = arith.addf %71, %72 : vector<32x32xf32>
    %cst_34 = arith.constant dense<0xFF800000> : vector<32xf32>
    %74 = vector.multi_reduction <maximumf>, %73, %cst_34 [1] : vector<32x32xf32> to vector<32xf32>
    %75 = vector.shape_cast %74 : vector<32xf32> to vector<32x1xf32>
    %76 = vector.broadcast %75 : vector<32x1xf32> to vector<32x32xf32>
    %77 = arith.subf %73, %76 : vector<32x32xf32>
    %78 = math.exp %77 : vector<32x32xf32>
    %cst_35 = arith.constant dense<0.000000e+00> : vector<32xf32>
    %79 = vector.multi_reduction <add>, %78, %cst_35 [1] : vector<32x32xf32> to vector<32xf32>
    %80 = vector.shape_cast %79 : vector<32xf32> to vector<32x1xf32>
    %cst_36 = arith.constant 1.000000e+00 : f32
    %81 = vector.broadcast %cst_36 : f32 to vector<32x1xf32>
    %82 = arith.divf %81, %80 : vector<32x1xf32>
    %83 = vector.broadcast %82 : vector<32x1xf32> to vector<32x32xf32>
    %84 = arith.mulf %78, %83 : vector<32x32xf32>
    %85 = arith.truncf %84 : vector<32x32xf32> to vector<32x32xbf16>
    %cst_37 = arith.constant dense<0.000000e+00> : vector<32x32xf32>
    %86 = tpu.matmul %85, %70, %cst_37 {dimension_numbers = #tpu.dot_dimension_numbers<[1], [0], [0], [1], [0, 0, 1, 1], [], []>} : vector<32x32xbf16>, vector<32x32xbf16>, vector<32x32xf32> -> vector<32x32xf32>
    %87 = arith.truncf %86 : vector<32x32xf32> to vector<32x32xbf16>
    %c0_38 = arith.constant 0 : index
    %c32 = arith.constant 32 : index
    %88 = vector.load %arg19[%c0_38, %c32] : memref<32x128xbf16, #tpu.memory_space<vmem>>, vector<32x32xbf16>
    tpu.vector_store %arg19[%c0_38, %c32], %87 {strides = array<i32>} : memref<32x128xbf16, #tpu.memory_space<vmem>>, vector<32x32xbf16>,
    %89 = vector.extract_strided_slice %46 {offsets = [0, 64], sizes = [32, 32], strides = [1, 1]} : vector<32x384xbf16> to vector<32x32xbf16>
    %90 = vector.extract_strided_slice %46 {offsets = [0, 192], sizes = [32, 32], strides = [1, 1]} : vector<32x384xbf16> to vector<32x32xbf16>
    %91 = vector.extract_strided_slice %46 {offsets = [0, 320], sizes = [32, 32], strides = [1, 1]} : vector<32x384xbf16> to vector<32x32xbf16>
    %cst_39 = arith.constant dense<0.000000e+00> : vector<32x32xf32>
    %92 = tpu.matmul %89, %90, %cst_39 {dimension_numbers = #tpu.dot_dimension_numbers<[1], [1], [0], [0], [0, 0, 1, 0], [], []>} : vector<32x32xbf16>, vector<32x32xbf16>, vector<32x32xf32> -> vector<32x32xf32>
    %93 = vector.broadcast %5 : vector<1x32xf32> to vector<32x32xf32>
    %94 = arith.addf %92, %93 : vector<32x32xf32>
    %cst_40 = arith.constant dense<0xFF800000> : vector<32xf32>
    %95 = vector.multi_reduction <maximumf>, %94, %cst_40 [1] : vector<32x32xf32> to vector<32xf32>
    %96 = vector.shape_cast %95 : vector<32xf32> to vector<32x1xf32>
    %97 = vector.broadcast %96 : vector<32x1xf32> to vector<32x32xf32>
    %98 = arith.subf %94, %97 : vector<32x32xf32>
    %99 = math.exp %98 : vector<32x32xf32>
    %cst_41 = arith.constant dense<0.000000e+00> : vector<32xf32>
    %100 = vector.multi_reduction <add>, %99, %cst_41 [1] : vector<32x32xf32> to vector<32xf32>
    %101 = vector.shape_cast %100 : vector<32xf32> to vector<32x1xf32>
    %cst_42 = arith.constant 1.000000e+00 : f32
    %102 = vector.broadcast %cst_42 : f32 to vector<32x1xf32>
    %103 = arith.divf %102, %101 : vector<32x1xf32>
    %104 = vector.broadcast %103 : vector<32x1xf32> to vector<32x32xf32>
    %105 = arith.mulf %99, %104 : vector<32x32xf32>
    %106 = arith.truncf %105 : vector<32x32xf32> to vector<32x32xbf16>
    %cst_43 = arith.constant dense<0.000000e+00> : vector<32x32xf32>
    %107 = tpu.matmul %106, %91, %cst_43 {dimension_numbers = #tpu.dot_dimension_numbers<[1], [0], [0], [1], [0, 0, 1, 1], [], []>} : vector<32x32xbf16>, vector<32x32xbf16>, vector<32x32xf32> -> vector<32x32xf32>
    %108 = arith.truncf %107 : vector<32x32xf32> to vector<32x32xbf16>
    %c0_44 = arith.constant 0 : index
    %c64 = arith.constant 64 : index
    %109 = vector.load %arg19[%c0_44, %c64] : memref<32x128xbf16, #tpu.memory_space<vmem>>, vector<32x32xbf16>
    tpu.vector_store %arg19[%c0_44, %c64], %108 {strides = array<i32>} : memref<32x128xbf16, #tpu.memory_space<vmem>>, vector<32x32xbf16>,
    %110 = vector.extract_strided_slice %46 {offsets = [0, 96], sizes = [32, 32], strides = [1, 1]} : vector<32x384xbf16> to vector<32x32xbf16>
    %111 = vector.extract_strided_slice %46 {offsets = [0, 224], sizes = [32, 32], strides = [1, 1]} : vector<32x384xbf16> to vector<32x32xbf16>
    %112 = vector.extract_strided_slice %46 {offsets = [0, 352], sizes = [32, 32], strides = [1, 1]} : vector<32x384xbf16> to vector<32x32xbf16>
    %cst_45 = arith.constant dense<0.000000e+00> : vector<32x32xf32>
    %113 = tpu.matmul %110, %111, %cst_45 {dimension_numbers = #tpu.dot_dimension_numbers<[1], [1], [0], [0], [0, 0, 1, 0], [], []>} : vector<32x32xbf16>, vector<32x32xbf16>, vector<32x32xf32> -> vector<32x32xf32>
    %114 = vector.broadcast %5 : vector<1x32xf32> to vector<32x32xf32>
    %115 = arith.addf %113, %114 : vector<32x32xf32>
    %cst_46 = arith.constant dense<0xFF800000> : vector<32xf32>
    %116 = vector.multi_reduction <maximumf>, %115, %cst_46 [1] : vector<32x32xf32> to vector<32xf32>
    %117 = vector.shape_cast %116 : vector<32xf32> to vector<32x1xf32>
    %118 = vector.broadcast %117 : vector<32x1xf32> to vector<32x32xf32>
    %119 = arith.subf %115, %118 : vector<32x32xf32>
    %120 = math.exp %119 : vector<32x32xf32>
    %cst_47 = arith.constant dense<0.000000e+00> : vector<32xf32>
    %121 = vector.multi_reduction <add>, %120, %cst_47 [1] : vector<32x32xf32> to vector<32xf32>
    %122 = vector.shape_cast %121 : vector<32xf32> to vector<32x1xf32>
    %cst_48 = arith.constant 1.000000e+00 : f32
    %123 = vector.broadcast %cst_48 : f32 to vector<32x1xf32>
    %124 = arith.divf %123, %122 : vector<32x1xf32>
    %125 = vector.broadcast %124 : vector<32x1xf32> to vector<32x32xf32>
    %126 = arith.mulf %120, %125 : vector<32x32xf32>
    %127 = arith.truncf %126 : vector<32x32xf32> to vector<32x32xbf16>
    %cst_49 = arith.constant dense<0.000000e+00> : vector<32x32xf32>
    %128 = tpu.matmul %127, %112, %cst_49 {dimension_numbers = #tpu.dot_dimension_numbers<[1], [0], [0], [1], [0, 0, 1, 1], [], []>} : vector<32x32xbf16>, vector<32x32xbf16>, vector<32x32xf32> -> vector<32x32xf32>
    %129 = arith.truncf %128 : vector<32x32xf32> to vector<32x32xbf16>
    %c0_50 = arith.constant 0 : index
    %c96 = arith.constant 96 : index
    %130 = vector.load %arg19[%c0_50, %c96] : memref<32x128xbf16, #tpu.memory_space<vmem>>, vector<32x32xbf16>
    tpu.vector_store %arg19[%c0_50, %c96], %129 {strides = array<i32>} : memref<32x128xbf16, #tpu.memory_space<vmem>>, vector<32x32xbf16>,
    %c0_51 = arith.constant 0 : index
    %c0_52 = arith.constant 0 : index
    %131 = vector.load %arg19[%c0_51, %c0_52] : memref<32x128xbf16, #tpu.memory_space<vmem>>, vector<32x128xbf16>
    %c0_53 = arith.constant 0 : index
    %c0_54 = arith.constant 0 : index
    %c0_55 = arith.constant 0 : index
    %132 = vector.load %arg8[%c0_53, %c0_54, %c0_55] : memref<2x128x128xbf16, #tpu.memory_space<vmem>>, vector<1x128x128xbf16>
    %133 = vector.shape_cast %132 : vector<1x128x128xbf16> to vector<128x128xbf16>
    %cst_56 = arith.constant dense<0.000000e+00> : vector<32x128xf32>
    %134 = tpu.matmul %131, %133, %cst_56 {dimension_numbers = #tpu.dot_dimension_numbers<[1], [0], [0], [1], [0, 0, 1, 1], [], []>} : vector<32x128xbf16>, vector<128x128xbf16>, vector<32x128xf32> -> vector<32x128xf32>
    %135 = arith.addf %11, %134 : vector<32x128xf32>
    %c0_57 = arith.constant 0 : index
    %c0_58 = arith.constant 0 : index
    %c0_59 = arith.constant 0 : index
    %136 = vector.load %arg9[%c0_57, %c0_58, %c0_59] : memref<2x1x128xf32, #tpu.memory_space<vmem>>, vector<1x1x128xf32>
    %137 = vector.shape_cast %136 : vector<1x1x128xf32> to vector<1x128xf32>
    %138 = vector.broadcast %137 : vector<1x128xf32> to vector<32x128xf32>
    %139 = arith.addf %135, %138 : vector<32x128xf32>
    %c0_60 = arith.constant 0 : index
    %c0_61 = arith.constant 0 : index
    %c0_62 = arith.constant 0 : index
    %140 = vector.load %arg10[%c0_60, %c0_61, %c0_62] : memref<2x1x128xf32, #tpu.memory_space<vmem>>, vector<1x1x128xf32>
    %141 = vector.shape_cast %140 : vector<1x1x128xf32> to vector<1x128xf32>
    %c0_63 = arith.constant 0 : index
    %c0_64 = arith.constant 0 : index
    %c0_65 = arith.constant 0 : index
    %142 = vector.load %arg11[%c0_63, %c0_64, %c0_65] : memref<2x1x128xf32, #tpu.memory_space<vmem>>, vector<1x1x128xf32>
    %143 = vector.shape_cast %142 : vector<1x1x128xf32> to vector<1x128xf32>
    %cst_66 = arith.constant dense<0.000000e+00> : vector<32xf32>
    %144 = vector.multi_reduction <add>, %139, %cst_66 [1] : vector<32x128xf32> to vector<32xf32>
    %145 = vector.shape_cast %144 : vector<32xf32> to vector<32x1xf32>
    %cst_67 = arith.constant 1.280000e+02 : f32
    %146 = vector.broadcast %cst_67 : f32 to vector<32x1xf32>
    %147 = arith.divf %145, %146 : vector<32x1xf32>
    %148 = vector.broadcast %147 : vector<32x1xf32> to vector<32x128xf32>
    %149 = arith.subf %139, %148 : vector<32x128xf32>
    %150 = arith.mulf %149, %149 : vector<32x128xf32>
    %cst_68 = arith.constant dense<0.000000e+00> : vector<32xf32>
    %151 = vector.multi_reduction <add>, %150, %cst_68 [1] : vector<32x128xf32> to vector<32xf32>
    %152 = vector.shape_cast %151 : vector<32xf32> to vector<32x1xf32>
    %cst_69 = arith.constant 1.280000e+02 : f32
    %153 = vector.broadcast %cst_69 : f32 to vector<32x1xf32>
    %154 = arith.divf %152, %153 : vector<32x1xf32>
    %155 = vector.broadcast %147 : vector<32x1xf32> to vector<32x128xf32>
    %156 = arith.subf %139, %155 : vector<32x128xf32>
    %cst_70 = arith.constant 9.99999996E-13 : f32
    %157 = vector.broadcast %cst_70 : f32 to vector<32x1xf32>
    %158 = arith.addf %154, %157 : vector<32x1xf32>
    %159 = math.rsqrt %158 : vector<32x1xf32>
    %160 = vector.broadcast %159 : vector<32x1xf32> to vector<32x128xf32>
    %161 = arith.mulf %156, %160 : vector<32x128xf32>
    %162 = vector.broadcast %141 : vector<1x128xf32> to vector<32x128xf32>
    %163 = arith.mulf %161, %162 : vector<32x128xf32>
    %164 = vector.broadcast %143 : vector<1x128xf32> to vector<32x128xf32>
    %165 = arith.addf %163, %164 : vector<32x128xf32>
    %166 = arith.truncf %165 : vector<32x128xf32> to vector<32x128xbf16>
    %c0_71 = arith.constant 0 : index
    %c0_72 = arith.constant 0 : index
    %c0_73 = arith.constant 0 : index
    %167 = vector.load %arg12[%c0_71, %c0_72, %c0_73] : memref<2x128x512xbf16, #tpu.memory_space<vmem>>, vector<1x128x512xbf16>
    %168 = vector.shape_cast %167 : vector<1x128x512xbf16> to vector<128x512xbf16>
    %cst_74 = arith.constant dense<0.000000e+00> : vector<32x512xf32>
    %169 = tpu.matmul %166, %168, %cst_74 {dimension_numbers = #tpu.dot_dimension_numbers<[1], [0], [0], [1], [0, 0, 1, 1], [], []>} : vector<32x128xbf16>, vector<128x512xbf16>, vector<32x512xf32> -> vector<32x512xf32>
    %c0_75 = arith.constant 0 : index
    %c0_76 = arith.constant 0 : index
    %c0_77 = arith.constant 0 : index
    %170 = vector.load %arg13[%c0_75, %c0_76, %c0_77] : memref<2x1x512xf32, #tpu.memory_space<vmem>>, vector<1x1x512xf32>
    %171 = vector.shape_cast %170 : vector<1x1x512xf32> to vector<1x512xf32>
    %172 = vector.broadcast %171 : vector<1x512xf32> to vector<32x512xf32>
    %173 = arith.addf %169, %172 : vector<32x512xf32>
    %cst_78 = arith.constant 5.000000e-01 : f32
    %174 = vector.broadcast %cst_78 : f32 to vector<32x512xf32>
    %175 = arith.mulf %174, %173 : vector<32x512xf32>
    %cst_79 = arith.constant 0.707106769 : f32
    %176 = vector.broadcast %cst_79 : f32 to vector<32x512xf32>
    %177 = arith.mulf %173, %176 : vector<32x512xf32>
    %178 = math.erf %177 : vector<32x512xf32>
    %cst_80 = arith.constant 1.000000e+00 : f32
    %179 = vector.broadcast %cst_80 : f32 to vector<32x512xf32>
    %180 = arith.addf %179, %178 : vector<32x512xf32>
    %181 = arith.mulf %175, %180 : vector<32x512xf32>
    %182 = arith.truncf %181 : vector<32x512xf32> to vector<32x512xbf16>
    %c0_81 = arith.constant 0 : index
    %c0_82 = arith.constant 0 : index
    %c0_83 = arith.constant 0 : index
    %183 = vector.load %arg14[%c0_81, %c0_82, %c0_83] : memref<2x512x128xbf16, #tpu.memory_space<vmem>>, vector<1x512x128xbf16>
    %184 = vector.shape_cast %183 : vector<1x512x128xbf16> to vector<512x128xbf16>
    %cst_84 = arith.constant dense<0.000000e+00> : vector<32x128xf32>
    %185 = tpu.matmul %182, %184, %cst_84 {dimension_numbers = #tpu.dot_dimension_numbers<[1], [0], [0], [1], [0, 0, 1, 1], [], []>} : vector<32x512xbf16>, vector<512x128xbf16>, vector<32x128xf32> -> vector<32x128xf32>
    %186 = arith.addf %139, %185 : vector<32x128xf32>
    %c0_85 = arith.constant 0 : index
    %c0_86 = arith.constant 0 : index
    %c0_87 = arith.constant 0 : index
    %187 = vector.load %arg15[%c0_85, %c0_86, %c0_87] : memref<2x1x128xf32, #tpu.memory_space<vmem>>, vector<1x1x128xf32>
    %188 = vector.shape_cast %187 : vector<1x1x128xf32> to vector<1x128xf32>
    %189 = vector.broadcast %188 : vector<1x128xf32> to vector<32x128xf32>
    %190 = arith.addf %186, %189 : vector<32x128xf32>
    %c1 = arith.constant 1 : index
    %c0_88 = arith.constant 0 : index
    %c0_89 = arith.constant 0 : index
    %191 = vector.load %arg4[%c1, %c0_88, %c0_89] : memref<2x1x128xf32, #tpu.memory_space<vmem>>, vector<1x1x128xf32>
    %192 = vector.shape_cast %191 : vector<1x1x128xf32> to vector<1x128xf32>
    %c1_90 = arith.constant 1 : index
    %c0_91 = arith.constant 0 : index
    %c0_92 = arith.constant 0 : index
    %193 = vector.load %arg5[%c1_90, %c0_91, %c0_92] : memref<2x1x128xf32, #tpu.memory_space<vmem>>, vector<1x1x128xf32>
    %194 = vector.shape_cast %193 : vector<1x1x128xf32> to vector<1x128xf32>
    %cst_93 = arith.constant dense<0.000000e+00> : vector<32xf32>
    %195 = vector.multi_reduction <add>, %190, %cst_93 [1] : vector<32x128xf32> to vector<32xf32>
    %196 = vector.shape_cast %195 : vector<32xf32> to vector<32x1xf32>
    %cst_94 = arith.constant 1.280000e+02 : f32
    %197 = vector.broadcast %cst_94 : f32 to vector<32x1xf32>
    %198 = arith.divf %196, %197 : vector<32x1xf32>
    %199 = vector.broadcast %198 : vector<32x1xf32> to vector<32x128xf32>
    %200 = arith.subf %190, %199 : vector<32x128xf32>
    %201 = arith.mulf %200, %200 : vector<32x128xf32>
    %cst_95 = arith.constant dense<0.000000e+00> : vector<32xf32>
    %202 = vector.multi_reduction <add>, %201, %cst_95 [1] : vector<32x128xf32> to vector<32xf32>
    %203 = vector.shape_cast %202 : vector<32xf32> to vector<32x1xf32>
    %cst_96 = arith.constant 1.280000e+02 : f32
    %204 = vector.broadcast %cst_96 : f32 to vector<32x1xf32>
    %205 = arith.divf %203, %204 : vector<32x1xf32>
    %206 = vector.broadcast %198 : vector<32x1xf32> to vector<32x128xf32>
    %207 = arith.subf %190, %206 : vector<32x128xf32>
    %cst_97 = arith.constant 9.99999996E-13 : f32
    %208 = vector.broadcast %cst_97 : f32 to vector<32x1xf32>
    %209 = arith.addf %205, %208 : vector<32x1xf32>
    %210 = math.rsqrt %209 : vector<32x1xf32>
    %211 = vector.broadcast %210 : vector<32x1xf32> to vector<32x128xf32>
    %212 = arith.mulf %207, %211 : vector<32x128xf32>
    %213 = vector.broadcast %192 : vector<1x128xf32> to vector<32x128xf32>
    %214 = arith.mulf %212, %213 : vector<32x128xf32>
    %215 = vector.broadcast %194 : vector<1x128xf32> to vector<32x128xf32>
    %216 = arith.addf %214, %215 : vector<32x128xf32>
    %217 = arith.truncf %216 : vector<32x128xf32> to vector<32x128xbf16>
    %c1_98 = arith.constant 1 : index
    %c0_99 = arith.constant 0 : index
    %c0_100 = arith.constant 0 : index
    %218 = vector.load %arg6[%c1_98, %c0_99, %c0_100] : memref<2x128x384xbf16, #tpu.memory_space<vmem>>, vector<1x128x384xbf16>
    %219 = vector.shape_cast %218 : vector<1x128x384xbf16> to vector<128x384xbf16>
    %cst_101 = arith.constant dense<0.000000e+00> : vector<32x384xf32>
    %220 = tpu.matmul %217, %219, %cst_101 {dimension_numbers = #tpu.dot_dimension_numbers<[1], [0], [0], [1], [0, 0, 1, 1], [], []>} : vector<32x128xbf16>, vector<128x384xbf16>, vector<32x384xf32> -> vector<32x384xf32>
    %c1_102 = arith.constant 1 : index
    %c0_103 = arith.constant 0 : index
    %c0_104 = arith.constant 0 : index
    %221 = vector.load %arg7[%c1_102, %c0_103, %c0_104] : memref<2x1x384xf32, #tpu.memory_space<vmem>>, vector<1x1x384xf32>
    %222 = vector.shape_cast %221 : vector<1x1x384xf32> to vector<1x384xf32>
    %223 = vector.broadcast %222 : vector<1x384xf32> to vector<32x384xf32>
    %224 = arith.addf %220, %223 : vector<32x384xf32>
    %225 = arith.truncf %224 : vector<32x384xf32> to vector<32x384xbf16>
    %226 = vector.extract_strided_slice %225 {offsets = [0, 0], sizes = [32, 32], strides = [1, 1]} : vector<32x384xbf16> to vector<32x32xbf16>
    %227 = vector.extract_strided_slice %225 {offsets = [0, 128], sizes = [32, 32], strides = [1, 1]} : vector<32x384xbf16> to vector<32x32xbf16>
    %228 = vector.extract_strided_slice %225 {offsets = [0, 256], sizes = [32, 32], strides = [1, 1]} : vector<32x384xbf16> to vector<32x32xbf16>
    %cst_105 = arith.constant dense<0.000000e+00> : vector<32x32xf32>
    %229 = tpu.matmul %226, %227, %cst_105 {dimension_numbers = #tpu.dot_dimension_numbers<[1], [1], [0], [0], [0, 0, 1, 0], [], []>} : vector<32x32xbf16>, vector<32x32xbf16>, vector<32x32xf32> -> vector<32x32xf32>
    %230 = vector.broadcast %5 : vector<1x32xf32> to vector<32x32xf32>
    %231 = arith.addf %229, %230 : vector<32x32xf32>
    %cst_106 = arith.constant dense<0xFF800000> : vector<32xf32>
    %232 = vector.multi_reduction <maximumf>, %231, %cst_106 [1] : vector<32x32xf32> to vector<32xf32>
    %233 = vector.shape_cast %232 : vector<32xf32> to vector<32x1xf32>
    %234 = vector.broadcast %233 : vector<32x1xf32> to vector<32x32xf32>
    %235 = arith.subf %231, %234 : vector<32x32xf32>
    %236 = math.exp %235 : vector<32x32xf32>
    %cst_107 = arith.constant dense<0.000000e+00> : vector<32xf32>
    %237 = vector.multi_reduction <add>, %236, %cst_107 [1] : vector<32x32xf32> to vector<32xf32>
    %238 = vector.shape_cast %237 : vector<32xf32> to vector<32x1xf32>
    %cst_108 = arith.constant 1.000000e+00 : f32
    %239 = vector.broadcast %cst_108 : f32 to vector<32x1xf32>
    %240 = arith.divf %239, %238 : vector<32x1xf32>
    %241 = vector.broadcast %240 : vector<32x1xf32> to vector<32x32xf32>
    %242 = arith.mulf %236, %241 : vector<32x32xf32>
    %243 = arith.truncf %242 : vector<32x32xf32> to vector<32x32xbf16>
    %cst_109 = arith.constant dense<0.000000e+00> : vector<32x32xf32>
    %244 = tpu.matmul %243, %228, %cst_109 {dimension_numbers = #tpu.dot_dimension_numbers<[1], [0], [0], [1], [0, 0, 1, 1], [], []>} : vector<32x32xbf16>, vector<32x32xbf16>, vector<32x32xf32> -> vector<32x32xf32>
    %245 = arith.truncf %244 : vector<32x32xf32> to vector<32x32xbf16>
    %c0_110 = arith.constant 0 : index
    %c0_111 = arith.constant 0 : index
    %246 = vector.load %arg19[%c0_110, %c0_111] : memref<32x128xbf16, #tpu.memory_space<vmem>>, vector<32x32xbf16>
    tpu.vector_store %arg19[%c0_110, %c0_111], %245 {strides = array<i32>} : memref<32x128xbf16, #tpu.memory_space<vmem>>, vector<32x32xbf16>,
    %247 = vector.extract_strided_slice %225 {offsets = [0, 32], sizes = [32, 32], strides = [1, 1]} : vector<32x384xbf16> to vector<32x32xbf16>
    %248 = vector.extract_strided_slice %225 {offsets = [0, 160], sizes = [32, 32], strides = [1, 1]} : vector<32x384xbf16> to vector<32x32xbf16>
    %249 = vector.extract_strided_slice %225 {offsets = [0, 288], sizes = [32, 32], strides = [1, 1]} : vector<32x384xbf16> to vector<32x32xbf16>
    %cst_112 = arith.constant dense<0.000000e+00> : vector<32x32xf32>
    %250 = tpu.matmul %247, %248, %cst_112 {dimension_numbers = #tpu.dot_dimension_numbers<[1], [1], [0], [0], [0, 0, 1, 0], [], []>} : vector<32x32xbf16>, vector<32x32xbf16>, vector<32x32xf32> -> vector<32x32xf32>
    %251 = vector.broadcast %5 : vector<1x32xf32> to vector<32x32xf32>
    %252 = arith.addf %250, %251 : vector<32x32xf32>
    %cst_113 = arith.constant dense<0xFF800000> : vector<32xf32>
    %253 = vector.multi_reduction <maximumf>, %252, %cst_113 [1] : vector<32x32xf32> to vector<32xf32>
    %254 = vector.shape_cast %253 : vector<32xf32> to vector<32x1xf32>
    %255 = vector.broadcast %254 : vector<32x1xf32> to vector<32x32xf32>
    %256 = arith.subf %252, %255 : vector<32x32xf32>
    %257 = math.exp %256 : vector<32x32xf32>
    %cst_114 = arith.constant dense<0.000000e+00> : vector<32xf32>
    %258 = vector.multi_reduction <add>, %257, %cst_114 [1] : vector<32x32xf32> to vector<32xf32>
    %259 = vector.shape_cast %258 : vector<32xf32> to vector<32x1xf32>
    %cst_115 = arith.constant 1.000000e+00 : f32
    %260 = vector.broadcast %cst_115 : f32 to vector<32x1xf32>
    %261 = arith.divf %260, %259 : vector<32x1xf32>
    %262 = vector.broadcast %261 : vector<32x1xf32> to vector<32x32xf32>
    %263 = arith.mulf %257, %262 : vector<32x32xf32>
    %264 = arith.truncf %263 : vector<32x32xf32> to vector<32x32xbf16>
    %cst_116 = arith.constant dense<0.000000e+00> : vector<32x32xf32>
    %265 = tpu.matmul %264, %249, %cst_116 {dimension_numbers = #tpu.dot_dimension_numbers<[1], [0], [0], [1], [0, 0, 1, 1], [], []>} : vector<32x32xbf16>, vector<32x32xbf16>, vector<32x32xf32> -> vector<32x32xf32>
    %266 = arith.truncf %265 : vector<32x32xf32> to vector<32x32xbf16>
    %c0_117 = arith.constant 0 : index
    %c32_118 = arith.constant 32 : index
    %267 = vector.load %arg19[%c0_117, %c32_118] : memref<32x128xbf16, #tpu.memory_space<vmem>>, vector<32x32xbf16>
    tpu.vector_store %arg19[%c0_117, %c32_118], %266 {strides = array<i32>} : memref<32x128xbf16, #tpu.memory_space<vmem>>, vector<32x32xbf16>,
    %268 = vector.extract_strided_slice %225 {offsets = [0, 64], sizes = [32, 32], strides = [1, 1]} : vector<32x384xbf16> to vector<32x32xbf16>
    %269 = vector.extract_strided_slice %225 {offsets = [0, 192], sizes = [32, 32], strides = [1, 1]} : vector<32x384xbf16> to vector<32x32xbf16>
    %270 = vector.extract_strided_slice %225 {offsets = [0, 320], sizes = [32, 32], strides = [1, 1]} : vector<32x384xbf16> to vector<32x32xbf16>
    %cst_119 = arith.constant dense<0.000000e+00> : vector<32x32xf32>
    %271 = tpu.matmul %268, %269, %cst_119 {dimension_numbers = #tpu.dot_dimension_numbers<[1], [1], [0], [0], [0, 0, 1, 0], [], []>} : vector<32x32xbf16>, vector<32x32xbf16>, vector<32x32xf32> -> vector<32x32xf32>
    %272 = vector.broadcast %5 : vector<1x32xf32> to vector<32x32xf32>
    %273 = arith.addf %271, %272 : vector<32x32xf32>
    %cst_120 = arith.constant dense<0xFF800000> : vector<32xf32>
    %274 = vector.multi_reduction <maximumf>, %273, %cst_120 [1] : vector<32x32xf32> to vector<32xf32>
    %275 = vector.shape_cast %274 : vector<32xf32> to vector<32x1xf32>
    %276 = vector.broadcast %275 : vector<32x1xf32> to vector<32x32xf32>
    %277 = arith.subf %273, %276 : vector<32x32xf32>
    %278 = math.exp %277 : vector<32x32xf32>
    %cst_121 = arith.constant dense<0.000000e+00> : vector<32xf32>
    %279 = vector.multi_reduction <add>, %278, %cst_121 [1] : vector<32x32xf32> to vector<32xf32>
    %280 = vector.shape_cast %279 : vector<32xf32> to vector<32x1xf32>
    %cst_122 = arith.constant 1.000000e+00 : f32
    %281 = vector.broadcast %cst_122 : f32 to vector<32x1xf32>
    %282 = arith.divf %281, %280 : vector<32x1xf32>
    %283 = vector.broadcast %282 : vector<32x1xf32> to vector<32x32xf32>
    %284 = arith.mulf %278, %283 : vector<32x32xf32>
    %285 = arith.truncf %284 : vector<32x32xf32> to vector<32x32xbf16>
    %cst_123 = arith.constant dense<0.000000e+00> : vector<32x32xf32>
    %286 = tpu.matmul %285, %270, %cst_123 {dimension_numbers = #tpu.dot_dimension_numbers<[1], [0], [0], [1], [0, 0, 1, 1], [], []>} : vector<32x32xbf16>, vector<32x32xbf16>, vector<32x32xf32> -> vector<32x32xf32>
    %287 = arith.truncf %286 : vector<32x32xf32> to vector<32x32xbf16>
    %c0_124 = arith.constant 0 : index
    %c64_125 = arith.constant 64 : index
    %288 = vector.load %arg19[%c0_124, %c64_125] : memref<32x128xbf16, #tpu.memory_space<vmem>>, vector<32x32xbf16>
    tpu.vector_store %arg19[%c0_124, %c64_125], %287 {strides = array<i32>} : memref<32x128xbf16, #tpu.memory_space<vmem>>, vector<32x32xbf16>,
    %289 = vector.extract_strided_slice %225 {offsets = [0, 96], sizes = [32, 32], strides = [1, 1]} : vector<32x384xbf16> to vector<32x32xbf16>
    %290 = vector.extract_strided_slice %225 {offsets = [0, 224], sizes = [32, 32], strides = [1, 1]} : vector<32x384xbf16> to vector<32x32xbf16>
    %291 = vector.extract_strided_slice %225 {offsets = [0, 352], sizes = [32, 32], strides = [1, 1]} : vector<32x384xbf16> to vector<32x32xbf16>
    %cst_126 = arith.constant dense<0.000000e+00> : vector<32x32xf32>
    %292 = tpu.matmul %289, %290, %cst_126 {dimension_numbers = #tpu.dot_dimension_numbers<[1], [1], [0], [0], [0, 0, 1, 0], [], []>} : vector<32x32xbf16>, vector<32x32xbf16>, vector<32x32xf32> -> vector<32x32xf32>
    %293 = vector.broadcast %5 : vector<1x32xf32> to vector<32x32xf32>
    %294 = arith.addf %292, %293 : vector<32x32xf32>
    %cst_127 = arith.constant dense<0xFF800000> : vector<32xf32>
    %295 = vector.multi_reduction <maximumf>, %294, %cst_127 [1] : vector<32x32xf32> to vector<32xf32>
    %296 = vector.shape_cast %295 : vector<32xf32> to vector<32x1xf32>
    %297 = vector.broadcast %296 : vector<32x1xf32> to vector<32x32xf32>
    %298 = arith.subf %294, %297 : vector<32x32xf32>
    %299 = math.exp %298 : vector<32x32xf32>
    %cst_128 = arith.constant dense<0.000000e+00> : vector<32xf32>
    %300 = vector.multi_reduction <add>, %299, %cst_128 [1] : vector<32x32xf32> to vector<32xf32>
    %301 = vector.shape_cast %300 : vector<32xf32> to vector<32x1xf32>
    %cst_129 = arith.constant 1.000000e+00 : f32
    %302 = vector.broadcast %cst_129 : f32 to vector<32x1xf32>
    %303 = arith.divf %302, %301 : vector<32x1xf32>
    %304 = vector.broadcast %303 : vector<32x1xf32> to vector<32x32xf32>
    %305 = arith.mulf %299, %304 : vector<32x32xf32>
    %306 = arith.truncf %305 : vector<32x32xf32> to vector<32x32xbf16>
    %cst_130 = arith.constant dense<0.000000e+00> : vector<32x32xf32>
    %307 = tpu.matmul %306, %291, %cst_130 {dimension_numbers = #tpu.dot_dimension_numbers<[1], [0], [0], [1], [0, 0, 1, 1], [], []>} : vector<32x32xbf16>, vector<32x32xbf16>, vector<32x32xf32> -> vector<32x32xf32>
    %308 = arith.truncf %307 : vector<32x32xf32> to vector<32x32xbf16>
    %c0_131 = arith.constant 0 : index
    %c96_132 = arith.constant 96 : index
    %309 = vector.load %arg19[%c0_131, %c96_132] : memref<32x128xbf16, #tpu.memory_space<vmem>>, vector<32x32xbf16>
    tpu.vector_store %arg19[%c0_131, %c96_132], %308 {strides = array<i32>} : memref<32x128xbf16, #tpu.memory_space<vmem>>, vector<32x32xbf16>,
    %c0_133 = arith.constant 0 : index
    %c0_134 = arith.constant 0 : index
    %310 = vector.load %arg19[%c0_133, %c0_134] : memref<32x128xbf16, #tpu.memory_space<vmem>>, vector<32x128xbf16>
    %c1_135 = arith.constant 1 : index
    %c0_136 = arith.constant 0 : index
    %c0_137 = arith.constant 0 : index
    %311 = vector.load %arg8[%c1_135, %c0_136, %c0_137] : memref<2x128x128xbf16, #tpu.memory_space<vmem>>, vector<1x128x128xbf16>
    %312 = vector.shape_cast %311 : vector<1x128x128xbf16> to vector<128x128xbf16>
    %cst_138 = arith.constant dense<0.000000e+00> : vector<32x128xf32>
    %313 = tpu.matmul %310, %312, %cst_138 {dimension_numbers = #tpu.dot_dimension_numbers<[1], [0], [0], [1], [0, 0, 1, 1], [], []>} : vector<32x128xbf16>, vector<128x128xbf16>, vector<32x128xf32> -> vector<32x128xf32>
    %314 = arith.addf %190, %313 : vector<32x128xf32>
    %c1_139 = arith.constant 1 : index
    %c0_140 = arith.constant 0 : index
    %c0_141 = arith.constant 0 : index
    %315 = vector.load %arg9[%c1_139, %c0_140, %c0_141] : memref<2x1x128xf32, #tpu.memory_space<vmem>>, vector<1x1x128xf32>
    %316 = vector.shape_cast %315 : vector<1x1x128xf32> to vector<1x128xf32>
    %317 = vector.broadcast %316 : vector<1x128xf32> to vector<32x128xf32>
    %318 = arith.addf %314, %317 : vector<32x128xf32>
    %c1_142 = arith.constant 1 : index
    %c0_143 = arith.constant 0 : index
    %c0_144 = arith.constant 0 : index
    %319 = vector.load %arg10[%c1_142, %c0_143, %c0_144] : memref<2x1x128xf32, #tpu.memory_space<vmem>>, vector<1x1x128xf32>
    %320 = vector.shape_cast %319 : vector<1x1x128xf32> to vector<1x128xf32>
    %c1_145 = arith.constant 1 : index
    %c0_146 = arith.constant 0 : index
    %c0_147 = arith.constant 0 : index
    %321 = vector.load %arg11[%c1_145, %c0_146, %c0_147] : memref<2x1x128xf32, #tpu.memory_space<vmem>>, vector<1x1x128xf32>
    %322 = vector.shape_cast %321 : vector<1x1x128xf32> to vector<1x128xf32>
    %cst_148 = arith.constant dense<0.000000e+00> : vector<32xf32>
    %323 = vector.multi_reduction <add>, %318, %cst_148 [1] : vector<32x128xf32> to vector<32xf32>
    %324 = vector.shape_cast %323 : vector<32xf32> to vector<32x1xf32>
    %cst_149 = arith.constant 1.280000e+02 : f32
    %325 = vector.broadcast %cst_149 : f32 to vector<32x1xf32>
    %326 = arith.divf %324, %325 : vector<32x1xf32>
    %327 = vector.broadcast %326 : vector<32x1xf32> to vector<32x128xf32>
    %328 = arith.subf %318, %327 : vector<32x128xf32>
    %329 = arith.mulf %328, %328 : vector<32x128xf32>
    %cst_150 = arith.constant dense<0.000000e+00> : vector<32xf32>
    %330 = vector.multi_reduction <add>, %329, %cst_150 [1] : vector<32x128xf32> to vector<32xf32>
    %331 = vector.shape_cast %330 : vector<32xf32> to vector<32x1xf32>
    %cst_151 = arith.constant 1.280000e+02 : f32
    %332 = vector.broadcast %cst_151 : f32 to vector<32x1xf32>
    %333 = arith.divf %331, %332 : vector<32x1xf32>
    %334 = vector.broadcast %326 : vector<32x1xf32> to vector<32x128xf32>
    %335 = arith.subf %318, %334 : vector<32x128xf32>
    %cst_152 = arith.constant 9.99999996E-13 : f32
    %336 = vector.broadcast %cst_152 : f32 to vector<32x1xf32>
    %337 = arith.addf %333, %336 : vector<32x1xf32>
    %338 = math.rsqrt %337 : vector<32x1xf32>
    %339 = vector.broadcast %338 : vector<32x1xf32> to vector<32x128xf32>
    %340 = arith.mulf %335, %339 : vector<32x128xf32>
    %341 = vector.broadcast %320 : vector<1x128xf32> to vector<32x128xf32>
    %342 = arith.mulf %340, %341 : vector<32x128xf32>
    %343 = vector.broadcast %322 : vector<1x128xf32> to vector<32x128xf32>
    %344 = arith.addf %342, %343 : vector<32x128xf32>
    %345 = arith.truncf %344 : vector<32x128xf32> to vector<32x128xbf16>
    %c1_153 = arith.constant 1 : index
    %c0_154 = arith.constant 0 : index
    %c0_155 = arith.constant 0 : index
    %346 = vector.load %arg12[%c1_153, %c0_154, %c0_155] : memref<2x128x512xbf16, #tpu.memory_space<vmem>>, vector<1x128x512xbf16>
    %347 = vector.shape_cast %346 : vector<1x128x512xbf16> to vector<128x512xbf16>
    %cst_156 = arith.constant dense<0.000000e+00> : vector<32x512xf32>
    %348 = tpu.matmul %345, %347, %cst_156 {dimension_numbers = #tpu.dot_dimension_numbers<[1], [0], [0], [1], [0, 0, 1, 1], [], []>} : vector<32x128xbf16>, vector<128x512xbf16>, vector<32x512xf32> -> vector<32x512xf32>
    %c1_157 = arith.constant 1 : index
    %c0_158 = arith.constant 0 : index
    %c0_159 = arith.constant 0 : index
    %349 = vector.load %arg13[%c1_157, %c0_158, %c0_159] : memref<2x1x512xf32, #tpu.memory_space<vmem>>, vector<1x1x512xf32>
    %350 = vector.shape_cast %349 : vector<1x1x512xf32> to vector<1x512xf32>
    %351 = vector.broadcast %350 : vector<1x512xf32> to vector<32x512xf32>
    %352 = arith.addf %348, %351 : vector<32x512xf32>
    %cst_160 = arith.constant 5.000000e-01 : f32
    %353 = vector.broadcast %cst_160 : f32 to vector<32x512xf32>
    %354 = arith.mulf %353, %352 : vector<32x512xf32>
    %cst_161 = arith.constant 0.707106769 : f32
    %355 = vector.broadcast %cst_161 : f32 to vector<32x512xf32>
    %356 = arith.mulf %352, %355 : vector<32x512xf32>
    %357 = math.erf %356 : vector<32x512xf32>
    %cst_162 = arith.constant 1.000000e+00 : f32
    %358 = vector.broadcast %cst_162 : f32 to vector<32x512xf32>
    %359 = arith.addf %358, %357 : vector<32x512xf32>
    %360 = arith.mulf %354, %359 : vector<32x512xf32>
    %361 = arith.truncf %360 : vector<32x512xf32> to vector<32x512xbf16>
    %c1_163 = arith.constant 1 : index
    %c0_164 = arith.constant 0 : index
    %c0_165 = arith.constant 0 : index
    %362 = vector.load %arg14[%c1_163, %c0_164, %c0_165] : memref<2x512x128xbf16, #tpu.memory_space<vmem>>, vector<1x512x128xbf16>
    %363 = vector.shape_cast %362 : vector<1x512x128xbf16> to vector<512x128xbf16>
    %cst_166 = arith.constant dense<0.000000e+00> : vector<32x128xf32>
    %364 = tpu.matmul %361, %363, %cst_166 {dimension_numbers = #tpu.dot_dimension_numbers<[1], [0], [0], [1], [0, 0, 1, 1], [], []>} : vector<32x512xbf16>, vector<512x128xbf16>, vector<32x128xf32> -> vector<32x128xf32>
    %365 = arith.addf %318, %364 : vector<32x128xf32>
    %c1_167 = arith.constant 1 : index
    %c0_168 = arith.constant 0 : index
    %c0_169 = arith.constant 0 : index
    %366 = vector.load %arg15[%c1_167, %c0_168, %c0_169] : memref<2x1x128xf32, #tpu.memory_space<vmem>>, vector<1x1x128xf32>
    %367 = vector.shape_cast %366 : vector<1x1x128xf32> to vector<1x128xf32>
    %368 = vector.broadcast %367 : vector<1x128xf32> to vector<32x128xf32>
    %369 = arith.addf %365, %368 : vector<32x128xf32>
    %c0_170 = arith.constant 0 : index
    %c0_171 = arith.constant 0 : index
    %370 = vector.load %arg16[%c0_170, %c0_171] : memref<1x128xf32, #tpu.memory_space<vmem>>, vector<1x128xf32>
    %c0_172 = arith.constant 0 : index
    %c0_173 = arith.constant 0 : index
    %371 = vector.load %arg17[%c0_172, %c0_173] : memref<1x128xf32, #tpu.memory_space<vmem>>, vector<1x128xf32>
    %cst_174 = arith.constant dense<0.000000e+00> : vector<32xf32>
    %372 = vector.multi_reduction <add>, %369, %cst_174 [1] : vector<32x128xf32> to vector<32xf32>
    %373 = vector.shape_cast %372 : vector<32xf32> to vector<32x1xf32>
    %cst_175 = arith.constant 1.280000e+02 : f32
    %374 = vector.broadcast %cst_175 : f32 to vector<32x1xf32>
    %375 = arith.divf %373, %374 : vector<32x1xf32>
    %376 = vector.broadcast %375 : vector<32x1xf32> to vector<32x128xf32>
    %377 = arith.subf %369, %376 : vector<32x128xf32>
    %378 = arith.mulf %377, %377 : vector<32x128xf32>
    %cst_176 = arith.constant dense<0.000000e+00> : vector<32xf32>
    %379 = vector.multi_reduction <add>, %378, %cst_176 [1] : vector<32x128xf32> to vector<32xf32>
    %380 = vector.shape_cast %379 : vector<32xf32> to vector<32x1xf32>
    %cst_177 = arith.constant 1.280000e+02 : f32
    %381 = vector.broadcast %cst_177 : f32 to vector<32x1xf32>
    %382 = arith.divf %380, %381 : vector<32x1xf32>
    %383 = vector.broadcast %375 : vector<32x1xf32> to vector<32x128xf32>
    %384 = arith.subf %369, %383 : vector<32x128xf32>
    %cst_178 = arith.constant 9.99999996E-13 : f32
    %385 = vector.broadcast %cst_178 : f32 to vector<32x1xf32>
    %386 = arith.addf %382, %385 : vector<32x1xf32>
    %387 = math.rsqrt %386 : vector<32x1xf32>
    %388 = vector.broadcast %387 : vector<32x1xf32> to vector<32x128xf32>
    %389 = arith.mulf %384, %388 : vector<32x128xf32>
    %390 = vector.broadcast %370 : vector<1x128xf32> to vector<32x128xf32>
    %391 = arith.mulf %389, %390 : vector<32x128xf32>
    %392 = vector.broadcast %371 : vector<1x128xf32> to vector<32x128xf32>
    %393 = arith.addf %391, %392 : vector<32x128xf32>
    %c0_179 = arith.constant 0 : index
    %c0_180 = arith.constant 0 : index
    %c0_181 = arith.constant 0 : index
    %394 = vector.load %arg18[%c0_179, %c0_180, %c0_181] : memref<1x32x128xf32, #tpu.memory_space<vmem>>, vector<1x32x128xf32>
    %395 = vector.shape_cast %394 : vector<1x32x128xf32> to vector<32x128xf32>
    %396 = vector.shape_cast %393 : vector<32x128xf32> to vector<1x32x128xf32>
    tpu.vector_store %arg18[%c0_179, %c0_180, %c0_181], %396 {strides = array<i32>} : memref<1x32x128xf32, #tpu.memory_space<vmem>>, vector<1x32x128xf32>,
    return
  }
  func.func @transform_0(%arg0: i32) -> (i32, i32, i32) {
    %c0_i32 = arith.constant 0 : i32
    %c0_i32_0 = arith.constant 0 : i32
    %c0_i32_1 = arith.constant 0 : i32
    return %arg0, %c0_i32, %c0_i32_0 : i32, i32, i32
  }
  func.func @transform_1(%arg0: i32) -> (i32, i32) {
    %c0_i32 = arith.constant 0 : i32
    %c0_i32_0 = arith.constant 0 : i32
    %c0_i32_1 = arith.constant 0 : i32
    return %c0_i32, %c0_i32_0 : i32, i32
  }
  func.func @transform_2(%arg0: i32) -> (i32, i32) {
    %c0_i32 = arith.constant 0 : i32
    %c0_i32_0 = arith.constant 0 : i32
    %c0_i32_1 = arith.constant 0 : i32
    return %c0_i32, %c0_i32_0 : i32, i32
  }
  func.func @transform_3(%arg0: i32) -> (i32, i32, i32) {
    %c0_i32 = arith.constant 0 : i32
    %c0_i32_0 = arith.constant 0 : i32
    %c0_i32_1 = arith.constant 0 : i32
    %c0_i32_2 = arith.constant 0 : i32
    return %c0_i32, %c0_i32_0, %c0_i32_1 : i32, i32, i32
  }
  func.func @transform_4(%arg0: i32) -> (i32, i32, i32) {
    %c0_i32 = arith.constant 0 : i32
    %c0_i32_0 = arith.constant 0 : i32
    %c0_i32_1 = arith.constant 0 : i32
    %c0_i32_2 = arith.constant 0 : i32
    return %c0_i32, %c0_i32_0, %c0_i32_1 : i32, i32, i32
  }
  func.func @transform_5(%arg0: i32) -> (i32, i32, i32) {
    %c0_i32 = arith.constant 0 : i32
    %c0_i32_0 = arith.constant 0 : i32
    %c0_i32_1 = arith.constant 0 : i32
    %c0_i32_2 = arith.constant 0 : i32
    return %c0_i32, %c0_i32_0, %c0_i32_1 : i32, i32, i32
  }
  func.func @transform_6(%arg0: i32) -> (i32, i32, i32) {
    %c0_i32 = arith.constant 0 : i32
    %c0_i32_0 = arith.constant 0 : i32
    %c0_i32_1 = arith.constant 0 : i32
    %c0_i32_2 = arith.constant 0 : i32
    return %c0_i32, %c0_i32_0, %c0_i32_1 : i32, i32, i32
  }
  func.func @transform_7(%arg0: i32) -> (i32, i32, i32) {
    %c0_i32 = arith.constant 0 : i32
    %c0_i32_0 = arith.constant 0 : i32
    %c0_i32_1 = arith.constant 0 : i32
    %c0_i32_2 = arith.constant 0 : i32
    return %c0_i32, %c0_i32_0, %c0_i32_1 : i32, i32, i32
  }
  func.func @transform_8(%arg0: i32) -> (i32, i32, i32) {
    %c0_i32 = arith.constant 0 : i32
    %c0_i32_0 = arith.constant 0 : i32
    %c0_i32_1 = arith.constant 0 : i32
    %c0_i32_2 = arith.constant 0 : i32
    return %c0_i32, %c0_i32_0, %c0_i32_1 : i32, i32, i32
  }
  func.func @transform_9(%arg0: i32) -> (i32, i32, i32) {
    %c0_i32 = arith.constant 0 : i32
    %c0_i32_0 = arith.constant 0 : i32
    %c0_i32_1 = arith.constant 0 : i32
    %c0_i32_2 = arith.constant 0 : i32
    return %c0_i32, %c0_i32_0, %c0_i32_1 : i32, i32, i32
  }
  func.func @transform_10(%arg0: i32) -> (i32, i32, i32) {
    %c0_i32 = arith.constant 0 : i32
    %c0_i32_0 = arith.constant 0 : i32
    %c0_i32_1 = arith.constant 0 : i32
    %c0_i32_2 = arith.constant 0 : i32
    return %c0_i32, %c0_i32_0, %c0_i32_1 : i32, i32, i32
  }
  func.func @transform_11(%arg0: i32) -> (i32, i32, i32) {
    %c0_i32 = arith.constant 0 : i32
    %c0_i32_0 = arith.constant 0 : i32
    %c0_i32_1 = arith.constant 0 : i32
    %c0_i32_2 = arith.constant 0 : i32
    return %c0_i32, %c0_i32_0, %c0_i32_1 : i32, i32, i32
  }
  func.func @transform_12(%arg0: i32) -> (i32, i32, i32) {
    %c0_i32 = arith.constant 0 : i32
    %c0_i32_0 = arith.constant 0 : i32
    %c0_i32_1 = arith.constant 0 : i32
    %c0_i32_2 = arith.constant 0 : i32
    return %c0_i32, %c0_i32_0, %c0_i32_1 : i32, i32, i32
  }
  func.func @transform_13(%arg0: i32) -> (i32, i32, i32) {
    %c0_i32 = arith.constant 0 : i32
    %c0_i32_0 = arith.constant 0 : i32
    %c0_i32_1 = arith.constant 0 : i32
    %c0_i32_2 = arith.constant 0 : i32
    return %c0_i32, %c0_i32_0, %c0_i32_1 : i32, i32, i32
  }
  func.func @transform_14(%arg0: i32) -> (i32, i32, i32) {
    %c0_i32 = arith.constant 0 : i32
    %c0_i32_0 = arith.constant 0 : i32
    %c0_i32_1 = arith.constant 0 : i32
    %c0_i32_2 = arith.constant 0 : i32
    return %c0_i32, %c0_i32_0, %c0_i32_1 : i32, i32, i32
  }
  func.func @transform_15(%arg0: i32) -> (i32, i32) {
    %c0_i32 = arith.constant 0 : i32
    %c0_i32_0 = arith.constant 0 : i32
    %c0_i32_1 = arith.constant 0 : i32
    return %c0_i32, %c0_i32_0 : i32, i32
  }
  func.func @transform_16(%arg0: i32) -> (i32, i32) {
    %c0_i32 = arith.constant 0 : i32
    %c0_i32_0 = arith.constant 0 : i32
    %c0_i32_1 = arith.constant 0 : i32
    return %c0_i32, %c0_i32_0 : i32, i32
  }
  func.func @transform_17(%arg0: i32) -> (i32, i32, i32) {
    %c0_i32 = arith.constant 0 : i32
    %c0_i32_0 = arith.constant 0 : i32
    %c0_i32_1 = arith.constant 0 : i32
    return %arg0, %c0_i32, %c0_i32_0 : i32, i32, i32
  }
}

</mosaic_0001>

<llo_original>
// kernel: _forward_padded.1
$region0: #{_forward_padded.1}
  #allocation0 [shape = 'u32[]', space=smem, size = 0x4, offset = 0x4, fixed_abs, tag = 'smem constant byte address 0x4 - core index']
  #allocation1 [shape = 'u32[144,128]{1,0:T(1,128)}', space=vmem, size = 0x12000, scoped, tag = 'internal scratch']
  #allocation2 [shape = 'bf16[32,128]{1,0:T(16,128)(2,1)}', space=vmem, size = 0x2000, scoped, tag = 'scratch operand']
  %s0 = inlined_call_operand.vmem [shape: bf16[2,32,192], index: 0, kind: input, shape index: {}]
  %s1 = inlined_call_operand.vmem [shape: bf16[192,128], index: 1, kind: input, shape index: {}]
  %s2 = inlined_call_operand.vmem [shape: f32[32,128], index: 2, kind: input, shape index: {}]
  %s3 = inlined_call_operand.vmem [shape: f32[2,1,128], index: 3, kind: input, shape index: {}]
  %s4 = inlined_call_operand.vmem [shape: f32[2,1,128], index: 4, kind: input, shape index: {}]
  %s5 = inlined_call_operand.vmem [shape: bf16[2,128,384], index: 5, kind: input, shape index: {}]
  %s6 = inlined_call_operand.vmem [shape: f32[2,1,384], index: 6, kind: input, shape index: {}]
  %s7 = inlined_call_operand.vmem [shape: bf16[2,128,128], index: 7, kind: input, shape index: {}]
  %s8 = inlined_call_operand.vmem [shape: f32[2,1,128], index: 8, kind: input, shape index: {}]
  %s9 = inlined_call_operand.vmem [shape: f32[2,1,128], index: 9, kind: input, shape index: {}]
  %s10 = inlined_call_operand.vmem [shape: f32[2,1,128], index: 10, kind: input, shape index: {}]
  %s11 = inlined_call_operand.vmem [shape: bf16[2,128,512], index: 11, kind: input, shape index: {}]
  %s12 = inlined_call_operand.vmem [shape: f32[2,1,512], index: 12, kind: input, shape index: {}]
  %s13 = inlined_call_operand.vmem [shape: bf16[2,512,128], index: 13, kind: input, shape index: {}]
  %s14 = inlined_call_operand.vmem [shape: f32[2,1,128], index: 14, kind: input, shape index: {}]
  %s15 = inlined_call_operand.vmem [shape: f32[1,128], index: 15, kind: input, shape index: {}]
  %s16 = inlined_call_operand.vmem [shape: f32[1,128], index: 16, kind: input, shape index: {}]
  %s17 = inlined_call_operand.vmem [shape: f32[2,32,128], index: 17, kind: output, shape index: {}]
  %s18 = sld [smem:[#allocation0]]
  $region101: #{_forward_padded.1} parent=0
    _
  %s20 = ssub.s32 1, %s18
  %s21 = scalar_select 0, %s20, %s18
  loop: start=0, step=1, limit=4
  $region2: #{_forward_padded.1} parent=0 // loop_pre_header
    _
  $region3: #{_forward_padded.1} parent=0 // loop_header
    %s23 = sphi 0, %s27
    %p24 = scmp.ge.s32.totalorder %s23, 4
    %s33 = sphi 0, %s35
    %s36 = sphi 0, %s33
    %s37 = sphi 0, %s36
    %s53 = sphi 0, %s37
    %s57 = sphi 0, %s57
    %s59 = sphi 0, %s57
    %s60 = sphi 0, %s59
    %s74 = sphi 0, %s60
    %s78 = sphi 0, %s78
    %s80 = sphi 0, %s78
    %s81 = sphi 0, %s80
    %s95 = sphi 0, %s81
    %s99 = sphi 0, %s99
    %s101 = sphi 0, %s99
    %s102 = sphi 0, %s101
    %s116 = sphi 0, %s102
    %s120 = sphi 0, %s120
    %s122 = sphi 0, %s120
    %s123 = sphi 0, %s122
    %s137 = sphi 0, %s123
    %s141 = sphi 0, %s141
    %s143 = sphi 0, %s141
    %s144 = sphi 0, %s143
    %s158 = sphi 0, %s144
    %s162 = sphi 0, %s162
    %s164 = sphi 0, %s162
    %s165 = sphi 0, %s164
    %s179 = sphi 0, %s165
    %s183 = sphi 0, %s183
    %s185 = sphi 0, %s183
    %s186 = sphi 0, %s185
    %s200 = sphi 0, %s186
    %s204 = sphi 0, %s204
    %s206 = sphi 0, %s204
    %s207 = sphi 0, %s206
    %s221 = sphi 0, %s207
    %s225 = sphi 0, %s225
    %s227 = sphi 0, %s225
    %s228 = sphi 0, %s227
    %s242 = sphi 0, %s228
    %s246 = sphi 0, %s246
    %s248 = sphi 0, %s246
    %s249 = sphi 0, %s248
    %s263 = sphi 0, %s249
    %s267 = sphi 0, %s267
    %s269 = sphi 0, %s267
    %s270 = sphi 0, %s269
    %s284 = sphi 0, %s270
    %s288 = sphi 0, %s288
    %s290 = sphi 0, %s288
    %s291 = sphi 0, %s290
    %s305 = sphi 0, %s291
    %s309 = sphi 0, %s309
    %s311 = sphi 0, %s309
    %s312 = sphi 0, %s311
    %s326 = sphi 0, %s312
    %s330 = sphi 0, %s330
    %s332 = sphi 0, %s330
    %s333 = sphi 0, %s332
    %s347 = sphi 0, %s333
    %s351 = sphi 0, %s351
    %s353 = sphi 0, %s351
    %s354 = sphi 0, %s353
    %s368 = sphi 0, %s354
    %s372 = sphi 0, %s372
    %s374 = sphi 0, %s372
    %s375 = sphi 0, %s374
    %s389 = sphi 0, %s375
    %s395 = sphi 0, %s397
    %s398 = sphi 0, %s395
    %s399 = sphi 0, %s398
    %s415 = sphi 0, %s399
  $region4: #{_forward_padded.1} parent=0 // loop_header_branch
    %26 = sbr.rel (%p24) target = $region8
  $region5: #{_forward_padded.1} parent=0 // loop_body
    %s28 = ssub.s32 %s23, 1
    %s29 = ssub.s32 %s23, 2
    %s30 = sadd.s32 %s23, 1
    %s31 = ssub.s32 %s23, %s30
    %p32 = scmp.eq.s32.totalorder %s31, 0
    %s34 = sadd.s32 %s33, 1
    %s35 = scalar_select %p32, %s33, %s34
    %p38 = pneg %p32
    %p39 = scmp.eq.s32.totalorder %s23, 1
    %p40 = por %p38, %p39
    %p41 = scmp.ne.s32.totalorder %s33, %s36
    %p42 = scmp.eq.s32.totalorder %s23, 0
    %p43 = por %p41, %p42
    %p44 = scmp.ne.s32.totalorder %s33, %s36
    %p45 = scmp.eq.s32.totalorder %s28, 1
    %p46 = por %p44, %p45
    %p47 = scmp.ne.s32.totalorder %s36, %s37
    %p48 = scmp.eq.s32.totalorder %s28, 0
    %p49 = por %p47, %p48
    %p50 = scmp.ne.s32.totalorder %s36, %s37
    %p51 = scmp.eq.s32.totalorder %s29, 1
    %p52 = por %p50, %p51
    %p54 = scmp.ne.s32.totalorder %s37, %s53
    %p55 = scmp.eq.s32.totalorder %s29, 0
    %p56 = por %p54, %p55
    %s58 = sadd.s32 %s57, 1
    %p61 = scmp.eq.s32.totalorder %s23, 1
    %p62 = scmp.ne.s32.totalorder %s57, %s59
    %p63 = scmp.eq.s32.totalorder %s23, 0
    %p64 = por %p62, %p63
    %p65 = scmp.ne.s32.totalorder %s57, %s59
    %p66 = scmp.eq.s32.totalorder %s28, 1
    %p67 = por %p65, %p66
    %p68 = scmp.ne.s32.totalorder %s59, %s60
    %p69 = scmp.eq.s32.totalorder %s28, 0
    %p70 = por %p68, %p69
    %p71 = scmp.ne.s32.totalorder %s59, %s60
    %p72 = scmp.eq.s32.totalorder %s29, 1
    %p73 = por %p71, %p72
    %p75 = scmp.ne.s32.totalorder %s60, %s74
    %p76 = scmp.eq.s32.totalorder %s29, 0
    %p77 = por %p75, %p76
    %s79 = sadd.s32 %s78, 1
    %p82 = scmp.eq.s32.totalorder %s23, 1
    %p83 = scmp.ne.s32.totalorder %s78, %s80
    %p84 = scmp.eq.s32.totalorder %s23, 0
    %p85 = por %p83, %p84
    %p86 = scmp.ne.s32.totalorder %s78, %s80
    %p87 = scmp.eq.s32.totalorder %s28, 1
    %p88 = por %p86, %p87
    %p89 = scmp.ne.s32.totalorder %s80, %s81
    %p90 = scmp.eq.s32.totalorder %s28, 0
    %p91 = por %p89, %p90
    %p92 = scmp.ne.s32.totalorder %s80, %s81
    %p93 = scmp.eq.s32.totalorder %s29, 1
    %p94 = por %p92, %p93
    %p96 = scmp.ne.s32.totalorder %s81, %s95
    %p97 = scmp.eq.s32.totalorder %s29, 0
    %p98 = por %p96, %p97
    %s100 = sadd.s32 %s99, 1
    %p103 = scmp.eq.s32.totalorder %s23, 1
    %p104 = scmp.ne.s32.totalorder %s99, %s101
    %p105 = scmp.eq.s32.totalorder %s23, 0
    %p106 = por %p104, %p105
    %p107 = scmp.ne.s32.totalorder %s99, %s101
    %p108 = scmp.eq.s32.totalorder %s28, 1
    %p109 = por %p107, %p108
    %p110 = scmp.ne.s32.totalorder %s101, %s102
    %p111 = scmp.eq.s32.totalorder %s28, 0
    %p112 = por %p110, %p111
    %p113 = scmp.ne.s32.totalorder %s101, %s102
    %p114 = scmp.eq.s32.totalorder %s29, 1
    %p115 = por %p113, %p114
    %p117 = scmp.ne.s32.totalorder %s102, %s116
    %p118 = scmp.eq.s32.totalorder %s29, 0
    %p119 = por %p117, %p118
    %s121 = sadd.s32 %s120, 1
    %p124 = scmp.eq.s32.totalorder %s23, 1
    %p125 = scmp.ne.s32.totalorder %s120, %s122
    %p126 = scmp.eq.s32.totalorder %s23, 0
    %p127 = por %p125, %p126
    %p128 = scmp.ne.s32.totalorder %s120, %s122
    %p129 = scmp.eq.s32.totalorder %s28, 1
    %p130 = por %p128, %p129
    %p131 = scmp.ne.s32.totalorder %s122, %s123
    %p132 = scmp.eq.s32.totalorder %s28, 0
    %p133 = por %p131, %p132
    %p134 = scmp.ne.s32.totalorder %s122, %s123
    %p135 = scmp.eq.s32.totalorder %s29, 1
    %p136 = por %p134, %p135
    %p138 = scmp.ne.s32.totalorder %s123, %s137
    %p139 = scmp.eq.s32.totalorder %s29, 0
    %p140 = por %p138, %p139
    %s142 = sadd.s32 %s141, 1
    %p145 = scmp.eq.s32.totalorder %s23, 1
    %p146 = scmp.ne.s32.totalorder %s141, %s143
    %p147 = scmp.eq.s32.totalorder %s23, 0
    %p148 = por %p146, %p147
    %p149 = scmp.ne.s32.totalorder %s141, %s143
    %p150 = scmp.eq.s32.totalorder %s28, 1
    %p151 = por %p149, %p150
    %p152 = scmp.ne.s32.totalorder %s143, %s144
    %p153 = scmp.eq.s32.totalorder %s28, 0
    %p154 = por %p152, %p153
    %p155 = scmp.ne.s32.totalorder %s143, %s144
    %p156 = scmp.eq.s32.totalorder %s29, 1
    %p157 = por %p155, %p156
    %p159 = scmp.ne.s32.totalorder %s144, %s158
    %p160 = scmp.eq.s32.totalorder %s29, 0
    %p161 = por %p159, %p160
    %s163 = sadd.s32 %s162, 1
    %p166 = scmp.eq.s32.totalorder %s23, 1
    %p167 = scmp.ne.s32.totalorder %s162, %s164
    %p168 = scmp.eq.s32.totalorder %s23, 0
    %p169 = por %p167, %p168
    %p170 = scmp.ne.s32.totalorder %s162, %s164
    %p171 = scmp.eq.s32.totalorder %s28, 1
    %p172 = por %p170, %p171
    %p173 = scmp.ne.s32.totalorder %s164, %s165
    %p174 = scmp.eq.s32.totalorder %s28, 0
    %p175 = por %p173, %p174
    %p176 = scmp.ne.s32.totalorder %s164, %s165
    %p177 = scmp.eq.s32.totalorder %s29, 1
    %p178 = por %p176, %p177
    %p180 = scmp.ne.s32.totalorder %s165, %s179
    %p181 = scmp.eq.s32.totalorder %s29, 0
    %p182 = por %p180, %p181
    %s184 = sadd.s32 %s183, 1
    %p187 = scmp.eq.s32.totalorder %s23, 1
    %p188 = scmp.ne.s32.totalorder %s183, %s185
    %p189 = scmp.eq.s32.totalorder %s23, 0
    %p190 = por %p188, %p189
    %p191 = scmp.ne.s32.totalorder %s183, %s185
    %p192 = scmp.eq.s32.totalorder %s28, 1
    %p193 = por %p191, %p192
    %p194 = scmp.ne.s32.totalorder %s185, %s186
    %p195 = scmp.eq.s32.totalorder %s28, 0
    %p196 = por %p194, %p195
    %p197 = scmp.ne.s32.totalorder %s185, %s186
    %p198 = scmp.eq.s32.totalorder %s29, 1
    %p199 = por %p197, %p198
    %p201 = scmp.ne.s32.totalorder %s186, %s200
    %p202 = scmp.eq.s32.totalorder %s29, 0
    %p203 = por %p201, %p202
    %s205 = sadd.s32 %s204, 1
    %p208 = scmp.eq.s32.totalorder %s23, 1
    %p209 = scmp.ne.s32.totalorder %s204, %s206
    %p210 = scmp.eq.s32.totalorder %s23, 0
    %p211 = por %p209, %p210
    %p212 = scmp.ne.s32.totalorder %s204, %s206
    %p213 = scmp.eq.s32.totalorder %s28, 1
    %p214 = por %p212, %p213
    %p215 = scmp.ne.s32.totalorder %s206, %s207
    %p216 = scmp.eq.s32.totalorder %s28, 0
    %p217 = por %p215, %p216
    %p218 = scmp.ne.s32.totalorder %s206, %s207
    %p219 = scmp.eq.s32.totalorder %s29, 1
    %p220 = por %p218, %p219
    %p222 = scmp.ne.s32.totalorder %s207, %s221
    %p223 = scmp.eq.s32.totalorder %s29, 0
    %p224 = por %p222, %p223
    %s226 = sadd.s32 %s225, 1
    %p229 = scmp.eq.s32.totalorder %s23, 1
    %p230 = scmp.ne.s32.totalorder %s225, %s227
    %p231 = scmp.eq.s32.totalorder %s23, 0
    %p232 = por %p230, %p231
    %p233 = scmp.ne.s32.totalorder %s225, %s227
    %p234 = scmp.eq.s32.totalorder %s28, 1
    %p235 = por %p233, %p234
    %p236 = scmp.ne.s32.totalorder %s227, %s228
    %p237 = scmp.eq.s32.totalorder %s28, 0
    %p238 = por %p236, %p237
    %p239 = scmp.ne.s32.totalorder %s227, %s228
    %p240 = scmp.eq.s32.totalorder %s29, 1
    %p241 = por %p239, %p240
    %p243 = scmp.ne.s32.totalorder %s228, %s242
    %p244 = scmp.eq.s32.totalorder %s29, 0
    %p245 = por %p243, %p244
    %s247 = sadd.s32 %s246, 1
    %p250 = scmp.eq.s32.totalorder %s23, 1
    %p251 = scmp.ne.s32.totalorder %s246, %s248
    %p252 = scmp.eq.s32.totalorder %s23, 0
    %p253 = por %p251, %p252
    %p254 = scmp.ne.s32.totalorder %s246, %s248
    %p255 = scmp.eq.s32.totalorder %s28, 1
    %p256 = por %p254, %p255
    %p257 = scmp.ne.s32.totalorder %s248, %s249
    %p258 = scmp.eq.s32.totalorder %s28, 0
    %p259 = por %p257, %p258
    %p260 = scmp.ne.s32.totalorder %s248, %s249
    %p261 = scmp.eq.s32.totalorder %s29, 1
    %p262 = por %p260, %p261
    %p264 = scmp.ne.s32.totalorder %s249, %s263
    %p265 = scmp.eq.s32.totalorder %s29, 0
    %p266 = por %p264, %p265
    %s268 = sadd.s32 %s267, 1
    %p271 = scmp.eq.s32.totalorder %s23, 1
    %p272 = scmp.ne.s32.totalorder %s267, %s269
    %p273 = scmp.eq.s32.totalorder %s23, 0
    %p274 = por %p272, %p273
    %p275 = scmp.ne.s32.totalorder %s267, %s269
    %p276 = scmp.eq.s32.totalorder %s28, 1
    %p277 = por %p275, %p276
    %p278 = scmp.ne.s32.totalorder %s269, %s270
    %p279 = scmp.eq.s32.totalorder %s28, 0
    %p280 = por %p278, %p279
    %p281 = scmp.ne.s32.totalorder %s269, %s270
    %p282 = scmp.eq.s32.totalorder %s29, 1
    %p283 = por %p281, %p282
    %p285 = scmp.ne.s32.totalorder %s270, %s284
    %p286 = scmp.eq.s32.totalorder %s29, 0
    %p287 = por %p285, %p286
    %s289 = sadd.s32 %s288, 1
    %p292 = scmp.eq.s32.totalorder %s23, 1
    %p293 = scmp.ne.s32.totalorder %s288, %s290
    %p294 = scmp.eq.s32.totalorder %s23, 0
    %p295 = por %p293, %p294
    %p296 = scmp.ne.s32.totalorder %s288, %s290
    %p297 = scmp.eq.s32.totalorder %s28, 1
    %p298 = por %p296, %p297
    %p299 = scmp.ne.s32.totalorder %s290, %s291
    %p300 = scmp.eq.s32.totalorder %s28, 0
    %p301 = por %p299, %p300
    %p302 = scmp.ne.s32.totalorder %s290, %s291
    %p303 = scmp.eq.s32.totalorder %s29, 1
    %p304 = por %p302, %p303
    %p306 = scmp.ne.s32.totalorder %s291, %s305
    %p307 = scmp.eq.s32.totalorder %s29, 0
    %p308 = por %p306, %p307
    %s310 = sadd.s32 %s309, 1
    %p313 = scmp.eq.s32.totalorder %s23, 1
    %p314 = scmp.ne.s32.totalorder %s309, %s311
    %p315 = scmp.eq.s32.totalorder %s23, 0
    %p316 = por %p314, %p315
    %p317 = scmp.ne.s32.totalorder %s309, %s311
    %p318 = scmp.eq.s32.totalorder %s28, 1
    %p319 = por %p317, %p318
    %p320 = scmp.ne.s32.totalorder %s311, %s312
    %p321 = scmp.eq.s32.totalorder %s28, 0
    %p322 = por %p320, %p321
    %p323 = scmp.ne.s32.totalorder %s311, %s312
    %p324 = scmp.eq.s32.totalorder %s29, 1
    %p325 = por %p323, %p324
    %p327 = scmp.ne.s32.totalorder %s312, %s326
    %p328 = scmp.eq.s32.totalorder %s29, 0
    %p329 = por %p327, %p328
    %s331 = sadd.s32 %s330, 1
    %p334 = scmp.eq.s32.totalorder %s23, 1
    %p335 = scmp.ne.s32.totalorder %s330, %s332
    %p336 = scmp.eq.s32.totalorder %s23, 0
    %p337 = por %p335, %p336
    %p338 = scmp.ne.s32.totalorder %s330, %s332
    %p339 = scmp.eq.s32.totalorder %s28, 1
    %p340 = por %p338, %p339
    %p341 = scmp.ne.s32.totalorder %s332, %s333
    %p342 = scmp.eq.s32.totalorder %s28, 0
    %p343 = por %p341, %p342
    %p344 = scmp.ne.s32.totalorder %s332, %s333
    %p345 = scmp.eq.s32.totalorder %s29, 1
    %p346 = por %p344, %p345
    %p348 = scmp.ne.s32.totalorder %s333, %s347
    %p349 = scmp.eq.s32.totalorder %s29, 0
    %p350 = por %p348, %p349
    %s352 = sadd.s32 %s351, 1
    %p355 = scmp.eq.s32.totalorder %s23, 1
    %p356 = scmp.ne.s32.totalorder %s351, %s353
    %p357 = scmp.eq.s32.totalorder %s23, 0
    %p358 = por %p356, %p357
    %p359 = scmp.ne.s32.totalorder %s351, %s353
    %p360 = scmp.eq.s32.totalorder %s28, 1
    %p361 = por %p359, %p360
    %p362 = scmp.ne.s32.totalorder %s353, %s354
    %p363 = scmp.eq.s32.totalorder %s28, 0
    %p364 = por %p362, %p363
    %p365 = scmp.ne.s32.totalorder %s353, %s354
    %p366 = scmp.eq.s32.totalorder %s29, 1
    %p367 = por %p365, %p366
    %p369 = scmp.ne.s32.totalorder %s354, %s368
    %p370 = scmp.eq.s32.totalorder %s29, 0
    %p371 = por %p369, %p370
    %s373 = sadd.s32 %s372, 1
    %p376 = scmp.eq.s32.totalorder %s23, 1
    %p377 = scmp.ne.s32.totalorder %s372, %s374
    %p378 = scmp.eq.s32.totalorder %s23, 0
    %p379 = por %p377, %p378
    %p380 = scmp.ne.s32.totalorder %s372, %s374
    %p381 = scmp.eq.s32.totalorder %s28, 1
    %p382 = por %p380, %p381
    %p383 = scmp.ne.s32.totalorder %s374, %s375
    %p384 = scmp.eq.s32.totalorder %s28, 0
    %p385 = por %p383, %p384
    %p386 = scmp.ne.s32.totalorder %s374, %s375
    %p387 = scmp.eq.s32.totalorder %s29, 1
    %p388 = por %p386, %p387
    %p390 = scmp.ne.s32.totalorder %s375, %s389
    %p391 = scmp.eq.s32.totalorder %s29, 0
    %p392 = por %p390, %p391
    %s393 = ssub.s32 %s23, %s30
    %p394 = scmp.eq.s32.totalorder %s393, 0
    %s396 = sadd.s32 %s395, 1
    %s397 = scalar_select %p394, %s395, %s396
    %p400 = pneg %p394
    %p401 = scmp.eq.s32.totalorder %s23, 1
    %p402 = por %p400, %p401
    %p403 = scmp.ne.s32.totalorder %s395, %s398
    %p404 = scmp.eq.s32.totalorder %s23, 0
    %p405 = por %p403, %p404
    %p406 = scmp.ne.s32.totalorder %s395, %s398
    %p407 = scmp.eq.s32.totalorder %s28, 1
    %p408 = por %p406, %p407
    %p409 = scmp.ne.s32.totalorder %s398, %s399
    %p410 = scmp.eq.s32.totalorder %s28, 0
    %p411 = por %p409, %p410
    %p412 = scmp.ne.s32.totalorder %s398, %s399
    %p413 = scmp.eq.s32.totalorder %s29, 1
    %p414 = por %p412, %p413
    %p416 = scmp.ne.s32.totalorder %s399, %s415
    %p417 = scmp.eq.s32.totalorder %s29, 0
    %p418 = por %p416, %p417
    %p419 = scmp.le.s32.totalorder 1, %s23
    %p420 = scmp.lt.s32.totalorder %s23, 3
    %p421 = pnand %p419, %p420
    %p422 = pneg %p421
    // Predicated region
    $region9: #{_forward_padded.1} parent=5 // pred_check
      _
    $region10: #{_forward_padded.1} parent=5 // pred_check_branch
      %424 = sbr.rel (%p421) target = $region12
    $region11: #{_forward_padded.1} parent=5 // pred_region
      %s425 = ssub.s32 %s23, 1
      // Predicated region
      $region13: #{_forward_padded.1} parent=11 // pred_check
        %p426 = pneg %p70
      $region14: #{_forward_padded.1} parent=11 // pred_check_branch
        %428 = sbr.rel (%p426) target = $region16
      $region15: #{_forward_padded.1} parent=11 // pred_region
        _
      $region16: #{_forward_padded.1} parent=11 // pred_fallthru
        _
      // Predicated region
      $region17: #{_forward_padded.1} parent=11 // pred_check
        %p429 = pneg %p91
      $region18: #{_forward_padded.1} parent=11 // pred_check_branch
        %431 = sbr.rel (%p429) target = $region20
      $region19: #{_forward_padded.1} parent=11 // pred_region
        _
      $region20: #{_forward_padded.1} parent=11 // pred_fallthru
        _
      // Predicated region
      $region21: #{_forward_padded.1} parent=11 // pred_check
        %p432 = pneg %p112
      $region22: #{_forward_padded.1} parent=11 // pred_check_branch
        %434 = sbr.rel (%p432) target = $region24
      $region23: #{_forward_padded.1} parent=11 // pred_region
        _
      $region24: #{_forward_padded.1} parent=11 // pred_fallthru
        _
      // Predicated region
      $region25: #{_forward_padded.1} parent=11 // pred_check
        %p435 = pneg %p133
      $region26: #{_forward_padded.1} parent=11 // pred_check_branch
        %437 = sbr.rel (%p435) target = $region28
      $region27: #{_forward_padded.1} parent=11 // pred_region
        _
      $region28: #{_forward_padded.1} parent=11 // pred_fallthru
        _
      // Predicated region
      $region29: #{_forward_padded.1} parent=11 // pred_check
        %p438 = pneg %p154
      $region30: #{_forward_padded.1} parent=11 // pred_check_branch
        %440 = sbr.rel (%p438) target = $region32
      $region31: #{_forward_padded.1} parent=11 // pred_region
        _
      $region32: #{_forward_padded.1} parent=11 // pred_fallthru
        _
      // Predicated region
      $region33: #{_forward_padded.1} parent=11 // pred_check
        %p441 = pneg %p175
      $region34: #{_forward_padded.1} parent=11 // pred_check_branch
        %443 = sbr.rel (%p441) target = $region36
      $region35: #{_forward_padded.1} parent=11 // pred_region
        _
      $region36: #{_forward_padded.1} parent=11 // pred_fallthru
        _
      // Predicated region
      $region37: #{_forward_padded.1} parent=11 // pred_check
        %p444 = pneg %p196
      $region38: #{_forward_padded.1} parent=11 // pred_check_branch
        %446 = sbr.rel (%p444) target = $region40
      $region39: #{_forward_padded.1} parent=11 // pred_region
        _
      $region40: #{_forward_padded.1} parent=11 // pred_fallthru
        _
      // Predicated region
      $region41: #{_forward_padded.1} parent=11 // pred_check
        %p447 = pneg %p217
      $region42: #{_forward_padded.1} parent=11 // pred_check_branch
        %449 = sbr.rel (%p447) target = $region44
      $region43: #{_forward_padded.1} parent=11 // pred_region
        _
      $region44: #{_forward_padded.1} parent=11 // pred_fallthru
        _
      // Predicated region
      $region45: #{_forward_padded.1} parent=11 // pred_check
        %p450 = pneg %p238
      $region46: #{_forward_padded.1} parent=11 // pred_check_branch
        %452 = sbr.rel (%p450) target = $region48
      $region47: #{_forward_padded.1} parent=11 // pred_region
        _
      $region48: #{_forward_padded.1} parent=11 // pred_fallthru
        _
      // Predicated region
      $region49: #{_forward_padded.1} parent=11 // pred_check
        %p453 = pneg %p259
      $region50: #{_forward_padded.1} parent=11 // pred_check_branch
        %455 = sbr.rel (%p453) target = $region52
      $region51: #{_forward_padded.1} parent=11 // pred_region
        _
      $region52: #{_forward_padded.1} parent=11 // pred_fallthru
        _
      // Predicated region
      $region53: #{_forward_padded.1} parent=11 // pred_check
        %p456 = pneg %p280
      $region54: #{_forward_padded.1} parent=11 // pred_check_branch
        %458 = sbr.rel (%p456) target = $region56
      $region55: #{_forward_padded.1} parent=11 // pred_region
        _
      $region56: #{_forward_padded.1} parent=11 // pred_fallthru
        _
      // Predicated region
      $region57: #{_forward_padded.1} parent=11 // pred_check
        %p459 = pneg %p301
      $region58: #{_forward_padded.1} parent=11 // pred_check_branch
        %461 = sbr.rel (%p459) target = $region60
      $region59: #{_forward_padded.1} parent=11 // pred_region
        _
      $region60: #{_forward_padded.1} parent=11 // pred_fallthru
        _
      // Predicated region
      $region61: #{_forward_padded.1} parent=11 // pred_check
        %p462 = pneg %p322
      $region62: #{_forward_padded.1} parent=11 // pred_check_branch
        %464 = sbr.rel (%p462) target = $region64
      $region63: #{_forward_padded.1} parent=11 // pred_region
        _
      $region64: #{_forward_padded.1} parent=11 // pred_fallthru
        _
      // Predicated region
      $region65: #{_forward_padded.1} parent=11 // pred_check
        %p465 = pneg %p343
      $region66: #{_forward_padded.1} parent=11 // pred_check_branch
        %467 = sbr.rel (%p465) target = $region68
      $region67: #{_forward_padded.1} parent=11 // pred_region
        _
      $region68: #{_forward_padded.1} parent=11 // pred_fallthru
        _
      // Predicated region
      $region69: #{_forward_padded.1} parent=11 // pred_check
        %p468 = pneg %p364
      $region70: #{_forward_padded.1} parent=11 // pred_check_branch
        %470 = sbr.rel (%p468) target = $region72
      $region71: #{_forward_padded.1} parent=11 // pred_region
        _
      $region72: #{_forward_padded.1} parent=11 // pred_fallthru
        _
      // Predicated region
      $region73: #{_forward_padded.1} parent=11 // pred_check
        %p471 = pneg %p385
      $region74: #{_forward_padded.1} parent=11 // pred_check_branch
        %473 = sbr.rel (%p471) target = $region76
      $region75: #{_forward_padded.1} parent=11 // pred_region
        _
      $region76: #{_forward_padded.1} parent=11 // pred_fallthru
        _
    $region12: #{_forward_padded.1} parent=5 // pred_fallthru
      _
    %p474 = scmp.lt.s32.totalorder %s23, 2
    // Predicated region
    $region77: #{_forward_padded.1} parent=5 // pred_check
      %p475 = pneg %p474
    $region78: #{_forward_padded.1} parent=5 // pred_check_branch
      %477 = sbr.rel (%p475) target = $region80
    $region79: #{_forward_padded.1} parent=5 // pred_region
      // Predicated region
      $region81: #{_forward_padded.1} parent=79 // pred_check
        %p478 = pneg %p43
      $region82: #{_forward_padded.1} parent=79 // pred_check_branch
        %480 = sbr.rel (%p478) target = $region84
      $region83: #{_forward_padded.1} parent=79 // pred_region
        %p481 = scmp.lt.s32.totalorder %s23, 1
        %s482 = scalar_select %p481, %s23, 1
        %s483 = smul.addr %s482, 8
        %s484 = smul.addr %s483, 4
        %s485 = scalar_lea.vmem %s0, %s484
      $region84: #{_forward_padded.1} parent=79 // pred_fallthru
        _
    $region80: #{_forward_padded.1} parent=5 // pred_fallthru
      _
    %p486 = scmp.le.s32.totalorder 1, %s23
    %p487 = scmp.lt.s32.totalorder %s23, 3
    %p488 = pnand %p486, %p487
    %p489 = pneg %p488
    // Predicated region
    $region85: #{_forward_padded.1} parent=5 // pred_check
      _
    $region86: #{_forward_padded.1} parent=5 // pred_check_branch
      %491 = sbr.rel (%p488) target = $region88
    $region87: #{_forward_padded.1} parent=5 // pred_region
      %s492 = ssub.s32 %s23, 1
      %p493 = scmp.lt.s32.totalorder %s28, 1
      %s494 = scalar_select %p493, %s28, 1
      %s495 = smul.addr %s494, 8
      %s496 = smul.addr %s495, 4
      %s497 = scalar_lea.vmem %s0, %s496
      %p498 = pneg %p49
      %p499 = pneg %p46
      %p500 = pneg %p70
      %p501 = pneg %p67
      %p502 = pneg %p91
      %p503 = pneg %p88
      %p504 = pneg %p112
      %p505 = pneg %p109
      %p506 = pneg %p133
      %p507 = pneg %p130
      %p508 = pneg %p154
      %p509 = pneg %p151
      %p510 = pneg %p175
      %p511 = pneg %p172
      %p512 = pneg %p196
      %p513 = pneg %p193
      %p514 = pneg %p217
      %p515 = pneg %p214
      %p516 = pneg %p238
      %p517 = pneg %p235
      %p518 = pneg %p259
      %p519 = pneg %p256
      %p520 = pneg %p280
      %p521 = pneg %p277
      %p522 = pneg %p301
      %p523 = pneg %p298
      %p524 = pneg %p322
      %p525 = pneg %p319
      %p526 = pneg %p343
      %p527 = pneg %p340
      %p528 = pneg %p364
      %p529 = pneg %p361
      %p530 = pneg %p385
      %p531 = pneg %p382
      %p532 = pneg %p411
      %p533 = pneg %p408
      %p534 = scmp.lt.s32.totalorder %s28, 1
      %s535 = scalar_select %p534, %s28, 1
      %s536 = smul.addr %s535, 4
      %s537 = smul.addr %s536, 8
      %s538 = scalar_lea.vmem %s17, %s537
      %p539 = scmp.lt.s32.totalorder %s28, 1
      %s540 = scalar_select %p539, %s28, 1
      %s541 = smul.addr %s540, 8
      %s542 = smul.addr %s541, 4
      %s543 = scalar_lea.vmem %s0, %s542
      %p544 = scmp.lt.s32.totalorder %s28, 1
      %s545 = scalar_select %p544, %s28, 1
      %s546 = smul.addr %s545, 4
      %s547 = smul.addr %s546, 8
      %s548 = scalar_lea.vmem %s17, %s547
      %v550 = vlaneseq
      %v551 = vand.u32 %v550, 127
      %vm552 = vcmp.lt.s32.totalorder %v551, 17
      %v553 = vsel %vm552, 0.0, -1e+30
      %v554 = vld [vmem:[%s543] sm:$0xff]
      %v555 = vld [vmem:[%s543 + $0x8] sm:$0xff]
      %v556 = vld [vmem:[%s543 + $0x10] sm:$0xff]
      %v557 = vld [vmem:[%s543 + $0x18] sm:$0xff]
      %v558 = vld [vmem:[%s1] sm:$0xf]
      %v559 = vld [vmem:[%s1 + $0x4] sm:$0xf]
      %v560 = vld [vmem:[%s1 + $0x8] sm:$0xf]
      %v561 = vld [vmem:[%s1 + $0xc] sm:$0xf]
      %v562 = vld [vmem:[%s1 + $0x10] sm:$0xf]
      %v563 = vld [vmem:[%s1 + $0x14] sm:$0xf]
      %v564 = vld [vmem:[%s1 + $0x18] sm:$0xf]
      %v565 = vld [vmem:[%s1 + $0x1c] sm:$0xf]
      %v566 = vld [vmem:[%s1 + $0x20] sm:$0xf]
      %v567 = vld [vmem:[%s1 + $0x24] sm:$0xf]
      %v568 = vld [vmem:[%s1 + $0x28] sm:$0xf]
      %v569 = vld [vmem:[%s1 + $0x2c] sm:$0xf]
      %v570 = vld [vmem:[%s1 + $0x30] sm:$0xf]
      %v571 = vld [vmem:[%s1 + $0x34] sm:$0xf]
      %v572 = vld [vmem:[%s1 + $0x38] sm:$0xf]
      %v573 = vld [vmem:[%s1 + $0x3c] sm:$0xf]
      %v574 = vld [vmem:[%s1 + $0x40] sm:$0xf]
      %v575 = vld [vmem:[%s1 + $0x44] sm:$0xf]
      %v576 = vld [vmem:[%s1 + $0x48] sm:$0xf]
      %v577 = vld [vmem:[%s1 + $0x4c] sm:$0xf]
      %v578 = vld [vmem:[%s1 + $0x50] sm:$0xf]
      %v579 = vld [vmem:[%s1 + $0x54] sm:$0xf]
      %v580 = vld [vmem:[%s1 + $0x58] sm:$0xf]
      %v581 = vld [vmem:[%s1 + $0x5c] sm:$0xf]
      %v582 = vld [vmem:[%s2] sm:$0xff]
      %v583 = vld [vmem:[%s2 + $0x8] sm:$0xff]
      %v584 = vld [vmem:[%s2 + $0x10] sm:$0xff]
      %v585 = vld [vmem:[%s2 + $0x18] sm:$0xff]
      %v590 = vunpack.c.l.b16 %v554
      %v591 = vunpack.c.h.b16 %v554
      %v592 = vunpack.c.l.b16 %v555
      %v593 = vunpack.c.h.b16 %v555
      %v594 = vunpack.c.l.b16 %v556
      %v595 = vunpack.c.h.b16 %v556
      %v596 = vunpack.c.l.b16 %v557
      %v597 = vunpack.c.h.b16 %v557
      %v598 = vpack.c.b16 %v592, %v590
      %v599 = vpack.c.b16 %v593, %v591
      %v600 = vpack.c.b16 %v596, %v594
      %v601 = vpack.c.b16 %v597, %v595
      %v628 = vunpack.c.l.b16 %v558
      %v629 = vunpack.c.l.b16 %v559
      %v630 = vunpack.c.l.b16 %v560
      %v631 = vunpack.c.l.b16 %v561
      %v632 = vunpack.c.l.b16 %v562
      %v633 = vunpack.c.l.b16 %v563
      %v634 = vunpack.c.l.b16 %v564
      %v635 = vunpack.c.l.b16 %v565
      %v636 = vunpack.c.l.b16 %v566
      %v637 = vunpack.c.l.b16 %v567
      %v638 = vunpack.c.l.b16 %v568
      %v639 = vunpack.c.l.b16 %v569
      %v640 = vunpack.c.l.b16 %v570
      %v641 = vunpack.c.l.b16 %v571
      %v642 = vunpack.c.l.b16 %v572
      %v643 = vunpack.c.l.b16 %v573
      %v644 = vunpack.c.l.b16 %v574
      %v645 = vunpack.c.l.b16 %v575
      %v646 = vunpack.c.l.b16 %v576
      %v647 = vunpack.c.l.b16 %v577
      %v648 = vunpack.c.l.b16 %v578
      %v649 = vunpack.c.l.b16 %v579
      %v650 = vunpack.c.l.b16 %v580
      %v651 = vunpack.c.l.b16 %v581
      %v652 = vpack.c.b16 %v629, %v628
      %v653 = vpack.c.b16 %v631, %v630
      %v654 = vpack.c.b16 %v633, %v632
      %v655 = vpack.c.b16 %v635, %v634
      %v656 = vpack.c.b16 %v637, %v636
      %v657 = vpack.c.b16 %v639, %v638
      %v658 = vpack.c.b16 %v641, %v640
      %v659 = vpack.c.b16 %v643, %v642
      %v660 = vpack.c.b16 %v645, %v644
      %v661 = vpack.c.b16 %v647, %v646
      %v662 = vpack.c.b16 %v649, %v648
      %v663 = vpack.c.b16 %v651, %v650
      %vm676 = vcmask 523264
      %v678 = vsel %vm676, %v599, 0
      %v681 = vsel %vm676, %v601, 0
      %683 = vmatprep.subr.bf16.mxu0 0
      %684 = vmatpush1.bf16.msra.mxu0 %v652
      %685 = vmatprep.subr.bf16.mxu0 0
      %686 = vmatpush1.bf16.msra.mxu0 %v653
      %687 = vmatprep.subr.bf16.mxu0 0
      %688 = vmatpush1.bf16.msra.mxu0 %v654
      %689 = vmatprep.subr.bf16.mxu0 0
      %690 = vmatpush1.bf16.msra.mxu0 %v655
      %691 = vmatprep.subr.bf16.mxu0 0
      %692 = vmatpush1.bf16.msra.mxu0 %v656
      %693 = vmatprep.subr.bf16.mxu0 0
      %694 = vmatpush1.bf16.msra.mxu0 %v657
      %695 = vmatprep.subr.bf16.mxu0 0
      %696 = vmatpush1.bf16.msra.mxu0 %v658
      %697 = vmatprep.subr.bf16.mxu0 0
      %698 = vmatpush1.bf16.msra.mxu0 %v659
      %699 = vmatprep.subr.bf16.mxu0 0
      %700 = vmatpush1.bf16.msra.mxu0 %v660
      %701 = vmatprep.subr.bf16.mxu0 0
      %702 = vmatpush1.bf16.msra.mxu0 %v661
      %703 = vmatprep.subr.bf16.mxu0 0
      %704 = vmatpush1.bf16.msra.mxu0 %v662
      %705 = vmatprep.subr.bf16.mxu0 0
      %706 = vmatpush1.bf16.msra.mxu0 %v663
      %707 = vmatprep.subr.bf16.mxu0 0
      %708 = vmatpush1.bf16.msra.mxu0 0
      %709 = vmatprep.subr.bf16.mxu0 0
      %710 = vmatpush1.bf16.msra.mxu0 0
      %711 = vmatprep.subr.bf16.mxu0 0
      %712 = vmatpush1.bf16.msra.mxu0 0
      %713 = vmatprep.subr.bf16.mxu0 0
      %714 = vmatpush1.bf16.msra.mxu0 0
      %715 = vmatprep.mubr.bf16.mxu0 %v678
      %716 = vmatmul.mubr.bf16.gmra.mrb[0].mxu0 %v598
      %v717 = vpop.f32.mrb[0].mxu0
      %v718 = vadd.f32 %v582, %v717
      %v719 = vpop.f32.mrb[0].mxu0
      %v720 = vpop.f32.mrb[0].mxu0
      %v721 = vadd.f32 %v583, %v720
      %v722 = vpop.f32.mrb[0].mxu0
      %723 = vmatprep.mubr.bf16.mxu0 %v681
      %724 = vmatmul.mubr.bf16.gmra.mrb[0].mxu0 %v600
      %v725 = vpop.f32.mrb[0].mxu0
      %v726 = vadd.f32 %v584, %v725
      %v727 = vpop.f32.mrb[0].mxu0
      %v728 = vpop.f32.mrb[0].mxu0
      %v729 = vadd.f32 %v585, %v728
      %v730 = vpop.f32.mrb[0].mxu0
      %731 = vdwg.mxu0
      %v732 = vld [vmem:[%s3] sm:$0x1]
      %v733 = vld [vmem:[%s4] sm:$0x1]
      %734 = vadd.xlane.f32.xlu0 %v718
      %v735 = vpop.xlane.xlu0 %734
      %736 = vadd.xlane.f32.xlu0 %v721
      %v737 = vpop.xlane.xlu0 %736
      %738 = vadd.xlane.f32.xlu0 %v726
      %v739 = vpop.xlane.xlu0 %738
      %740 = vadd.xlane.f32.xlu0 %v729
      %v741 = vpop.xlane.xlu0 %740
      %v742 = vrcp.pop 128.0
      %v743 = vmul.f32 %v735, %v742
      %v744 = vmul.f32 %v737, %v742
      %v745 = vmul.f32 %v739, %v742
      %v746 = vmul.f32 %v741, %v742
      %v747 = vsub.f32 %v718, %v743
      %v748 = vsub.f32 %v721, %v744
      %v749 = vsub.f32 %v726, %v745
      %v750 = vsub.f32 %v729, %v746
      %v751 = vmul.f32 %v747, %v747
      %v752 = vmul.f32 %v748, %v748
      %v753 = vmul.f32 %v749, %v749
      %v754 = vmul.f32 %v750, %v750
      %755 = vadd.xlane.f32.xlu0 %v751
      %v756 = vpop.xlane.xlu0 %755
      %757 = vadd.xlane.f32.xlu0 %v752
      %v758 = vpop.xlane.xlu0 %757
      %759 = vadd.xlane.f32.xlu0 %v753
      %v760 = vpop.xlane.xlu0 %759
      %761 = vadd.xlane.f32.xlu0 %v754
      %v762 = vpop.xlane.xlu0 %761
      %v763 = vmul.f32 %v756, %v742
      %v764 = vmul.f32 %v758, %v742
      %v765 = vmul.f32 %v760, %v742
      %v766 = vmul.f32 %v762, %v742
      %v767 = vadd.f32 %v763, 1e-12
      %v768 = vadd.f32 %v764, 1e-12
      %v769 = vadd.f32 %v765, 1e-12
      %v770 = vadd.f32 %v766, 1e-12
      %v771 = vrsqrt.pop %v767
      %v772 = vrsqrt.pop %v768
      %v773 = vrsqrt.pop %v769
      %v774 = vrsqrt.pop %v770
      %v775 = vmul.f32 %v747, %v771
      %v776 = vmul.f32 %v748, %v772
      %v777 = vmul.f32 %v749, %v773
      %v778 = vmul.f32 %v750, %v774
      %v780 = vlaneseq
      %v781 = vshrl.u32 %v780, 7
      %v782 = vsub.s32 0, %v781
      %v783 = vrot.slane %v732, %v782
      %v785 = vmul.f32 %v775, %v783
      %v786 = vmul.f32 %v776, %v783
      %v787 = vmul.f32 %v777, %v783
      %v788 = vmul.f32 %v778, %v783
      %v790 = vlaneseq
      %v791 = vshrl.u32 %v790, 7
      %v792 = vsub.s32 0, %v791
      %v793 = vrot.slane %v733, %v792
      %v795 = vadd.f32 %v785, %v793
      %v796 = vadd.f32 %v786, %v793
      %v797 = vadd.f32 %v787, %v793
      %v798 = vadd.f32 %v788, %v793
      %v799 = vpack.c.bf16 %v796, %v795
      %v800 = vpack.c.bf16 %v798, %v797
      %v801 = vld [vmem:[%s5] sm:$0xff]
      %v802 = vld [vmem:[%s5 + $0x8] sm:$0xf]
      %v803 = vld [vmem:[%s5 + $0xc] sm:$0xff]
      %v804 = vld [vmem:[%s5 + $0x14] sm:$0xf]
      %v805 = vld [vmem:[%s5 + $0x18] sm:$0xff]
      %v806 = vld [vmem:[%s5 + $0x20] sm:$0xf]
      %v807 = vld [vmem:[%s5 + $0x24] sm:$0xff]
      %v808 = vld [vmem:[%s5 + $0x2c] sm:$0xf]
      %v809 = vld [vmem:[%s5 + $0x30] sm:$0xff]
      %v810 = vld [vmem:[%s5 + $0x38] sm:$0xf]
      %v811 = vld [vmem:[%s5 + $0x3c] sm:$0xff]
      %v812 = vld [vmem:[%s5 + $0x44] sm:$0xf]
      %v813 = vld [vmem:[%s5 + $0x48] sm:$0xff]
      %v814 = vld [vmem:[%s5 + $0x50] sm:$0xf]
      %v815 = vld [vmem:[%s5 + $0x54] sm:$0xff]
      %v816 = vld [vmem:[%s5 + $0x5c] sm:$0xf]
      %v817 = vld [vmem:[%s5 + $0x60] sm:$0xff]
      %v818 = vld [vmem:[%s5 + $0x68] sm:$0xf]
      %v819 = vld [vmem:[%s5 + $0x6c] sm:$0xff]
      %v820 = vld [vmem:[%s5 + $0x74] sm:$0xf]
      %v821 = vld [vmem:[%s5 + $0x78] sm:$0xff]
      %v822 = vld [vmem:[%s5 + $0x80] sm:$0xf]
      %v823 = vld [vmem:[%s5 + $0x84] sm:$0xff]
      %v824 = vld [vmem:[%s5 + $0x8c] sm:$0xf]
      %v825 = vld [vmem:[%s5 + $0x90] sm:$0xff]
      %v826 = vld [vmem:[%s5 + $0x98] sm:$0xf]
      %v827 = vld [vmem:[%s5 + $0x9c] sm:$0xff]
      %v828 = vld [vmem:[%s5 + $0xa4] sm:$0xf]
      %v829 = vld [vmem:[%s5 + $0xa8] sm:$0xff]
      %v830 = vld [vmem:[%s5 + $0xb0] sm:$0xf]
      %v831 = vld [vmem:[%s5 + $0xb4] sm:$0xff]
      %v832 = vld [vmem:[%s5 + $0xbc] sm:$0xf]
      %v833 = vld [vmem:[%s6] sm:$0x7]
      %v835 = vlaneseq
      %v836 = vshrl.u32 %v835, 7
      %v837 = vsub.s32 0, %v836
      %v838 = vrot.slane %v833, %v837
      %v839 = vlaneseq
      %v840 = vshrl.u32 %v839, 7
      %v841 = vsub.s32 1, %v840
      %v842 = vrot.slane %v833, %v841
      %v843 = vlaneseq
      %v844 = vshrl.u32 %v843, 7
      %v845 = vsub.s32 2, %v844
      %v846 = vrot.slane %v833, %v845
      %v882 = vunpack.c.l.b16 %v801
      %v883 = vunpack.c.h.b16 %v801
      %v884 = vunpack.c.l.b16 %v802
      %v885 = vunpack.c.l.b16 %v803
      %v886 = vunpack.c.h.b16 %v803
      %v887 = vunpack.c.l.b16 %v804
      %v888 = vunpack.c.l.b16 %v805
      %v889 = vunpack.c.h.b16 %v805
      %v890 = vunpack.c.l.b16 %v806
      %v891 = vunpack.c.l.b16 %v807
      %v892 = vunpack.c.h.b16 %v807
      %v893 = vunpack.c.l.b16 %v808
      %v894 = vunpack.c.l.b16 %v809
      %v895 = vunpack.c.h.b16 %v809
      %v896 = vunpack.c.l.b16 %v810
      %v897 = vunpack.c.l.b16 %v811
      %v898 = vunpack.c.h.b16 %v811
      %v899 = vunpack.c.l.b16 %v812
      %v900 = vunpack.c.l.b16 %v813
      %v901 = vunpack.c.h.b16 %v813
      %v902 = vunpack.c.l.b16 %v814
      %v903 = vunpack.c.l.b16 %v815
      %v904 = vunpack.c.h.b16 %v815
      %v905 = vunpack.c.l.b16 %v816
      %v906 = vunpack.c.l.b16 %v817
      %v907 = vunpack.c.h.b16 %v817
      %v908 = vunpack.c.l.b16 %v818
      %v909 = vunpack.c.l.b16 %v819
      %v910 = vunpack.c.h.b16 %v819
      %v911 = vunpack.c.l.b16 %v820
      %v912 = vunpack.c.l.b16 %v821
      %v913 = vunpack.c.h.b16 %v821
      %v914 = vunpack.c.l.b16 %v822
      %v915 = vunpack.c.l.b16 %v823
      %v916 = vunpack.c.h.b16 %v823
      %v917 = vunpack.c.l.b16 %v824
      %v918 = vunpack.c.l.b16 %v825
      %v919 = vunpack.c.h.b16 %v825
      %v920 = vunpack.c.l.b16 %v826
      %v921 = vunpack.c.l.b16 %v827
      %v922 = vunpack.c.h.b16 %v827
      %v923 = vunpack.c.l.b16 %v828
      %v924 = vunpack.c.l.b16 %v829
      %v925 = vunpack.c.h.b16 %v829
      %v926 = vunpack.c.l.b16 %v830
      %v927 = vunpack.c.l.b16 %v831
      %v928 = vunpack.c.h.b16 %v831
      %v929 = vunpack.c.l.b16 %v832
      %v930 = vpack.c.b16 %v885, %v882
      %v931 = vpack.c.b16 %v886, %v883
      %v932 = vpack.c.b16 %v887, %v884
      %v933 = vpack.c.b16 %v891, %v888
      %v934 = vpack.c.b16 %v892, %v889
      %v935 = vpack.c.b16 %v893, %v890
      %v936 = vpack.c.b16 %v897, %v894
      %v937 = vpack.c.b16 %v898, %v895
      %v938 = vpack.c.b16 %v899, %v896
      %v939 = vpack.c.b16 %v903, %v900
      %v940 = vpack.c.b16 %v904, %v901
      %v941 = vpack.c.b16 %v905, %v902
      %v942 = vpack.c.b16 %v909, %v906
      %v943 = vpack.c.b16 %v910, %v907
      %v944 = vpack.c.b16 %v911, %v908
      %v945 = vpack.c.b16 %v915, %v912
      %v946 = vpack.c.b16 %v916, %v913
      %v947 = vpack.c.b16 %v917, %v914
      %v948 = vpack.c.b16 %v921, %v918
      %v949 = vpack.c.b16 %v922, %v919
      %v950 = vpack.c.b16 %v923, %v920
      %v951 = vpack.c.b16 %v927, %v924
      %v952 = vpack.c.b16 %v928, %v925
      %v953 = vpack.c.b16 %v929, %v926
      %978 = vmatprep.subr.bf16.mxu0 %v931
      %979 = vmatpush1.bf16.msra.mxu0 %v930
      %980 = vmatprep.subr.bf16.mxu0 %v934
      %981 = vmatpush1.bf16.msra.mxu0 %v933
      %982 = vmatprep.subr.bf16.mxu0 %v937
      %983 = vmatpush1.bf16.msra.mxu0 %v936
      %984 = vmatprep.subr.bf16.mxu0 %v940
      %985 = vmatpush1.bf16.msra.mxu0 %v939
      %986 = vmatprep.subr.bf16.mxu0 %v943
      %987 = vmatpush1.bf16.msra.mxu0 %v942
      %988 = vmatprep.subr.bf16.mxu0 %v946
      %989 = vmatpush1.bf16.msra.mxu0 %v945
      %990 = vmatprep.subr.bf16.mxu0 %v949
      %991 = vmatpush1.bf16.msra.mxu0 %v948
      %992 = vmatprep.subr.bf16.mxu0 %v952
      %993 = vmatpush1.bf16.msra.mxu0 %v951
      %994 = vmatprep.subr.bf16.mxu0 0
      %995 = vmatpush1.bf16.msra.mxu0 0
      %996 = vmatprep.subr.bf16.mxu0 0
      %997 = vmatpush1.bf16.msra.mxu0 0
      %998 = vmatprep.subr.bf16.mxu0 0
      %999 = vmatpush1.bf16.msra.mxu0 0
      %1000 = vmatprep.subr.bf16.mxu0 0
      %1001 = vmatpush1.bf16.msra.mxu0 0
      %1002 = vmatprep.subr.bf16.mxu0 0
      %1003 = vmatpush1.bf16.msra.mxu0 0
      %1004 = vmatprep.subr.bf16.mxu0 0
      %1005 = vmatpush1.bf16.msra.mxu0 0
      %1006 = vmatprep.subr.bf16.mxu0 0
      %1007 = vmatpush1.bf16.msra.mxu0 0
      %1008 = vmatprep.subr.bf16.mxu0 0
      %1009 = vmatpush1.bf16.msra.mxu0 0
      %1010 = vmatprep.mubr.bf16.mxu0 0
      %1011 = vmatmul.mubr.bf16.gmra.mrb[0].mxu0 %v799
      %v1012 = vpop.f32.mrb[0].mxu0
      %v1013 = vadd.f32 %v838, %v1012
      %v1014 = vpop.f32.mrb[0].mxu0
      %v1015 = vadd.f32 %v842, %v1014
      %v1016 = vpop.f32.mrb[0].mxu0
      %v1017 = vadd.f32 %v838, %v1016
      %v1018 = vpop.f32.mrb[0].mxu0
      %v1019 = vadd.f32 %v842, %v1018
      %1020 = vmatprep.mubr.bf16.mxu0 0
      %1021 = vmatmul.mubr.bf16.gmra.mrb[0].mxu0 %v800
      %v1022 = vpop.f32.mrb[0].mxu0
      %v1023 = vadd.f32 %v838, %v1022
      %v1024 = vpop.f32.mrb[0].mxu0
      %v1025 = vadd.f32 %v842, %v1024
      %v1026 = vpop.f32.mrb[0].mxu0
      %v1027 = vadd.f32 %v838, %v1026
      %v1028 = vpop.f32.mrb[0].mxu0
      %v1029 = vadd.f32 %v842, %v1028
      %1030 = vdwg.mxu0
      %1031 = vmatprep.subr.bf16.mxu0 0
      %1032 = vmatpush1.bf16.msra.mxu0 %v932
      %1033 = vmatprep.subr.bf16.mxu0 0
      %1034 = vmatpush1.bf16.msra.mxu0 %v935
      %1035 = vmatprep.subr.bf16.mxu0 0
      %1036 = vmatpush1.bf16.msra.mxu0 %v938
      %1037 = vmatprep.subr.bf16.mxu0 0
      %1038 = vmatpush1.bf16.msra.mxu0 %v941
      %1039 = vmatprep.subr.bf16.mxu0 0
      %1040 = vmatpush1.bf16.msra.mxu0 %v944
      %1041 = vmatprep.subr.bf16.mxu0 0
      %1042 = vmatpush1.bf16.msra.mxu0 %v947
      %1043 = vmatprep.subr.bf16.mxu0 0
      %1044 = vmatpush1.bf16.msra.mxu0 %v950
      %1045 = vmatprep.subr.bf16.mxu0 0
      %1046 = vmatpush1.bf16.msra.mxu0 %v953
      %1047 = vmatprep.subr.bf16.mxu0 0
      %1048 = vmatpush1.bf16.msra.mxu0 0
      %1049 = vmatprep.subr.bf16.mxu0 0
      %1050 = vmatpush1.bf16.msra.mxu0 0
      %1051 = vmatprep.subr.bf16.mxu0 0
      %1052 = vmatpush1.bf16.msra.mxu0 0
      %1053 = vmatprep.subr.bf16.mxu0 0
      %1054 = vmatpush1.bf16.msra.mxu0 0
      %1055 = vmatprep.subr.bf16.mxu0 0
      %1056 = vmatpush1.bf16.msra.mxu0 0
      %1057 = vmatprep.subr.bf16.mxu0 0
      %1058 = vmatpush1.bf16.msra.mxu0 0
      %1059 = vmatprep.subr.bf16.mxu0 0
      %1060 = vmatpush1.bf16.msra.mxu0 0
      %1061 = vmatprep.subr.bf16.mxu0 0
      %1062 = vmatpush1.bf16.msra.mxu0 0
      %1063 = vmatprep.mubr.bf16.mxu0 0
      %1064 = vmatmul.mubr.bf16.gmra.mrb[0].mxu0 %v799
      %v1065 = vpop.f32.mrb[0].mxu0
      %v1066 = vadd.f32 %v846, %v1065
      %v1067 = vpop.f32.mrb[0].mxu0
      %v1068 = vpop.f32.mrb[0].mxu0
      %v1069 = vadd.f32 %v846, %v1068
      %v1070 = vpop.f32.mrb[0].mxu0
      %1071 = vmatprep.mubr.bf16.mxu0 0
      %1072 = vmatmul.mubr.bf16.gmra.mrb[0].mxu0 %v800
      %v1073 = vpop.f32.mrb[0].mxu0
      %v1074 = vadd.f32 %v846, %v1073
      %v1075 = vpop.f32.mrb[0].mxu0
      %v1076 = vpop.f32.mrb[0].mxu0
      %v1077 = vadd.f32 %v846, %v1076
      %v1078 = vpop.f32.mrb[0].mxu0
      %1079 = vdwg.mxu0
      %v1080 = vpack.c.bf16 %v1017, %v1013
      %v1081 = vpack.c.bf16 %v1019, %v1015
      %v1082 = vpack.c.bf16 %v1069, %v1066
      %v1083 = vpack.c.bf16 %v1027, %v1023
      %v1084 = vpack.c.bf16 %v1029, %v1025
      %v1085 = vpack.c.bf16 %v1077, %v1074
      %vm1086 = vcmask 261120
      %v1088 = vsel %vm1086, %v1080, 0
      %v1091 = vsel %vm1086, %v1083, 0
      %v1094 = vsel %vm1086, %v1081, 0
      %v1097 = vsel %vm1086, %v1084, 0
      %1099 = vmatprep.subr.bf16.mxu0 0
      %1100 = vmatpush1.bf16.xpose.msra.mxu0 %v1094
      %1101 = vmatprep.subr.bf16.mxu0 0
      %1102 = vmatpush1.bf16.xpose.msra.mxu0 %v1097
      %1103 = vmatprep.subr.bf16.mxu0 0
      %1104 = vmatpush1.bf16.xpose.msra.mxu0 0
      %1105 = vmatprep.subr.bf16.mxu0 0
      %1106 = vmatpush1.bf16.xpose.msra.mxu0 0
      %1107 = vmatprep.subr.bf16.mxu0 0
      %1108 = vmatpush1.bf16.xpose.msra.mxu0 0
      %1109 = vmatprep.subr.bf16.mxu0 0
      %1110 = vmatpush1.bf16.xpose.msra.mxu0 0
      %1111 = vmatprep.subr.bf16.mxu0 0
      %1112 = vmatpush1.bf16.xpose.msra.mxu0 0
      %1113 = vmatprep.subr.bf16.mxu0 0
      %1114 = vmatpush1.bf16.xpose.msra.mxu0 0
      %1115 = vmatprep.subr.bf16.mxu0 0
      %1116 = vmatpush1.bf16.xpose.msra.mxu0 0
      %1117 = vmatprep.subr.bf16.mxu0 0
      %1118 = vmatpush1.bf16.xpose.msra.mxu0 0
      %1119 = vmatprep.subr.bf16.mxu0 0
      %1120 = vmatpush1.bf16.xpose.msra.mxu0 0
      %1121 = vmatprep.subr.bf16.mxu0 0
      %1122 = vmatpush1.bf16.xpose.msra.mxu0 0
      %1123 = vmatprep.subr.bf16.mxu0 0
      %1124 = vmatpush1.bf16.xpose.msra.mxu0 0
      %1125 = vmatprep.subr.bf16.mxu0 0
      %1126 = vmatpush1.bf16.xpose.msra.mxu0 0
      %1127 = vmatprep.subr.bf16.mxu0 0
      %1128 = vmatpush1.bf16.xpose.msra.mxu0 0
      %1129 = vmatprep.subr.bf16.mxu0 0
      %1130 = vmatpush1.bf16.xpose.msra.mxu0 0
      %1131 = vmatprep.mubr.bf16.mxu0 0
      %1132 = vmatmul.mubr.bf16.gmra.mrb[0].mxu0 %v1088
      %v1133 = vpop.f32.mrb[0].mxu0
      %v1134 = vadd.f32 %v553, %v1133
      %v1135 = vpop.f32.mrb[0].mxu0
      %v1136 = vpop.f32.mrb[0].mxu0
      %v1137 = vadd.f32 %v553, %v1136
      %v1138 = vpop.f32.mrb[0].mxu0
      %1139 = vmatprep.mubr.bf16.mxu0 0
      %1140 = vmatmul.mubr.bf16.gmra.mrb[0].mxu0 %v1091
      %v1141 = vpop.f32.mrb[0].mxu0
      %v1142 = vadd.f32 %v553, %v1141
      %v1143 = vpop.f32.mrb[0].mxu0
      %v1144 = vpop.f32.mrb[0].mxu0
      %v1145 = vadd.f32 %v553, %v1144
      %v1146 = vpop.f32.mrb[0].mxu0
      %1147 = vdwg.mxu0
      %v1148 = vsel %vm1086, %v1134, -inf
      %1149 = vmax.xlane.f32.xlu0 %v1148
      %v1150 = vpop.xlane.xlu0 %1149
      %v1151 = vsel %vm1086, %v1137, -inf
      %1152 = vmax.xlane.f32.xlu0 %v1151
      %v1153 = vpop.xlane.xlu0 %1152
      %v1154 = vsel %vm1086, %v1142, -inf
      %1155 = vmax.xlane.f32.xlu0 %v1154
      %v1156 = vpop.xlane.xlu0 %1155
      %v1157 = vsel %vm1086, %v1145, -inf
      %1158 = vmax.xlane.f32.xlu0 %v1157
      %v1159 = vpop.xlane.xlu0 %1158
      %v1160 = vsub.f32 %v1134, %v1150
      %v1161 = vsub.f32 %v1137, %v1153
      %v1162 = vsub.f32 %v1142, %v1156
      %v1163 = vsub.f32 %v1145, %v1159
      %v1164 = vmul.f32 %v1160, 1.442695
      %v1165 = vpow.pop %v1164
      %v1166 = vmul.f32 %v1161, 1.442695
      %v1167 = vpow.pop %v1166
      %v1168 = vmul.f32 %v1162, 1.442695
      %v1169 = vpow.pop %v1168
      %v1170 = vmul.f32 %v1163, 1.442695
      %v1171 = vpow.pop %v1170
      %v1172 = vsel %vm1086, %v1165, 0.0
      %1173 = vadd.xlane.f32.xlu0 %v1172
      %v1174 = vpop.xlane.xlu0 %1173
      %v1175 = vsel %vm1086, %v1167, 0.0
      %1176 = vadd.xlane.f32.xlu0 %v1175
      %v1177 = vpop.xlane.xlu0 %1176
      %v1178 = vsel %vm1086, %v1169, 0.0
      %1179 = vadd.xlane.f32.xlu0 %v1178
      %v1180 = vpop.xlane.xlu0 %1179
      %v1181 = vsel %vm1086, %v1171, 0.0
      %1182 = vadd.xlane.f32.xlu0 %v1181
      %v1183 = vpop.xlane.xlu0 %1182
      %v1184 = vrcp.pop %v1174
      %v1185 = vmul.f32 1.0, %v1184
      %v1186 = vrcp.pop %v1177
      %v1187 = vmul.f32 1.0, %v1186
      %v1188 = vrcp.pop %v1180
      %v1189 = vmul.f32 1.0, %v1188
      %v1190 = vrcp.pop %v1183
      %v1191 = vmul.f32 1.0, %v1190
      %v1192 = vmul.f32 %v1165, %v1185
      %v1193 = vmul.f32 %v1167, %v1187
      %v1194 = vmul.f32 %v1169, %v1189
      %v1195 = vmul.f32 %v1171, %v1191
      %v1196 = vpack.c.bf16 %v1193, %v1192
      %v1197 = vpack.c.bf16 %v1195, %v1194
      %v1199 = vsel %vm1086, %v1196, 0
      %v1202 = vsel %vm1086, %v1197, 0
      %1204 = vmatprep.subr.bf16.mxu0 0
      %1205 = vmatpush1.bf16.msra.mxu0 %v1082
      %1206 = vmatprep.subr.bf16.mxu0 0
      %1207 = vmatpush1.bf16.msra.mxu0 %v1085
      %1208 = vmatprep.subr.bf16.mxu0 0
      %1209 = vmatpush1.bf16.msra.mxu0 0
      %1210 = vmatprep.subr.bf16.mxu0 0
      %1211 = vmatpush1.bf16.msra.mxu0 0
      %1212 = vmatprep.subr.bf16.mxu0 0
      %1213 = vmatpush1.bf16.msra.mxu0 0
      %1214 = vmatprep.subr.bf16.mxu0 0
      %1215 = vmatpush1.bf16.msra.mxu0 0
      %1216 = vmatprep.subr.bf16.mxu0 0
      %1217 = vmatpush1.bf16.msra.mxu0 0
      %1218 = vmatprep.subr.bf16.mxu0 0
      %1219 = vmatpush1.bf16.msra.mxu0 0
      %1220 = vmatprep.subr.bf16.mxu0 0
      %1221 = vmatpush1.bf16.msra.mxu0 0
      %1222 = vmatprep.subr.bf16.mxu0 0
      %1223 = vmatpush1.bf16.msra.mxu0 0
      %1224 = vmatprep.subr.bf16.mxu0 0
      %1225 = vmatpush1.bf16.msra.mxu0 0
      %1226 = vmatprep.subr.bf16.mxu0 0
      %1227 = vmatpush1.bf16.msra.mxu0 0
      %1228 = vmatprep.subr.bf16.mxu0 0
      %1229 = vmatpush1.bf16.msra.mxu0 0
      %1230 = vmatprep.subr.bf16.mxu0 0
      %1231 = vmatpush1.bf16.msra.mxu0 0
      %1232 = vmatprep.subr.bf16.mxu0 0
      %1233 = vmatpush1.bf16.msra.mxu0 0
      %1234 = vmatprep.subr.bf16.mxu0 0
      %1235 = vmatpush1.bf16.msra.mxu0 0
      %1236 = vmatprep.mubr.bf16.mxu0 0
      %1237 = vmatmul.mubr.bf16.gmra.mrb[0].mxu0 %v1199
      %v1238 = vpop.f32.mrb[0].mxu0
      %v1239 = vadd.f32 0.0, %v1238
      %v1240 = vpop.f32.mrb[0].mxu0
      %v1241 = vpop.f32.mrb[0].mxu0
      %v1242 = vadd.f32 0.0, %v1241
      %v1243 = vpop.f32.mrb[0].mxu0
      %1244 = vmatprep.mubr.bf16.mxu0 0
      %1245 = vmatmul.mubr.bf16.gmra.mrb[0].mxu0 %v1202
      %v1246 = vpop.f32.mrb[0].mxu0
      %v1247 = vadd.f32 0.0, %v1246
      %v1248 = vpop.f32.mrb[0].mxu0
      %v1249 = vpop.f32.mrb[0].mxu0
      %v1250 = vadd.f32 0.0, %v1249
      %v1251 = vpop.f32.mrb[0].mxu0
      %1252 = vdwg.mxu0
      %v1253 = vpack.c.bf16 %v1242, %v1239
      %v1254 = vpack.c.bf16 %v1250, %v1247
      %1255 = vst.msk [vmem:[#allocation2] sm:$0xff] %vm1086, %v1253
      %1256 = vst.msk [vmem:[#allocation2 + $0x8] sm:$0xff] %vm1086, %v1254
      %1259 = vrot.lane.b32.xlu0 %v1080, 96
      %v1260 = vpop.permute.xlu0 %1259
      %1261 = vrot.lane.b32.xlu0 %v1083, 96
      %v1262 = vpop.permute.xlu0 %1261
      %1265 = vrot.lane.b32.xlu0 %v1081, 96
      %v1266 = vpop.permute.xlu0 %1265
      %1267 = vrot.lane.b32.xlu0 %v1084, 96
      %v1268 = vpop.permute.xlu0 %1267
      %v1270 = vsel %vm1086, %v1260, 0
      %v1273 = vsel %vm1086, %v1262, 0
      %v1276 = vsel %vm1086, %v1266, 0
      %v1279 = vsel %vm1086, %v1268, 0
      %1281 = vmatprep.subr.bf16.mxu0 0
      %1282 = vmatpush1.bf16.xpose.msra.mxu0 %v1276
      %1283 = vmatprep.subr.bf16.mxu0 0
      %1284 = vmatpush1.bf16.xpose.msra.mxu0 %v1279
      %1285 = vmatprep.subr.bf16.mxu0 0
      %1286 = vmatpush1.bf16.xpose.msra.mxu0 0
      %1287 = vmatprep.subr.bf16.mxu0 0
      %1288 = vmatpush1.bf16.xpose.msra.mxu0 0
      %1289 = vmatprep.subr.bf16.mxu0 0
      %1290 = vmatpush1.bf16.xpose.msra.mxu0 0
      %1291 = vmatprep.subr.bf16.mxu0 0
      %1292 = vmatpush1.bf16.xpose.msra.mxu0 0
      %1293 = vmatprep.subr.bf16.mxu0 0
      %1294 = vmatpush1.bf16.xpose.msra.mxu0 0
      %1295 = vmatprep.subr.bf16.mxu0 0
      %1296 = vmatpush1.bf16.xpose.msra.mxu0 0
      %1297 = vmatprep.subr.bf16.mxu0 0
      %1298 = vmatpush1.bf16.xpose.msra.mxu0 0
      %1299 = vmatprep.subr.bf16.mxu0 0
      %1300 = vmatpush1.bf16.xpose.msra.mxu0 0
      %1301 = vmatprep.subr.bf16.mxu0 0
      %1302 = vmatpush1.bf16.xpose.msra.mxu0 0
      %1303 = vmatprep.subr.bf16.mxu0 0
      %1304 = vmatpush1.bf16.xpose.msra.mxu0 0
      %1305 = vmatprep.subr.bf16.mxu0 0
      %1306 = vmatpush1.bf16.xpose.msra.mxu0 0
      %1307 = vmatprep.subr.bf16.mxu0 0
      %1308 = vmatpush1.bf16.xpose.msra.mxu0 0
      %1309 = vmatprep.subr.bf16.mxu0 0
      %1310 = vmatpush1.bf16.xpose.msra.mxu0 0
      %1311 = vmatprep.subr.bf16.mxu0 0
      %1312 = vmatpush1.bf16.xpose.msra.mxu0 0
      %1313 = vmatprep.mubr.bf16.mxu0 0
      %1314 = vmatmul.mubr.bf16.gmra.mrb[0].mxu0 %v1270
      %v1315 = vpop.f32.mrb[0].mxu0
      %v1316 = vadd.f32 %v553, %v1315
      %v1317 = vpop.f32.mrb[0].mxu0
      %v1318 = vpop.f32.mrb[0].mxu0
      %v1319 = vadd.f32 %v553, %v1318
      %v1320 = vpop.f32.mrb[0].mxu0
      %1321 = vmatprep.mubr.bf16.mxu0 0
      %1322 = vmatmul.mubr.bf16.gmra.mrb[0].mxu0 %v1273
      %v1323 = vpop.f32.mrb[0].mxu0
      %v1324 = vadd.f32 %v553, %v1323
      %v1325 = vpop.f32.mrb[0].mxu0
      %v1326 = vpop.f32.mrb[0].mxu0
      %v1327 = vadd.f32 %v553, %v1326
      %v1328 = vpop.f32.mrb[0].mxu0
      %1329 = vdwg.mxu0
      %v1330 = vsel %vm1086, %v1316, -inf
      %1331 = vmax.xlane.f32.xlu0 %v1330
      %v1332 = vpop.xlane.xlu0 %1331
      %v1333 = vsel %vm1086, %v1319, -inf
      %1334 = vmax.xlane.f32.xlu0 %v1333
      %v1335 = vpop.xlane.xlu0 %1334
      %v1336 = vsel %vm1086, %v1324, -inf
      %1337 = vmax.xlane.f32.xlu0 %v1336
      %v1338 = vpop.xlane.xlu0 %1337
      %v1339 = vsel %vm1086, %v1327, -inf
      %1340 = vmax.xlane.f32.xlu0 %v1339
      %v1341 = vpop.xlane.xlu0 %1340
      %v1342 = vsub.f32 %v1316, %v1332
      %v1343 = vsub.f32 %v1319, %v1335
      %v1344 = vsub.f32 %v1324, %v1338
      %v1345 = vsub.f32 %v1327, %v1341
      %v1346 = vmul.f32 %v1342, 1.442695
      %v1347 = vpow.pop %v1346
      %v1348 = vmul.f32 %v1343, 1.442695
      %v1349 = vpow.pop %v1348
      %v1350 = vmul.f32 %v1344, 1.442695
      %v1351 = vpow.pop %v1350
      %v1352 = vmul.f32 %v1345, 1.442695
      %v1353 = vpow.pop %v1352
      %v1354 = vsel %vm1086, %v1347, 0.0
      %1355 = vadd.xlane.f32.xlu0 %v1354
      %v1356 = vpop.xlane.xlu0 %1355
      %v1357 = vsel %vm1086, %v1349, 0.0
      %1358 = vadd.xlane.f32.xlu0 %v1357
      %v1359 = vpop.xlane.xlu0 %1358
      %v1360 = vsel %vm1086, %v1351, 0.0
      %1361 = vadd.xlane.f32.xlu0 %v1360
      %v1362 = vpop.xlane.xlu0 %1361
      %v1363 = vsel %vm1086, %v1353, 0.0
      %1364 = vadd.xlane.f32.xlu0 %v1363
      %v1365 = vpop.xlane.xlu0 %1364
      %v1366 = vrcp.pop %v1356
      %v1367 = vmul.f32 1.0, %v1366
      %v1368 = vrcp.pop %v1359
      %v1369 = vmul.f32 1.0, %v1368
      %v1370 = vrcp.pop %v1362
      %v1371 = vmul.f32 1.0, %v1370
      %v1372 = vrcp.pop %v1365
      %v1373 = vmul.f32 1.0, %v1372
      %v1374 = vmul.f32 %v1347, %v1367
      %v1375 = vmul.f32 %v1349, %v1369
      %v1376 = vmul.f32 %v1351, %v1371
      %v1377 = vmul.f32 %v1353, %v1373
      %v1378 = vpack.c.bf16 %v1375, %v1374
      %v1379 = vpack.c.bf16 %v1377, %v1376
      %1382 = vrot.lane.b32.xlu0 %v1082, 96
      %v1383 = vpop.permute.xlu0 %1382
      %1384 = vrot.lane.b32.xlu0 %v1085, 96
      %v1385 = vpop.permute.xlu0 %1384
      %v1389 = vsel %vm1086, %v1378, 0
      %v1392 = vsel %vm1086, %v1379, 0
      %1394 = vmatprep.subr.bf16.mxu0 0
      %1395 = vmatpush1.bf16.msra.mxu0 %v1383
      %1396 = vmatprep.subr.bf16.mxu0 0
      %1397 = vmatpush1.bf16.msra.mxu0 %v1385
      %1398 = vmatprep.subr.bf16.mxu0 0
      %1399 = vmatpush1.bf16.msra.mxu0 0
      %1400 = vmatprep.subr.bf16.mxu0 0
      %1401 = vmatpush1.bf16.msra.mxu0 0
      %1402 = vmatprep.subr.bf16.mxu0 0
      %1403 = vmatpush1.bf16.msra.mxu0 0
      %1404 = vmatprep.subr.bf16.mxu0 0
      %1405 = vmatpush1.bf16.msra.mxu0 0
      %1406 = vmatprep.subr.bf16.mxu0 0
      %1407 = vmatpush1.bf16.msra.mxu0 0
      %1408 = vmatprep.subr.bf16.mxu0 0
      %1409 = vmatpush1.bf16.msra.mxu0 0
      %1410 = vmatprep.subr.bf16.mxu0 0
      %1411 = vmatpush1.bf16.msra.mxu0 0
      %1412 = vmatprep.subr.bf16.mxu0 0
      %1413 = vmatpush1.bf16.msra.mxu0 0
      %1414 = vmatprep.subr.bf16.mxu0 0
      %1415 = vmatpush1.bf16.msra.mxu0 0
      %1416 = vmatprep.subr.bf16.mxu0 0
      %1417 = vmatpush1.bf16.msra.mxu0 0
      %1418 = vmatprep.subr.bf16.mxu0 0
      %1419 = vmatpush1.bf16.msra.mxu0 0
      %1420 = vmatprep.subr.bf16.mxu0 0
      %1421 = vmatpush1.bf16.msra.mxu0 0
      %1422 = vmatprep.subr.bf16.mxu0 0
      %1423 = vmatpush1.bf16.msra.mxu0 0
      %1424 = vmatprep.subr.bf16.mxu0 0
      %1425 = vmatpush1.bf16.msra.mxu0 0
      %1426 = vmatprep.mubr.bf16.mxu0 0
      %1427 = vmatmul.mubr.bf16.gmra.mrb[0].mxu0 %v1389
      %v1428 = vpop.f32.mrb[0].mxu0
      %v1429 = vadd.f32 0.0, %v1428
      %v1430 = vpop.f32.mrb[0].mxu0
      %v1431 = vpop.f32.mrb[0].mxu0
      %v1432 = vadd.f32 0.0, %v1431
      %v1433 = vpop.f32.mrb[0].mxu0
      %1434 = vmatprep.mubr.bf16.mxu0 0
      %1435 = vmatmul.mubr.bf16.gmra.mrb[0].mxu0 %v1392
      %v1436 = vpop.f32.mrb[0].mxu0
      %v1437 = vadd.f32 0.0, %v1436
      %v1438 = vpop.f32.mrb[0].mxu0
      %v1439 = vpop.f32.mrb[0].mxu0
      %v1440 = vadd.f32 0.0, %v1439
      %v1441 = vpop.f32.mrb[0].mxu0
      %1442 = vdwg.mxu0
      %v1443 = vpack.c.bf16 %v1432, %v1429
      %v1444 = vpack.c.bf16 %v1440, %v1437
      %1447 = vrot.lane.b32.xlu0 %v1443, 32
      %v1448 = vpop.permute.xlu0 %1447
      %1449 = vrot.lane.b32.xlu0 %v1444, 32
      %v1450 = vpop.permute.xlu0 %1449
      %vm1453 = vcmask 523520
      %1454 = vst.msk [vmem:[#allocation2] sm:$0xff] %vm1453, %v1448
      %1455 = vst.msk [vmem:[#allocation2 + $0x8] sm:$0xff] %vm1453, %v1450
      %1456 = vrot.lane.b32.xlu0 %v1080, 64
      %v1457 = vpop.permute.xlu0 %1456
      %1458 = vrot.lane.b32.xlu0 %v1083, 64
      %v1459 = vpop.permute.xlu0 %1458
      %1460 = vrot.lane.b32.xlu0 %v1081, 64
      %v1461 = vpop.permute.xlu0 %1460
      %1462 = vrot.lane.b32.xlu0 %v1084, 64
      %v1463 = vpop.permute.xlu0 %1462
      %v1465 = vsel %vm1086, %v1457, 0
      %v1468 = vsel %vm1086, %v1459, 0
      %v1471 = vsel %vm1086, %v1461, 0
      %v1474 = vsel %vm1086, %v1463, 0
      %1476 = vmatprep.subr.bf16.mxu0 0
      %1477 = vmatpush1.bf16.xpose.msra.mxu0 %v1471
      %1478 = vmatprep.subr.bf16.mxu0 0
      %1479 = vmatpush1.bf16.xpose.msra.mxu0 %v1474
      %1480 = vmatprep.subr.bf16.mxu0 0
      %1481 = vmatpush1.bf16.xpose.msra.mxu0 0
      %1482 = vmatprep.subr.bf16.mxu0 0
      %1483 = vmatpush1.bf16.xpose.msra.mxu0 0
      %1484 = vmatprep.subr.bf16.mxu0 0
      %1485 = vmatpush1.bf16.xpose.msra.mxu0 0
      %1486 = vmatprep.subr.bf16.mxu0 0
      %1487 = vmatpush1.bf16.xpose.msra.mxu0 0
      %1488 = vmatprep.subr.bf16.mxu0 0
      %1489 = vmatpush1.bf16.xpose.msra.mxu0 0
      %1490 = vmatprep.subr.bf16.mxu0 0
      %1491 = vmatpush1.bf16.xpose.msra.mxu0 0
      %1492 = vmatprep.subr.bf16.mxu0 0
      %1493 = vmatpush1.bf16.xpose.msra.mxu0 0
      %1494 = vmatprep.subr.bf16.mxu0 0
      %1495 = vmatpush1.bf16.xpose.msra.mxu0 0
      %1496 = vmatprep.subr.bf16.mxu0 0
      %1497 = vmatpush1.bf16.xpose.msra.mxu0 0
      %1498 = vmatprep.subr.bf16.mxu0 0
      %1499 = vmatpush1.bf16.xpose.msra.mxu0 0
      %1500 = vmatprep.subr.bf16.mxu0 0
      %1501 = vmatpush1.bf16.xpose.msra.mxu0 0
      %1502 = vmatprep.subr.bf16.mxu0 0
      %1503 = vmatpush1.bf16.xpose.msra.mxu0 0
      %1504 = vmatprep.subr.bf16.mxu0 0
      %1505 = vmatpush1.bf16.xpose.msra.mxu0 0
      %1506 = vmatprep.subr.bf16.mxu0 0
      %1507 = vmatpush1.bf16.xpose.msra.mxu0 0
      %1508 = vmatprep.mubr.bf16.mxu0 0
      %1509 = vmatmul.mubr.bf16.gmra.mrb[0].mxu0 %v1465
      %v1510 = vpop.f32.mrb[0].mxu0
      %v1511 = vadd.f32 %v553, %v1510
      %v1512 = vpop.f32.mrb[0].mxu0
      %v1513 = vpop.f32.mrb[0].mxu0
      %v1514 = vadd.f32 %v553, %v1513
      %v1515 = vpop.f32.mrb[0].mxu0
      %1516 = vmatprep.mubr.bf16.mxu0 0
      %1517 = vmatmul.mubr.bf16.gmra.mrb[0].mxu0 %v1468
      %v1518 = vpop.f32.mrb[0].mxu0
      %v1519 = vadd.f32 %v553, %v1518
      %v1520 = vpop.f32.mrb[0].mxu0
      %v1521 = vpop.f32.mrb[0].mxu0
      %v1522 = vadd.f32 %v553, %v1521
      %v1523 = vpop.f32.mrb[0].mxu0
      %1524 = vdwg.mxu0
      %v1525 = vsel %vm1086, %v1511, -inf
      %1526 = vmax.xlane.f32.xlu0 %v1525
      %v1527 = vpop.xlane.xlu0 %1526
      %v1528 = vsel %vm1086, %v1514, -inf
      %1529 = vmax.xlane.f32.xlu0 %v1528
      %v1530 = vpop.xlane.xlu0 %1529
      %v1531 = vsel %vm1086, %v1519, -inf
      %1532 = vmax.xlane.f32.xlu0 %v1531
      %v1533 = vpop.xlane.xlu0 %1532
      %v1534 = vsel %vm1086, %v1522, -inf
      %1535 = vmax.xlane.f32.xlu0 %v1534
      %v1536 = vpop.xlane.xlu0 %1535
      %v1537 = vsub.f32 %v1511, %v1527
      %v1538 = vsub.f32 %v1514, %v1530
      %v1539 = vsub.f32 %v1519, %v1533
      %v1540 = vsub.f32 %v1522, %v1536
      %v1541 = vmul.f32 %v1537, 1.442695
      %v1542 = vpow.pop %v1541
      %v1543 = vmul.f32 %v1538, 1.442695
      %v1544 = vpow.pop %v1543
      %v1545 = vmul.f32 %v1539, 1.442695
      %v1546 = vpow.pop %v1545
      %v1547 = vmul.f32 %v1540, 1.442695
      %v1548 = vpow.pop %v1547
      %v1549 = vsel %vm1086, %v1542, 0.0
      %1550 = vadd.xlane.f32.xlu0 %v1549
      %v1551 = vpop.xlane.xlu0 %1550
      %v1552 = vsel %vm1086, %v1544, 0.0
      %1553 = vadd.xlane.f32.xlu0 %v1552
      %v1554 = vpop.xlane.xlu0 %1553
      %v1555 = vsel %vm1086, %v1546, 0.0
      %1556 = vadd.xlane.f32.xlu0 %v1555
      %v1557 = vpop.xlane.xlu0 %1556
      %v1558 = vsel %vm1086, %v1548, 0.0
      %1559 = vadd.xlane.f32.xlu0 %v1558
      %v1560 = vpop.xlane.xlu0 %1559
      %v1561 = vrcp.pop %v1551
      %v1562 = vmul.f32 1.0, %v1561
      %v1563 = vrcp.pop %v1554
      %v1564 = vmul.f32 1.0, %v1563
      %v1565 = vrcp.pop %v1557
      %v1566 = vmul.f32 1.0, %v1565
      %v1567 = vrcp.pop %v1560
      %v1568 = vmul.f32 1.0, %v1567
      %v1569 = vmul.f32 %v1542, %v1562
      %v1570 = vmul.f32 %v1544, %v1564
      %v1571 = vmul.f32 %v1546, %v1566
      %v1572 = vmul.f32 %v1548, %v1568
      %v1573 = vpack.c.bf16 %v1570, %v1569
      %v1574 = vpack.c.bf16 %v1572, %v1571
      %1575 = vrot.lane.b32.xlu0 %v1082, 64
      %v1576 = vpop.permute.xlu0 %1575
      %1577 = vrot.lane.b32.xlu0 %v1085, 64
      %v1578 = vpop.permute.xlu0 %1577
      %v1582 = vsel %vm1086, %v1573, 0
      %v1585 = vsel %vm1086, %v1574, 0
      %1587 = vmatprep.subr.bf16.mxu0 0
      %1588 = vmatpush1.bf16.msra.mxu0 %v1576
      %1589 = vmatprep.subr.bf16.mxu0 0
      %1590 = vmatpush1.bf16.msra.mxu0 %v1578
      %1591 = vmatprep.subr.bf16.mxu0 0
      %1592 = vmatpush1.bf16.msra.mxu0 0
      %1593 = vmatprep.subr.bf16.mxu0 0
      %1594 = vmatpush1.bf16.msra.mxu0 0
      %1595 = vmatprep.subr.bf16.mxu0 0
      %1596 = vmatpush1.bf16.msra.mxu0 0
      %1597 = vmatprep.subr.bf16.mxu0 0
      %1598 = vmatpush1.bf16.msra.mxu0 0
      %1599 = vmatprep.subr.bf16.mxu0 0
      %1600 = vmatpush1.bf16.msra.mxu0 0
      %1601 = vmatprep.subr.bf16.mxu0 0
      %1602 = vmatpush1.bf16.msra.mxu0 0
      %1603 = vmatprep.subr.bf16.mxu0 0
      %1604 = vmatpush1.bf16.msra.mxu0 0
      %1605 = vmatprep.subr.bf16.mxu0 0
      %1606 = vmatpush1.bf16.msra.mxu0 0
      %1607 = vmatprep.subr.bf16.mxu0 0
      %1608 = vmatpush1.bf16.msra.mxu0 0
      %1609 = vmatprep.subr.bf16.mxu0 0
      %1610 = vmatpush1.bf16.msra.mxu0 0
      %1611 = vmatprep.subr.bf16.mxu0 0
      %1612 = vmatpush1.bf16.msra.mxu0 0
      %1613 = vmatprep.subr.bf16.mxu0 0
      %1614 = vmatpush1.bf16.msra.mxu0 0
      %1615 = vmatprep.subr.bf16.mxu0 0
      %1616 = vmatpush1.bf16.msra.mxu0 0
      %1617 = vmatprep.subr.bf16.mxu0 0
      %1618 = vmatpush1.bf16.msra.mxu0 0
      %1619 = vmatprep.mubr.bf16.mxu0 0
      %1620 = vmatmul.mubr.bf16.gmra.mrb[0].mxu0 %v1582
      %v1621 = vpop.f32.mrb[0].mxu0
      %v1622 = vadd.f32 0.0, %v1621
      %v1623 = vpop.f32.mrb[0].mxu0
      %v1624 = vpop.f32.mrb[0].mxu0
      %v1625 = vadd.f32 0.0, %v1624
      %v1626 = vpop.f32.mrb[0].mxu0
      %1627 = vmatprep.mubr.bf16.mxu0 0
      %1628 = vmatmul.mubr.bf16.gmra.mrb[0].mxu0 %v1585
      %v1629 = vpop.f32.mrb[0].mxu0
      %v1630 = vadd.f32 0.0, %v1629
      %v1631 = vpop.f32.mrb[0].mxu0
      %v1632 = vpop.f32.mrb[0].mxu0
      %v1633 = vadd.f32 0.0, %v1632
      %v1634 = vpop.f32.mrb[0].mxu0
      %1635 = vdwg.mxu0
      %v1636 = vpack.c.bf16 %v1625, %v1622
      %v1637 = vpack.c.bf16 %v1633, %v1630
      %1640 = vrot.lane.b32.xlu0 %v1636, 64
      %v1641 = vpop.permute.xlu0 %1640
      %1642 = vrot.lane.b32.xlu0 %v1637, 64
      %v1643 = vpop.permute.xlu0 %1642
      %vm1646 = vcmask 785920
      %1647 = vst.msk [vmem:[#allocation2] sm:$0xff] %vm1646, %v1641
      %1648 = vst.msk [vmem:[#allocation2 + $0x8] sm:$0xff] %vm1646, %v1643
      %1649 = vrot.lane.b32.xlu0 %v1080, 32
      %v1650 = vpop.permute.xlu0 %1649
      %1651 = vrot.lane.b32.xlu0 %v1083, 32
      %v1652 = vpop.permute.xlu0 %1651
      %1653 = vrot.lane.b32.xlu0 %v1081, 32
      %v1654 = vpop.permute.xlu0 %1653
      %1655 = vrot.lane.b32.xlu0 %v1084, 32
      %v1656 = vpop.permute.xlu0 %1655
      %v1658 = vsel %vm1086, %v1650, 0
      %v1661 = vsel %vm1086, %v1652, 0
      %v1664 = vsel %vm1086, %v1654, 0
      %v1667 = vsel %vm1086, %v1656, 0
      %1669 = vmatprep.subr.bf16.mxu0 0
      %1670 = vmatpush1.bf16.xpose.msra.mxu0 %v1664
      %1671 = vmatprep.subr.bf16.mxu0 0
      %1672 = vmatpush1.bf16.xpose.msra.mxu0 %v1667
      %1673 = vmatprep.subr.bf16.mxu0 0
      %1674 = vmatpush1.bf16.xpose.msra.mxu0 0
      %1675 = vmatprep.subr.bf16.mxu0 0
      %1676 = vmatpush1.bf16.xpose.msra.mxu0 0
      %1677 = vmatprep.subr.bf16.mxu0 0
      %1678 = vmatpush1.bf16.xpose.msra.mxu0 0
      %1679 = vmatprep.subr.bf16.mxu0 0
      %1680 = vmatpush1.bf16.xpose.msra.mxu0 0
      %1681 = vmatprep.subr.bf16.mxu0 0
      %1682 = vmatpush1.bf16.xpose.msra.mxu0 0
      %1683 = vmatprep.subr.bf16.mxu0 0
      %1684 = vmatpush1.bf16.xpose.msra.mxu0 0
      %1685 = vmatprep.subr.bf16.mxu0 0
      %1686 = vmatpush1.bf16.xpose.msra.mxu0 0
      %1687 = vmatprep.subr.bf16.mxu0 0
      %1688 = vmatpush1.bf16.xpose.msra.mxu0 0
      %1689 = vmatprep.subr.bf16.mxu0 0
      %1690 = vmatpush1.bf16.xpose.msra.mxu0 0
      %1691 = vmatprep.subr.bf16.mxu0 0
      %1692 = vmatpush1.bf16.xpose.msra.mxu0 0
      %1693 = vmatprep.subr.bf16.mxu0 0
      %1694 = vmatpush1.bf16.xpose.msra.mxu0 0
      %1695 = vmatprep.subr.bf16.mxu0 0
      %1696 = vmatpush1.bf16.xpose.msra.mxu0 0
      %1697 = vmatprep.subr.bf16.mxu0 0
      %1698 = vmatpush1.bf16.xpose.msra.mxu0 0
      %1699 = vmatprep.subr.bf16.mxu0 0
      %1700 = vmatpush1.bf16.xpose.msra.mxu0 0
      %1701 = vmatprep.mubr.bf16.mxu0 0
      %1702 = vmatmul.mubr.bf16.gmra.mrb[0].mxu0 %v1658
      %v1703 = vpop.f32.mrb[0].mxu0
      %v1704 = vadd.f32 %v553, %v1703
      %v1705 = vpop.f32.mrb[0].mxu0
      %v1706 = vpop.f32.mrb[0].mxu0
      %v1707 = vadd.f32 %v553, %v1706
      %v1708 = vpop.f32.mrb[0].mxu0
      %1709 = vmatprep.mubr.bf16.mxu0 0
      %1710 = vmatmul.mubr.bf16.gmra.mrb[0].mxu0 %v1661
      %v1711 = vpop.f32.mrb[0].mxu0
      %v1712 = vadd.f32 %v553, %v1711
      %v1713 = vpop.f32.mrb[0].mxu0
      %v1714 = vpop.f32.mrb[0].mxu0
      %v1715 = vadd.f32 %v553, %v1714
      %v1716 = vpop.f32.mrb[0].mxu0
      %1717 = vdwg.mxu0
      %v1718 = vsel %vm1086, %v1704, -inf
      %1719 = vmax.xlane.f32.xlu0 %v1718
      %v1720 = vpop.xlane.xlu0 %1719
      %v1721 = vsel %vm1086, %v1707, -inf
      %1722 = vmax.xlane.f32.xlu0 %v1721
      %v1723 = vpop.xlane.xlu0 %1722
      %v1724 = vsel %vm1086, %v1712, -inf
      %1725 = vmax.xlane.f32.xlu0 %v1724
      %v1726 = vpop.xlane.xlu0 %1725
      %v1727 = vsel %vm1086, %v1715, -inf
      %1728 = vmax.xlane.f32.xlu0 %v1727
      %v1729 = vpop.xlane.xlu0 %1728
      %v1730 = vsub.f32 %v1704, %v1720
      %v1731 = vsub.f32 %v1707, %v1723
      %v1732 = vsub.f32 %v1712, %v1726
      %v1733 = vsub.f32 %v1715, %v1729
      %v1734 = vmul.f32 %v1730, 1.442695
      %v1735 = vpow.pop %v1734
      %v1736 = vmul.f32 %v1731, 1.442695
      %v1737 = vpow.pop %v1736
      %v1738 = vmul.f32 %v1732, 1.442695
      %v1739 = vpow.pop %v1738
      %v1740 = vmul.f32 %v1733, 1.442695
      %v1741 = vpow.pop %v1740
      %v1742 = vsel %vm1086, %v1735, 0.0
      %1743 = vadd.xlane.f32.xlu0 %v1742
      %v1744 = vpop.xlane.xlu0 %1743
      %v1745 = vsel %vm1086, %v1737, 0.0
      %1746 = vadd.xlane.f32.xlu0 %v1745
      %v1747 = vpop.xlane.xlu0 %1746
      %v1748 = vsel %vm1086, %v1739, 0.0
      %1749 = vadd.xlane.f32.xlu0 %v1748
      %v1750 = vpop.xlane.xlu0 %1749
      %v1751 = vsel %vm1086, %v1741, 0.0
      %1752 = vadd.xlane.f32.xlu0 %v1751
      %v1753 = vpop.xlane.xlu0 %1752
      %v1754 = vrcp.pop %v1744
      %v1755 = vmul.f32 1.0, %v1754
      %v1756 = vrcp.pop %v1747
      %v1757 = vmul.f32 1.0, %v1756
      %v1758 = vrcp.pop %v1750
      %v1759 = vmul.f32 1.0, %v1758
      %v1760 = vrcp.pop %v1753
      %v1761 = vmul.f32 1.0, %v1760
      %v1762 = vmul.f32 %v1735, %v1755
      %v1763 = vmul.f32 %v1737, %v1757
      %v1764 = vmul.f32 %v1739, %v1759
      %v1765 = vmul.f32 %v1741, %v1761
      %v1766 = vpack.c.bf16 %v1763, %v1762
      %v1767 = vpack.c.bf16 %v1765, %v1764
      %1768 = vrot.lane.b32.xlu0 %v1082, 32
      %v1769 = vpop.permute.xlu0 %1768
      %1770 = vrot.lane.b32.xlu0 %v1085, 32
      %v1771 = vpop.permute.xlu0 %1770
      %v1775 = vsel %vm1086, %v1766, 0
      %v1778 = vsel %vm1086, %v1767, 0
      %1780 = vmatprep.subr.bf16.mxu0 0
      %1781 = vmatpush1.bf16.msra.mxu0 %v1769
      %1782 = vmatprep.subr.bf16.mxu0 0
      %1783 = vmatpush1.bf16.msra.mxu0 %v1771
      %1784 = vmatprep.subr.bf16.mxu0 0
      %1785 = vmatpush1.bf16.msra.mxu0 0
      %1786 = vmatprep.subr.bf16.mxu0 0
      %1787 = vmatpush1.bf16.msra.mxu0 0
      %1788 = vmatprep.subr.bf16.mxu0 0
      %1789 = vmatpush1.bf16.msra.mxu0 0
      %1790 = vmatprep.subr.bf16.mxu0 0
      %1791 = vmatpush1.bf16.msra.mxu0 0
      %1792 = vmatprep.subr.bf16.mxu0 0
      %1793 = vmatpush1.bf16.msra.mxu0 0
      %1794 = vmatprep.subr.bf16.mxu0 0
      %1795 = vmatpush1.bf16.msra.mxu0 0
      %1796 = vmatprep.subr.bf16.mxu0 0
      %1797 = vmatpush1.bf16.msra.mxu0 0
      %1798 = vmatprep.subr.bf16.mxu0 0
      %1799 = vmatpush1.bf16.msra.mxu0 0
      %1800 = vmatprep.subr.bf16.mxu0 0
      %1801 = vmatpush1.bf16.msra.mxu0 0
      %1802 = vmatprep.subr.bf16.mxu0 0
      %1803 = vmatpush1.bf16.msra.mxu0 0
      %1804 = vmatprep.subr.bf16.mxu0 0
      %1805 = vmatpush1.bf16.msra.mxu0 0
      %1806 = vmatprep.subr.bf16.mxu0 0
      %1807 = vmatpush1.bf16.msra.mxu0 0
      %1808 = vmatprep.subr.bf16.mxu0 0
      %1809 = vmatpush1.bf16.msra.mxu0 0
      %1810 = vmatprep.subr.bf16.mxu0 0
      %1811 = vmatpush1.bf16.msra.mxu0 0
      %1812 = vmatprep.mubr.bf16.mxu0 0
      %1813 = vmatmul.mubr.bf16.gmra.mrb[0].mxu0 %v1775
      %v1814 = vpop.f32.mrb[0].mxu0
      %v1815 = vadd.f32 0.0, %v1814
      %v1816 = vpop.f32.mrb[0].mxu0
      %v1817 = vpop.f32.mrb[0].mxu0
      %v1818 = vadd.f32 0.0, %v1817
      %v1819 = vpop.f32.mrb[0].mxu0
      %1820 = vmatprep.mubr.bf16.mxu0 0
      %1821 = vmatmul.mubr.bf16.gmra.mrb[0].mxu0 %v1778
      %v1822 = vpop.f32.mrb[0].mxu0
      %v1823 = vadd.f32 0.0, %v1822
      %v1824 = vpop.f32.mrb[0].mxu0
      %v1825 = vpop.f32.mrb[0].mxu0
      %v1826 = vadd.f32 0.0, %v1825
      %v1827 = vpop.f32.mrb[0].mxu0
      %1828 = vdwg.mxu0
      %v1829 = vpack.c.bf16 %v1818, %v1815
      %v1830 = vpack.c.bf16 %v1826, %v1823
      %1833 = vrot.lane.b32.xlu0 %v1829, 96
      %v1834 = vpop.permute.xlu0 %1833
      %1835 = vrot.lane.b32.xlu0 %v1830, 96
      %v1836 = vpop.permute.xlu0 %1835
      %vm1839 = vcmask 1048320
      %1840 = vst.msk [vmem:[#allocation2] sm:$0xff] %vm1839, %v1834
      %1841 = vst.msk [vmem:[#allocation2 + $0x8] sm:$0xff] %vm1839, %v1836
      %v1842 = vld [vmem:[#allocation2] sm:$0xff]
      %v1843 = vld [vmem:[#allocation2 + $0x8] sm:$0xff]
      %v1844 = vld [vmem:[%s7] sm:$0xf]
      %v1845 = vld [vmem:[%s7 + $0x4] sm:$0xf]
      %v1846 = vld [vmem:[%s7 + $0x8] sm:$0xf]
      %v1847 = vld [vmem:[%s7 + $0xc] sm:$0xf]
      %v1848 = vld [vmem:[%s7 + $0x10] sm:$0xf]
      %v1849 = vld [vmem:[%s7 + $0x14] sm:$0xf]
      %v1850 = vld [vmem:[%s7 + $0x18] sm:$0xf]
      %v1851 = vld [vmem:[%s7 + $0x1c] sm:$0xf]
      %v1852 = vld [vmem:[%s7 + $0x20] sm:$0xf]
      %v1853 = vld [vmem:[%s7 + $0x24] sm:$0xf]
      %v1854 = vld [vmem:[%s7 + $0x28] sm:$0xf]
      %v1855 = vld [vmem:[%s7 + $0x2c] sm:$0xf]
      %v1856 = vld [vmem:[%s7 + $0x30] sm:$0xf]
      %v1857 = vld [vmem:[%s7 + $0x34] sm:$0xf]
      %v1858 = vld [vmem:[%s7 + $0x38] sm:$0xf]
      %v1859 = vld [vmem:[%s7 + $0x3c] sm:$0xf]
      %v1876 = vunpack.c.l.b16 %v1844
      %v1877 = vunpack.c.l.b16 %v1845
      %v1878 = vunpack.c.l.b16 %v1846
      %v1879 = vunpack.c.l.b16 %v1847
      %v1880 = vunpack.c.l.b16 %v1848
      %v1881 = vunpack.c.l.b16 %v1849
      %v1882 = vunpack.c.l.b16 %v1850
      %v1883 = vunpack.c.l.b16 %v1851
      %v1884 = vunpack.c.l.b16 %v1852
      %v1885 = vunpack.c.l.b16 %v1853
      %v1886 = vunpack.c.l.b16 %v1854
      %v1887 = vunpack.c.l.b16 %v1855
      %v1888 = vunpack.c.l.b16 %v1856
      %v1889 = vunpack.c.l.b16 %v1857
      %v1890 = vunpack.c.l.b16 %v1858
      %v1891 = vunpack.c.l.b16 %v1859
      %v1892 = vpack.c.b16 %v1877, %v1876
      %v1893 = vpack.c.b16 %v1879, %v1878
      %v1894 = vpack.c.b16 %v1881, %v1880
      %v1895 = vpack.c.b16 %v1883, %v1882
      %v1896 = vpack.c.b16 %v1885, %v1884
      %v1897 = vpack.c.b16 %v1887, %v1886
      %v1898 = vpack.c.b16 %v1889, %v1888
      %v1899 = vpack.c.b16 %v1891, %v1890
      %1908 = vmatprep.subr.bf16.mxu0 0
      %1909 = vmatpush1.bf16.msra.mxu0 %v1892
      %1910 = vmatprep.subr.bf16.mxu0 0
      %1911 = vmatpush1.bf16.msra.mxu0 %v1893
      %1912 = vmatprep.subr.bf16.mxu0 0
      %1913 = vmatpush1.bf16.msra.mxu0 %v1894
      %1914 = vmatprep.subr.bf16.mxu0 0
      %1915 = vmatpush1.bf16.msra.mxu0 %v1895
      %1916 = vmatprep.subr.bf16.mxu0 0
      %1917 = vmatpush1.bf16.msra.mxu0 %v1896
      %1918 = vmatprep.subr.bf16.mxu0 0
      %1919 = vmatpush1.bf16.msra.mxu0 %v1897
      %1920 = vmatprep.subr.bf16.mxu0 0
      %1921 = vmatpush1.bf16.msra.mxu0 %v1898
      %1922 = vmatprep.subr.bf16.mxu0 0
      %1923 = vmatpush1.bf16.msra.mxu0 %v1899
      %1924 = vmatprep.subr.bf16.mxu0 0
      %1925 = vmatpush1.bf16.msra.mxu0 0
      %1926 = vmatprep.subr.bf16.mxu0 0
      %1927 = vmatpush1.bf16.msra.mxu0 0
      %1928 = vmatprep.subr.bf16.mxu0 0
      %1929 = vmatpush1.bf16.msra.mxu0 0
      %1930 = vmatprep.subr.bf16.mxu0 0
      %1931 = vmatpush1.bf16.msra.mxu0 0
      %1932 = vmatprep.subr.bf16.mxu0 0
      %1933 = vmatpush1.bf16.msra.mxu0 0
      %1934 = vmatprep.subr.bf16.mxu0 0
      %1935 = vmatpush1.bf16.msra.mxu0 0
      %1936 = vmatprep.subr.bf16.mxu0 0
      %1937 = vmatpush1.bf16.msra.mxu0 0
      %1938 = vmatprep.subr.bf16.mxu0 0
      %1939 = vmatpush1.bf16.msra.mxu0 0
      %1940 = vmatprep.mubr.bf16.mxu0 0
      %1941 = vmatmul.mubr.bf16.gmra.mrb[0].mxu0 %v1842
      %v1942 = vpop.f32.mrb[0].mxu0
      %v1943 = vadd.f32 0.0, %v1942
      %v1944 = vpop.f32.mrb[0].mxu0
      %v1945 = vpop.f32.mrb[0].mxu0
      %v1946 = vadd.f32 0.0, %v1945
      %v1947 = vpop.f32.mrb[0].mxu0
      %1948 = vmatprep.mubr.bf16.mxu0 0
      %1949 = vmatmul.mubr.bf16.gmra.mrb[0].mxu0 %v1843
      %v1950 = vpop.f32.mrb[0].mxu0
      %v1951 = vadd.f32 0.0, %v1950
      %v1952 = vpop.f32.mrb[0].mxu0
      %v1953 = vpop.f32.mrb[0].mxu0
      %v1954 = vadd.f32 0.0, %v1953
      %v1955 = vpop.f32.mrb[0].mxu0
      %1956 = vdwg.mxu0
      %v1957 = vadd.f32 %v718, %v1943
      %v1958 = vadd.f32 %v721, %v1946
      %v1959 = vadd.f32 %v726, %v1951
      %v1960 = vadd.f32 %v729, %v1954
      %v1961 = vld [vmem:[%s8] sm:$0x1]
      %v1963 = vlaneseq
      %v1964 = vshrl.u32 %v1963, 7
      %v1965 = vsub.s32 0, %v1964
      %v1966 = vrot.slane %v1961, %v1965
      %v1968 = vadd.f32 %v1957, %v1966
      %v1969 = vadd.f32 %v1958, %v1966
      %v1970 = vadd.f32 %v1959, %v1966
      %v1971 = vadd.f32 %v1960, %v1966
      %v1972 = vld [vmem:[%s9] sm:$0x1]
      %v1973 = vld [vmem:[%s10] sm:$0x1]
      %1974 = vadd.xlane.f32.xlu0 %v1968
      %v1975 = vpop.xlane.xlu0 %1974
      %1976 = vadd.xlane.f32.xlu0 %v1969
      %v1977 = vpop.xlane.xlu0 %1976
      %1978 = vadd.xlane.f32.xlu0 %v1970
      %v1979 = vpop.xlane.xlu0 %1978
      %1980 = vadd.xlane.f32.xlu0 %v1971
      %v1981 = vpop.xlane.xlu0 %1980
      %v1982 = vmul.f32 %v1975, %v742
      %v1983 = vmul.f32 %v1977, %v742
      %v1984 = vmul.f32 %v1979, %v742
      %v1985 = vmul.f32 %v1981, %v742
      %v1986 = vsub.f32 %v1968, %v1982
      %v1987 = vsub.f32 %v1969, %v1983
      %v1988 = vsub.f32 %v1970, %v1984
      %v1989 = vsub.f32 %v1971, %v1985
      %v1990 = vmul.f32 %v1986, %v1986
      %v1991 = vmul.f32 %v1987, %v1987
      %v1992 = vmul.f32 %v1988, %v1988
      %v1993 = vmul.f32 %v1989, %v1989
      %1994 = vadd.xlane.f32.xlu0 %v1990
      %v1995 = vpop.xlane.xlu0 %1994
      %1996 = vadd.xlane.f32.xlu0 %v1991
      %v1997 = vpop.xlane.xlu0 %1996
      %1998 = vadd.xlane.f32.xlu0 %v1992
      %v1999 = vpop.xlane.xlu0 %1998
      %2000 = vadd.xlane.f32.xlu0 %v1993
      %v2001 = vpop.xlane.xlu0 %2000
      %v2002 = vmul.f32 %v1995, %v742
      %v2003 = vmul.f32 %v1997, %v742
      %v2004 = vmul.f32 %v1999, %v742
      %v2005 = vmul.f32 %v2001, %v742
      %v2006 = vadd.f32 %v2002, 1e-12
      %v2007 = vadd.f32 %v2003, 1e-12
      %v2008 = vadd.f32 %v2004, 1e-12
      %v2009 = vadd.f32 %v2005, 1e-12
      %v2010 = vrsqrt.pop %v2006
      %v2011 = vrsqrt.pop %v2007
      %v2012 = vrsqrt.pop %v2008
      %v2013 = vrsqrt.pop %v2009
      %v2014 = vmul.f32 %v1986, %v2010
      %v2015 = vmul.f32 %v1987, %v2011
      %v2016 = vmul.f32 %v1988, %v2012
      %v2017 = vmul.f32 %v1989, %v2013
      %v2019 = vlaneseq
      %v2020 = vshrl.u32 %v2019, 7
      %v2021 = vsub.s32 0, %v2020
      %v2022 = vrot.slane %v1972, %v2021
      %v2024 = vmul.f32 %v2014, %v2022
      %v2025 = vmul.f32 %v2015, %v2022
      %v2026 = vmul.f32 %v2016, %v2022
      %v2027 = vmul.f32 %v2017, %v2022
      %v2029 = vlaneseq
      %v2030 = vshrl.u32 %v2029, 7
      %v2031 = vsub.s32 0, %v2030
      %v2032 = vrot.slane %v1973, %v2031
      %v2034 = vadd.f32 %v2024, %v2032
      %v2035 = vadd.f32 %v2025, %v2032
      %v2036 = vadd.f32 %v2026, %v2032
      %v2037 = vadd.f32 %v2027, %v2032
      %v2038 = vpack.c.bf16 %v2035, %v2034
      %v2039 = vpack.c.bf16 %v2037, %v2036
      %v2040 = vld [vmem:[%s11] sm:$0xff]
      %v2041 = vld [vmem:[%s11 + $0x8] sm:$0xff]
      %v2042 = vld [vmem:[%s11 + $0x10] sm:$0xff]
      %v2043 = vld [vmem:[%s11 + $0x18] sm:$0xff]
      %v2044 = vld [vmem:[%s11 + $0x20] sm:$0xff]
      %v2045 = vld [vmem:[%s11 + $0x28] sm:$0xff]
      %v2046 = vld [vmem:[%s11 + $0x30] sm:$0xff]
      %v2047 = vld [vmem:[%s11 + $0x38] sm:$0xff]
      %v2048 = vld [vmem:[%s11 + $0x40] sm:$0xff]
      %v2049 = vld [vmem:[%s11 + $0x48] sm:$0xff]
      %v2050 = vld [vmem:[%s11 + $0x50] sm:$0xff]
      %v2051 = vld [vmem:[%s11 + $0x58] sm:$0xff]
      %v2052 = vld [vmem:[%s11 + $0x60] sm:$0xff]
      %v2053 = vld [vmem:[%s11 + $0x68] sm:$0xff]
      %v2054 = vld [vmem:[%s11 + $0x70] sm:$0xff]
      %v2055 = vld [vmem:[%s11 + $0x78] sm:$0xff]
      %v2056 = vld [vmem:[%s11 + $0x80] sm:$0xff]
      %v2057 = vld [vmem:[%s11 + $0x88] sm:$0xff]
      %v2058 = vld [vmem:[%s11 + $0x90] sm:$0xff]
      %v2059 = vld [vmem:[%s11 + $0x98] sm:$0xff]
      %v2060 = vld [vmem:[%s11 + $0xa0] sm:$0xff]
      %v2061 = vld [vmem:[%s11 + $0xa8] sm:$0xff]
      %v2062 = vld [vmem:[%s11 + $0xb0] sm:$0xff]
      %v2063 = vld [vmem:[%s11 + $0xb8] sm:$0xff]
      %v2064 = vld [vmem:[%s11 + $0xc0] sm:$0xff]
      %v2065 = vld [vmem:[%s11 + $0xc8] sm:$0xff]
      %v2066 = vld [vmem:[%s11 + $0xd0] sm:$0xff]
      %v2067 = vld [vmem:[%s11 + $0xd8] sm:$0xff]
      %v2068 = vld [vmem:[%s11 + $0xe0] sm:$0xff]
      %v2069 = vld [vmem:[%s11 + $0xe8] sm:$0xff]
      %v2070 = vld [vmem:[%s11 + $0xf0] sm:$0xff]
      %v2071 = vld [vmem:[%s11 + $0xf8] sm:$0xff]
      %v2072 = vld [vmem:[%s12] sm:$0xf]
      %v2074 = vlaneseq
      %v2075 = vshrl.u32 %v2074, 7
      %v2076 = vsub.s32 0, %v2075
      %v2077 = vrot.slane %v2072, %v2076
      %v2078 = vlaneseq
      %v2079 = vshrl.u32 %v2078, 7
      %v2080 = vsub.s32 1, %v2079
      %v2081 = vrot.slane %v2072, %v2080
      %v2082 = vlaneseq
      %v2083 = vshrl.u32 %v2082, 7
      %v2084 = vsub.s32 2, %v2083
      %v2085 = vrot.slane %v2072, %v2084
      %v2086 = vlaneseq
      %v2087 = vshrl.u32 %v2086, 7
      %v2088 = vsub.s32 3, %v2087
      %v2089 = vrot.slane %v2072, %v2088
      %v2126 = vunpack.c.l.b16 %v2040
      %v2127 = vunpack.c.h.b16 %v2040
      %v2128 = vunpack.c.l.b16 %v2041
      %v2129 = vunpack.c.h.b16 %v2041
      %v2130 = vunpack.c.l.b16 %v2042
      %v2131 = vunpack.c.h.b16 %v2042
      %v2132 = vunpack.c.l.b16 %v2043
      %v2133 = vunpack.c.h.b16 %v2043
      %v2134 = vunpack.c.l.b16 %v2044
      %v2135 = vunpack.c.h.b16 %v2044
      %v2136 = vunpack.c.l.b16 %v2045
      %v2137 = vunpack.c.h.b16 %v2045
      %v2138 = vunpack.c.l.b16 %v2046
      %v2139 = vunpack.c.h.b16 %v2046
      %v2140 = vunpack.c.l.b16 %v2047
      %v2141 = vunpack.c.h.b16 %v2047
      %v2142 = vunpack.c.l.b16 %v2048
      %v2143 = vunpack.c.h.b16 %v2048
      %v2144 = vunpack.c.l.b16 %v2049
      %v2145 = vunpack.c.h.b16 %v2049
      %v2146 = vunpack.c.l.b16 %v2050
      %v2147 = vunpack.c.h.b16 %v2050
      %v2148 = vunpack.c.l.b16 %v2051
      %v2149 = vunpack.c.h.b16 %v2051
      %v2150 = vunpack.c.l.b16 %v2052
      %v2151 = vunpack.c.h.b16 %v2052
      %v2152 = vunpack.c.l.b16 %v2053
      %v2153 = vunpack.c.h.b16 %v2053
      %v2154 = vunpack.c.l.b16 %v2054
      %v2155 = vunpack.c.h.b16 %v2054
      %v2156 = vunpack.c.l.b16 %v2055
      %v2157 = vunpack.c.h.b16 %v2055
      %v2158 = vunpack.c.l.b16 %v2056
      %v2159 = vunpack.c.h.b16 %v2056
      %v2160 = vunpack.c.l.b16 %v2057
      %v2161 = vunpack.c.h.b16 %v2057
      %v2162 = vunpack.c.l.b16 %v2058
      %v2163 = vunpack.c.h.b16 %v2058
      %v2164 = vunpack.c.l.b16 %v2059
      %v2165 = vunpack.c.h.b16 %v2059
      %v2166 = vunpack.c.l.b16 %v2060
      %v2167 = vunpack.c.h.b16 %v2060
      %v2168 = vunpack.c.l.b16 %v2061
      %v2169 = vunpack.c.h.b16 %v2061
      %v2170 = vunpack.c.l.b16 %v2062
      %v2171 = vunpack.c.h.b16 %v2062
      %v2172 = vunpack.c.l.b16 %v2063
      %v2173 = vunpack.c.h.b16 %v2063
      %v2174 = vunpack.c.l.b16 %v2064
      %v2175 = vunpack.c.h.b16 %v2064
      %v2176 = vunpack.c.l.b16 %v2065
      %v2177 = vunpack.c.h.b16 %v2065
      %v2178 = vunpack.c.l.b16 %v2066
      %v2179 = vunpack.c.h.b16 %v2066
      %v2180 = vunpack.c.l.b16 %v2067
      %v2181 = vunpack.c.h.b16 %v2067
      %v2182 = vunpack.c.l.b16 %v2068
      %v2183 = vunpack.c.h.b16 %v2068
      %v2184 = vunpack.c.l.b16 %v2069
      %v2185 = vunpack.c.h.b16 %v2069
      %v2186 = vunpack.c.l.b16 %v2070
      %v2187 = vunpack.c.h.b16 %v2070
      %v2188 = vunpack.c.l.b16 %v2071
      %v2189 = vunpack.c.h.b16 %v2071
      %v2190 = vpack.c.b16 %v2130, %v2126
      %v2191 = vpack.c.b16 %v2131, %v2127
      %v2192 = vpack.c.b16 %v2132, %v2128
      %v2193 = vpack.c.b16 %v2133, %v2129
      %v2194 = vpack.c.b16 %v2138, %v2134
      %v2195 = vpack.c.b16 %v2139, %v2135
      %v2196 = vpack.c.b16 %v2140, %v2136
      %v2197 = vpack.c.b16 %v2141, %v2137
      %v2198 = vpack.c.b16 %v2146, %v2142
      %v2199 = vpack.c.b16 %v2147, %v2143
      %v2200 = vpack.c.b16 %v2148, %v2144
      %v2201 = vpack.c.b16 %v2149, %v2145
      %v2202 = vpack.c.b16 %v2154, %v2150
      %v2203 = vpack.c.b16 %v2155, %v2151
      %v2204 = vpack.c.b16 %v2156, %v2152
      %v2205 = vpack.c.b16 %v2157, %v2153
      %v2206 = vpack.c.b16 %v2162, %v2158
      %v2207 = vpack.c.b16 %v2163, %v2159
      %v2208 = vpack.c.b16 %v2164, %v2160
      %v2209 = vpack.c.b16 %v2165, %v2161
      %v2210 = vpack.c.b16 %v2170, %v2166
      %v2211 = vpack.c.b16 %v2171, %v2167
      %v2212 = vpack.c.b16 %v2172, %v2168
      %v2213 = vpack.c.b16 %v2173, %v2169
      %v2214 = vpack.c.b16 %v2178, %v2174
      %v2215 = vpack.c.b16 %v2179, %v2175
      %v2216 = vpack.c.b16 %v2180, %v2176
      %v2217 = vpack.c.b16 %v2181, %v2177
      %v2218 = vpack.c.b16 %v2186, %v2182
      %v2219 = vpack.c.b16 %v2187, %v2183
      %v2220 = vpack.c.b16 %v2188, %v2184
      %v2221 = vpack.c.b16 %v2189, %v2185
      %2254 = vmatprep.subr.bf16.mxu0 %v2191
      %2255 = vmatpush1.bf16.msra.mxu0 %v2190
      %2256 = vmatprep.subr.bf16.mxu0 %v2195
      %2257 = vmatpush1.bf16.msra.mxu0 %v2194
      %2258 = vmatprep.subr.bf16.mxu0 %v2199
      %2259 = vmatpush1.bf16.msra.mxu0 %v2198
      %2260 = vmatprep.subr.bf16.mxu0 %v2203
      %2261 = vmatpush1.bf16.msra.mxu0 %v2202
      %2262 = vmatprep.subr.bf16.mxu0 %v2207
      %2263 = vmatpush1.bf16.msra.mxu0 %v2206
      %2264 = vmatprep.subr.bf16.mxu0 %v2211
      %2265 = vmatpush1.bf16.msra.mxu0 %v2210
      %2266 = vmatprep.subr.bf16.mxu0 %v2215
      %2267 = vmatpush1.bf16.msra.mxu0 %v2214
      %2268 = vmatprep.subr.bf16.mxu0 %v2219
      %2269 = vmatpush1.bf16.msra.mxu0 %v2218
      %2270 = vmatprep.subr.bf16.mxu0 0
      %2271 = vmatpush1.bf16.msra.mxu0 0
      %2272 = vmatprep.subr.bf16.mxu0 0
      %2273 = vmatpush1.bf16.msra.mxu0 0
      %2274 = vmatprep.subr.bf16.mxu0 0
      %2275 = vmatpush1.bf16.msra.mxu0 0
      %2276 = vmatprep.subr.bf16.mxu0 0
      %2277 = vmatpush1.bf16.msra.mxu0 0
      %2278 = vmatprep.subr.bf16.mxu0 0
      %2279 = vmatpush1.bf16.msra.mxu0 0
      %2280 = vmatprep.subr.bf16.mxu0 0
      %2281 = vmatpush1.bf16.msra.mxu0 0
      %2282 = vmatprep.subr.bf16.mxu0 0
      %2283 = vmatpush1.bf16.msra.mxu0 0
      %2284 = vmatprep.subr.bf16.mxu0 0
      %2285 = vmatpush1.bf16.msra.mxu0 0
      %2286 = vmatprep.mubr.bf16.mxu0 0
      %2287 = vmatmul.mubr.bf16.gmra.mrb[0].mxu0 %v2038
      %v2288 = vpop.f32.mrb[0].mxu0
      %v2289 = vadd.f32 %v2077, %v2288
      %v2290 = vpop.f32.mrb[0].mxu0
      %v2291 = vadd.f32 %v2081, %v2290
      %v2292 = vpop.f32.mrb[0].mxu0
      %v2293 = vadd.f32 %v2077, %v2292
      %v2294 = vpop.f32.mrb[0].mxu0
      %v2295 = vadd.f32 %v2081, %v2294
      %2296 = vmatprep.mubr.bf16.mxu0 0
      %2297 = vmatmul.mubr.bf16.gmra.mrb[0].mxu0 %v2039
      %v2298 = vpop.f32.mrb[0].mxu0
      %v2299 = vadd.f32 %v2077, %v2298
      %v2300 = vpop.f32.mrb[0].mxu0
      %v2301 = vadd.f32 %v2081, %v2300
      %v2302 = vpop.f32.mrb[0].mxu0
      %v2303 = vadd.f32 %v2077, %v2302
      %v2304 = vpop.f32.mrb[0].mxu0
      %v2305 = vadd.f32 %v2081, %v2304
      %2306 = vdwg.mxu0
      %2307 = vmatprep.subr.bf16.mxu0 %v2193
      %2308 = vmatpush1.bf16.msra.mxu0 %v2192
      %2309 = vmatprep.subr.bf16.mxu0 %v2197
      %2310 = vmatpush1.bf16.msra.mxu0 %v2196
      %2311 = vmatprep.subr.bf16.mxu0 %v2201
      %2312 = vmatpush1.bf16.msra.mxu0 %v2200
      %2313 = vmatprep.subr.bf16.mxu0 %v2205
      %2314 = vmatpush1.bf16.msra.mxu0 %v2204
      %2315 = vmatprep.subr.bf16.mxu0 %v2209
      %2316 = vmatpush1.bf16.msra.mxu0 %v2208
      %2317 = vmatprep.subr.bf16.mxu0 %v2213
      %2318 = vmatpush1.bf16.msra.mxu0 %v2212
      %2319 = vmatprep.subr.bf16.mxu0 %v2217
      %2320 = vmatpush1.bf16.msra.mxu0 %v2216
      %2321 = vmatprep.subr.bf16.mxu0 %v2221
      %2322 = vmatpush1.bf16.msra.mxu0 %v2220
      %2323 = vmatprep.subr.bf16.mxu0 0
      %2324 = vmatpush1.bf16.msra.mxu0 0
      %2325 = vmatprep.subr.bf16.mxu0 0
      %2326 = vmatpush1.bf16.msra.mxu0 0
      %2327 = vmatprep.subr.bf16.mxu0 0
      %2328 = vmatpush1.bf16.msra.mxu0 0
      %2329 = vmatprep.subr.bf16.mxu0 0
      %2330 = vmatpush1.bf16.msra.mxu0 0
      %2331 = vmatprep.subr.bf16.mxu0 0
      %2332 = vmatpush1.bf16.msra.mxu0 0
      %2333 = vmatprep.subr.bf16.mxu0 0
      %2334 = vmatpush1.bf16.msra.mxu0 0
      %2335 = vmatprep.subr.bf16.mxu0 0
      %2336 = vmatpush1.bf16.msra.mxu0 0
      %2337 = vmatprep.subr.bf16.mxu0 0
      %2338 = vmatpush1.bf16.msra.mxu0 0
      %2339 = vmatprep.mubr.bf16.mxu0 0
      %2340 = vmatmul.mubr.bf16.gmra.mrb[0].mxu0 %v2038
      %v2341 = vpop.f32.mrb[0].mxu0
      %v2342 = vadd.f32 %v2085, %v2341
      %v2343 = vpop.f32.mrb[0].mxu0
      %v2344 = vadd.f32 %v2089, %v2343
      %v2345 = vpop.f32.mrb[0].mxu0
      %v2346 = vadd.f32 %v2085, %v2345
      %v2347 = vpop.f32.mrb[0].mxu0
      %v2348 = vadd.f32 %v2089, %v2347
      %2349 = vmatprep.mubr.bf16.mxu0 0
      %2350 = vmatmul.mubr.bf16.gmra.mrb[0].mxu0 %v2039
      %v2351 = vpop.f32.mrb[0].mxu0
      %v2352 = vadd.f32 %v2085, %v2351
      %v2353 = vpop.f32.mrb[0].mxu0
      %v2354 = vadd.f32 %v2089, %v2353
      %v2355 = vpop.f32.mrb[0].mxu0
      %v2356 = vadd.f32 %v2085, %v2355
      %v2357 = vpop.f32.mrb[0].mxu0
      %v2358 = vadd.f32 %v2089, %v2357
      %2359 = vdwg.mxu0
      %v2360 = vmul.f32 %v2289, 0.5
      %v2361 = vmul.f32 %v2291, 0.5
      %v2362 = vmul.f32 %v2342, 0.5
      %v2363 = vmul.f32 %v2344, 0.5
      %v2364 = vmul.f32 %v2293, 0.5
      %v2365 = vmul.f32 %v2295, 0.5
      %v2366 = vmul.f32 %v2346, 0.5
      %v2367 = vmul.f32 %v2348, 0.5
      %v2368 = vmul.f32 %v2299, 0.5
      %v2369 = vmul.f32 %v2301, 0.5
      %v2370 = vmul.f32 %v2352, 0.5
      %v2371 = vmul.f32 %v2354, 0.5
      %v2372 = vmul.f32 %v2303, 0.5
      %v2373 = vmul.f32 %v2305, 0.5
      %v2374 = vmul.f32 %v2356, 0.5
      %v2375 = vmul.f32 %v2358, 0.5
      %v2376 = vmul.f32 %v2289, 0.70710677
      %v2377 = vmul.f32 %v2291, 0.70710677
      %v2378 = vmul.f32 %v2342, 0.70710677
      %v2379 = vmul.f32 %v2344, 0.70710677
      %v2380 = vmul.f32 %v2293, 0.70710677
      %v2381 = vmul.f32 %v2295, 0.70710677
      %v2382 = vmul.f32 %v2346, 0.70710677
      %v2383 = vmul.f32 %v2348, 0.70710677
      %v2384 = vmul.f32 %v2299, 0.70710677
      %v2385 = vmul.f32 %v2301, 0.70710677
      %v2386 = vmul.f32 %v2352, 0.70710677
      %v2387 = vmul.f32 %v2354, 0.70710677
      %v2388 = vmul.f32 %v2303, 0.70710677
      %v2389 = vmul.f32 %v2305, 0.70710677
      %v2390 = vmul.f32 %v2356, 0.70710677
      %v2391 = vmul.f32 %v2358, 0.70710677
      %v2392 = verf.f32.pop %v2376
      %v2393 = verf.f32.pop %v2377
      %v2394 = verf.f32.pop %v2378
      %v2395 = verf.f32.pop %v2379
      %v2396 = verf.f32.pop %v2380
      %v2397 = verf.f32.pop %v2381
      %v2398 = verf.f32.pop %v2382
      %v2399 = verf.f32.pop %v2383
      %v2400 = verf.f32.pop %v2384
      %v2401 = verf.f32.pop %v2385
      %v2402 = verf.f32.pop %v2386
      %v2403 = verf.f32.pop %v2387
      %v2404 = verf.f32.pop %v2388
      %v2405 = verf.f32.pop %v2389
      %v2406 = verf.f32.pop %v2390
      %v2407 = verf.f32.pop %v2391
      %v2408 = vadd.f32 %v2392, 1.0
      %v2409 = vadd.f32 %v2393, 1.0
      %v2410 = vadd.f32 %v2394, 1.0
      %v2411 = vadd.f32 %v2395, 1.0
      %v2412 = vadd.f32 %v2396, 1.0
      %v2413 = vadd.f32 %v2397, 1.0
      %v2414 = vadd.f32 %v2398, 1.0
      %v2415 = vadd.f32 %v2399, 1.0
      %v2416 = vadd.f32 %v2400, 1.0
      %v2417 = vadd.f32 %v2401, 1.0
      %v2418 = vadd.f32 %v2402, 1.0
      %v2419 = vadd.f32 %v2403, 1.0
      %v2420 = vadd.f32 %v2404, 1.0
      %v2421 = vadd.f32 %v2405, 1.0
      %v2422 = vadd.f32 %v2406, 1.0
      %v2423 = vadd.f32 %v2407, 1.0
      %v2424 = vmul.f32 %v2360, %v2408
      %v2425 = vmul.f32 %v2361, %v2409
      %v2426 = vmul.f32 %v2362, %v2410
      %v2427 = vmul.f32 %v2363, %v2411
      %v2428 = vmul.f32 %v2364, %v2412
      %v2429 = vmul.f32 %v2365, %v2413
      %v2430 = vmul.f32 %v2366, %v2414
      %v2431 = vmul.f32 %v2367, %v2415
      %v2432 = vmul.f32 %v2368, %v2416
      %v2433 = vmul.f32 %v2369, %v2417
      %v2434 = vmul.f32 %v2370, %v2418
      %v2435 = vmul.f32 %v2371, %v2419
      %v2436 = vmul.f32 %v2372, %v2420
      %v2437 = vmul.f32 %v2373, %v2421
      %v2438 = vmul.f32 %v2374, %v2422
      %v2439 = vmul.f32 %v2375, %v2423
      %v2440 = vpack.c.bf16 %v2428, %v2424
      %v2441 = vpack.c.bf16 %v2429, %v2425
      %v2442 = vpack.c.bf16 %v2430, %v2426
      %v2443 = vpack.c.bf16 %v2431, %v2427
      %v2444 = vpack.c.bf16 %v2436, %v2432
      %v2445 = vpack.c.bf16 %v2437, %v2433
      %v2446 = vpack.c.bf16 %v2438, %v2434
      %v2447 = vpack.c.bf16 %v2439, %v2435
      %v2448 = vld [vmem:[%s13] sm:$0xf]
      %v2449 = vld [vmem:[%s13 + $0x4] sm:$0xf]
      %v2450 = vld [vmem:[%s13 + $0x8] sm:$0xf]
      %v2451 = vld [vmem:[%s13 + $0xc] sm:$0xf]
      %v2452 = vld [vmem:[%s13 + $0x10] sm:$0xf]
      %v2453 = vld [vmem:[%s13 + $0x14] sm:$0xf]
      %v2454 = vld [vmem:[%s13 + $0x18] sm:$0xf]
      %v2455 = vld [vmem:[%s13 + $0x1c] sm:$0xf]
      %v2456 = vld [vmem:[%s13 + $0x20] sm:$0xf]
      %v2457 = vld [vmem:[%s13 + $0x24] sm:$0xf]
      %v2458 = vld [vmem:[%s13 + $0x28] sm:$0xf]
      %v2459 = vld [vmem:[%s13 + $0x2c] sm:$0xf]
      %v2460 = vld [vmem:[%s13 + $0x30] sm:$0xf]
      %v2461 = vld [vmem:[%s13 + $0x34] sm:$0xf]
      %v2462 = vld [vmem:[%s13 + $0x38] sm:$0xf]
      %v2463 = vld [vmem:[%s13 + $0x3c] sm:$0xf]
      %v2464 = vld [vmem:[%s13 + $0x40] sm:$0xf]
      %v2465 = vld [vmem:[%s13 + $0x44] sm:$0xf]
      %v2466 = vld [vmem:[%s13 + $0x48] sm:$0xf]
      %v2467 = vld [vmem:[%s13 + $0x4c] sm:$0xf]
      %v2468 = vld [vmem:[%s13 + $0x50] sm:$0xf]
      %v2469 = vld [vmem:[%s13 + $0x54] sm:$0xf]
      %v2470 = vld [vmem:[%s13 + $0x58] sm:$0xf]
      %v2471 = vld [vmem:[%s13 + $0x5c] sm:$0xf]
      %v2472 = vld [vmem:[%s13 + $0x60] sm:$0xf]
      %v2473 = vld [vmem:[%s13 + $0x64] sm:$0xf]
      %v2474 = vld [vmem:[%s13 + $0x68] sm:$0xf]
      %v2475 = vld [vmem:[%s13 + $0x6c] sm:$0xf]
      %v2476 = vld [vmem:[%s13 + $0x70] sm:$0xf]
      %v2477 = vld [vmem:[%s13 + $0x74] sm:$0xf]
      %v2478 = vld [vmem:[%s13 + $0x78] sm:$0xf]
      %v2479 = vld [vmem:[%s13 + $0x7c] sm:$0xf]
      %v2480 = vld [vmem:[%s13 + $0x80] sm:$0xf]
      %v2481 = vld [vmem:[%s13 + $0x84] sm:$0xf]
      %v2482 = vld [vmem:[%s13 + $0x88] sm:$0xf]
      %v2483 = vld [vmem:[%s13 + $0x8c] sm:$0xf]
      %v2484 = vld [vmem:[%s13 + $0x90] sm:$0xf]
      %v2485 = vld [vmem:[%s13 + $0x94] sm:$0xf]
      %v2486 = vld [vmem:[%s13 + $0x98] sm:$0xf]
      %v2487 = vld [vmem:[%s13 + $0x9c] sm:$0xf]
      %v2488 = vld [vmem:[%s13 + $0xa0] sm:$0xf]
      %v2489 = vld [vmem:[%s13 + $0xa4] sm:$0xf]
      %v2490 = vld [vmem:[%s13 + $0xa8] sm:$0xf]
      %v2491 = vld [vmem:[%s13 + $0xac] sm:$0xf]
      %v2492 = vld [vmem:[%s13 + $0xb0] sm:$0xf]
      %v2493 = vld [vmem:[%s13 + $0xb4] sm:$0xf]
      %v2494 = vld [vmem:[%s13 + $0xb8] sm:$0xf]
      %v2495 = vld [vmem:[%s13 + $0xbc] sm:$0xf]
      %v2496 = vld [vmem:[%s13 + $0xc0] sm:$0xf]
      %v2497 = vld [vmem:[%s13 + $0xc4] sm:$0xf]
      %v2498 = vld [vmem:[%s13 + $0xc8] sm:$0xf]
      %v2499 = vld [vmem:[%s13 + $0xcc] sm:$0xf]
      %v2500 = vld [vmem:[%s13 + $0xd0] sm:$0xf]
      %v2501 = vld [vmem:[%s13 + $0xd4] sm:$0xf]
      %v2502 = vld [vmem:[%s13 + $0xd8] sm:$0xf]
      %v2503 = vld [vmem:[%s13 + $0xdc] sm:$0xf]
      %v2504 = vld [vmem:[%s13 + $0xe0] sm:$0xf]
      %v2505 = vld [vmem:[%s13 + $0xe4] sm:$0xf]
      %v2506 = vld [vmem:[%s13 + $0xe8] sm:$0xf]
      %v2507 = vld [vmem:[%s13 + $0xec] sm:$0xf]
      %v2508 = vld [vmem:[%s13 + $0xf0] sm:$0xf]
      %v2509 = vld [vmem:[%s13 + $0xf4] sm:$0xf]
      %v2510 = vld [vmem:[%s13 + $0xf8] sm:$0xf]
      %v2511 = vld [vmem:[%s13 + $0xfc] sm:$0xf]
      %v2576 = vunpack.c.l.b16 %v2448
      %v2577 = vunpack.c.l.b16 %v2449
      %v2578 = vunpack.c.l.b16 %v2450
      %v2579 = vunpack.c.l.b16 %v2451
      %v2580 = vunpack.c.l.b16 %v2452
      %v2581 = vunpack.c.l.b16 %v2453
      %v2582 = vunpack.c.l.b16 %v2454
      %v2583 = vunpack.c.l.b16 %v2455
      %v2584 = vunpack.c.l.b16 %v2456
      %v2585 = vunpack.c.l.b16 %v2457
      %v2586 = vunpack.c.l.b16 %v2458
      %v2587 = vunpack.c.l.b16 %v2459
      %v2588 = vunpack.c.l.b16 %v2460
      %v2589 = vunpack.c.l.b16 %v2461
      %v2590 = vunpack.c.l.b16 %v2462
      %v2591 = vunpack.c.l.b16 %v2463
      %v2592 = vunpack.c.l.b16 %v2464
      %v2593 = vunpack.c.l.b16 %v2465
      %v2594 = vunpack.c.l.b16 %v2466
      %v2595 = vunpack.c.l.b16 %v2467
      %v2596 = vunpack.c.l.b16 %v2468
      %v2597 = vunpack.c.l.b16 %v2469
      %v2598 = vunpack.c.l.b16 %v2470
      %v2599 = vunpack.c.l.b16 %v2471
      %v2600 = vunpack.c.l.b16 %v2472
      %v2601 = vunpack.c.l.b16 %v2473
      %v2602 = vunpack.c.l.b16 %v2474
      %v2603 = vunpack.c.l.b16 %v2475
      %v2604 = vunpack.c.l.b16 %v2476
      %v2605 = vunpack.c.l.b16 %v2477
      %v2606 = vunpack.c.l.b16 %v2478
      %v2607 = vunpack.c.l.b16 %v2479
      %v2608 = vunpack.c.l.b16 %v2480
      %v2609 = vunpack.c.l.b16 %v2481
      %v2610 = vunpack.c.l.b16 %v2482
      %v2611 = vunpack.c.l.b16 %v2483
      %v2612 = vunpack.c.l.b16 %v2484
      %v2613 = vunpack.c.l.b16 %v2485
      %v2614 = vunpack.c.l.b16 %v2486
      %v2615 = vunpack.c.l.b16 %v2487
      %v2616 = vunpack.c.l.b16 %v2488
      %v2617 = vunpack.c.l.b16 %v2489
      %v2618 = vunpack.c.l.b16 %v2490
      %v2619 = vunpack.c.l.b16 %v2491
      %v2620 = vunpack.c.l.b16 %v2492
      %v2621 = vunpack.c.l.b16 %v2493
      %v2622 = vunpack.c.l.b16 %v2494
      %v2623 = vunpack.c.l.b16 %v2495
      %v2624 = vunpack.c.l.b16 %v2496
      %v2625 = vunpack.c.l.b16 %v2497
      %v2626 = vunpack.c.l.b16 %v2498
      %v2627 = vunpack.c.l.b16 %v2499
      %v2628 = vunpack.c.l.b16 %v2500
      %v2629 = vunpack.c.l.b16 %v2501
      %v2630 = vunpack.c.l.b16 %v2502
      %v2631 = vunpack.c.l.b16 %v2503
      %v2632 = vunpack.c.l.b16 %v2504
      %v2633 = vunpack.c.l.b16 %v2505
      %v2634 = vunpack.c.l.b16 %v2506
      %v2635 = vunpack.c.l.b16 %v2507
      %v2636 = vunpack.c.l.b16 %v2508
      %v2637 = vunpack.c.l.b16 %v2509
      %v2638 = vunpack.c.l.b16 %v2510
      %v2639 = vunpack.c.l.b16 %v2511
      %v2640 = vpack.c.b16 %v2577, %v2576
      %v2641 = vpack.c.b16 %v2579, %v2578
      %v2642 = vpack.c.b16 %v2581, %v2580
      %v2643 = vpack.c.b16 %v2583, %v2582
      %v2644 = vpack.c.b16 %v2585, %v2584
      %v2645 = vpack.c.b16 %v2587, %v2586
      %v2646 = vpack.c.b16 %v2589, %v2588
      %v2647 = vpack.c.b16 %v2591, %v2590
      %v2648 = vpack.c.b16 %v2593, %v2592
      %v2649 = vpack.c.b16 %v2595, %v2594
      %v2650 = vpack.c.b16 %v2597, %v2596
      %v2651 = vpack.c.b16 %v2599, %v2598
      %v2652 = vpack.c.b16 %v2601, %v2600
      %v2653 = vpack.c.b16 %v2603, %v2602
      %v2654 = vpack.c.b16 %v2605, %v2604
      %v2655 = vpack.c.b16 %v2607, %v2606
      %v2656 = vpack.c.b16 %v2609, %v2608
      %v2657 = vpack.c.b16 %v2611, %v2610
      %v2658 = vpack.c.b16 %v2613, %v2612
      %v2659 = vpack.c.b16 %v2615, %v2614
      %v2660 = vpack.c.b16 %v2617, %v2616
      %v2661 = vpack.c.b16 %v2619, %v2618
      %v2662 = vpack.c.b16 %v2621, %v2620
      %v2663 = vpack.c.b16 %v2623, %v2622
      %v2664 = vpack.c.b16 %v2625, %v2624
      %v2665 = vpack.c.b16 %v2627, %v2626
      %v2666 = vpack.c.b16 %v2629, %v2628
      %v2667 = vpack.c.b16 %v2631, %v2630
      %v2668 = vpack.c.b16 %v2633, %v2632
      %v2669 = vpack.c.b16 %v2635, %v2634
      %v2670 = vpack.c.b16 %v2637, %v2636
      %v2671 = vpack.c.b16 %v2639, %v2638
      %2704 = vmatprep.subr.bf16.mxu0 0
      %2705 = vmatpush1.bf16.msra.mxu0 %v2640
      %2706 = vmatprep.subr.bf16.mxu0 0
      %2707 = vmatpush1.bf16.msra.mxu0 %v2641
      %2708 = vmatprep.subr.bf16.mxu0 0
      %2709 = vmatpush1.bf16.msra.mxu0 %v2642
      %2710 = vmatprep.subr.bf16.mxu0 0
      %2711 = vmatpush1.bf16.msra.mxu0 %v2643
      %2712 = vmatprep.subr.bf16.mxu0 0
      %2713 = vmatpush1.bf16.msra.mxu0 %v2644
      %2714 = vmatprep.subr.bf16.mxu0 0
      %2715 = vmatpush1.bf16.msra.mxu0 %v2645
      %2716 = vmatprep.subr.bf16.mxu0 0
      %2717 = vmatpush1.bf16.msra.mxu0 %v2646
      %2718 = vmatprep.subr.bf16.mxu0 0
      %2719 = vmatpush1.bf16.msra.mxu0 %v2647
      %2720 = vmatprep.subr.bf16.mxu0 0
      %2721 = vmatpush1.bf16.msra.mxu0 %v2648
      %2722 = vmatprep.subr.bf16.mxu0 0
      %2723 = vmatpush1.bf16.msra.mxu0 %v2649
      %2724 = vmatprep.subr.bf16.mxu0 0
      %2725 = vmatpush1.bf16.msra.mxu0 %v2650
      %2726 = vmatprep.subr.bf16.mxu0 0
      %2727 = vmatpush1.bf16.msra.mxu0 %v2651
      %2728 = vmatprep.subr.bf16.mxu0 0
      %2729 = vmatpush1.bf16.msra.mxu0 %v2652
      %2730 = vmatprep.subr.bf16.mxu0 0
      %2731 = vmatpush1.bf16.msra.mxu0 %v2653
      %2732 = vmatprep.subr.bf16.mxu0 0
      %2733 = vmatpush1.bf16.msra.mxu0 %v2654
      %2734 = vmatprep.subr.bf16.mxu0 0
      %2735 = vmatpush1.bf16.msra.mxu0 %v2655
      %2736 = vmatprep.mubr.bf16.mxu0 %v2441
      %2737 = vmatmul.mubr.bf16.gmra.mrb[0].mxu0 %v2440
      %v2738 = vpop.f32.mrb[0].mxu0
      %v2739 = vadd.f32 0.0, %v2738
      %v2740 = vpop.f32.mrb[0].mxu0
      %v2741 = vpop.f32.mrb[0].mxu0
      %v2742 = vadd.f32 0.0, %v2741
      %v2743 = vpop.f32.mrb[0].mxu0
      %2744 = vmatprep.mubr.bf16.mxu0 %v2445
      %2745 = vmatmul.mubr.bf16.gmra.mrb[0].mxu0 %v2444
      %v2746 = vpop.f32.mrb[0].mxu0
      %v2747 = vadd.f32 0.0, %v2746
      %v2748 = vpop.f32.mrb[0].mxu0
      %v2749 = vpop.f32.mrb[0].mxu0
      %v2750 = vadd.f32 0.0, %v2749
      %v2751 = vpop.f32.mrb[0].mxu0
      %2752 = vdwg.mxu0
      %2753 = vmatprep.subr.bf16.mxu0 0
      %2754 = vmatpush1.bf16.msra.mxu0 %v2656
      %2755 = vmatprep.subr.bf16.mxu0 0
      %2756 = vmatpush1.bf16.msra.mxu0 %v2657
      %2757 = vmatprep.subr.bf16.mxu0 0
      %2758 = vmatpush1.bf16.msra.mxu0 %v2658
      %2759 = vmatprep.subr.bf16.mxu0 0
      %2760 = vmatpush1.bf16.msra.mxu0 %v2659
      %2761 = vmatprep.subr.bf16.mxu0 0
      %2762 = vmatpush1.bf16.msra.mxu0 %v2660
      %2763 = vmatprep.subr.bf16.mxu0 0
      %2764 = vmatpush1.bf16.msra.mxu0 %v2661
      %2765 = vmatprep.subr.bf16.mxu0 0
      %2766 = vmatpush1.bf16.msra.mxu0 %v2662
      %2767 = vmatprep.subr.bf16.mxu0 0
      %2768 = vmatpush1.bf16.msra.mxu0 %v2663
      %2769 = vmatprep.subr.bf16.mxu0 0
      %2770 = vmatpush1.bf16.msra.mxu0 %v2664
      %2771 = vmatprep.subr.bf16.mxu0 0
      %2772 = vmatpush1.bf16.msra.mxu0 %v2665
      %2773 = vmatprep.subr.bf16.mxu0 0
      %2774 = vmatpush1.bf16.msra.mxu0 %v2666
      %2775 = vmatprep.subr.bf16.mxu0 0
      %2776 = vmatpush1.bf16.msra.mxu0 %v2667
      %2777 = vmatprep.subr.bf16.mxu0 0
      %2778 = vmatpush1.bf16.msra.mxu0 %v2668
      %2779 = vmatprep.subr.bf16.mxu0 0
      %2780 = vmatpush1.bf16.msra.mxu0 %v2669
      %2781 = vmatprep.subr.bf16.mxu0 0
      %2782 = vmatpush1.bf16.msra.mxu0 %v2670
      %2783 = vmatprep.subr.bf16.mxu0 0
      %2784 = vmatpush1.bf16.msra.mxu0 %v2671
      %2785 = vmatprep.mubr.bf16.mxu0 %v2443
      %2786 = vmatmul.mubr.bf16.gmra.mrb[0].mxu0 %v2442
      %v2787 = vpop.f32.mrb[0].mxu0
      %v2788 = vadd.f32 %v2739, %v2787
      %v2789 = vpop.f32.mrb[0].mxu0
      %v2790 = vpop.f32.mrb[0].mxu0
      %v2791 = vadd.f32 %v2742, %v2790
      %v2792 = vpop.f32.mrb[0].mxu0
      %2793 = vmatprep.mubr.bf16.mxu0 %v2447
      %2794 = vmatmul.mubr.bf16.gmra.mrb[0].mxu0 %v2446
      %v2795 = vpop.f32.mrb[0].mxu0
      %v2796 = vadd.f32 %v2747, %v2795
      %v2797 = vpop.f32.mrb[0].mxu0
      %v2798 = vpop.f32.mrb[0].mxu0
      %v2799 = vadd.f32 %v2750, %v2798
      %v2800 = vpop.f32.mrb[0].mxu0
      %2801 = vdwg.mxu0
      %v2802 = vadd.f32 %v1968, %v2788
      %v2803 = vadd.f32 %v1969, %v2791
      %v2804 = vadd.f32 %v1970, %v2796
      %v2805 = vadd.f32 %v1971, %v2799
      %v2806 = vld [vmem:[%s14] sm:$0x1]
      %v2808 = vlaneseq
      %v2809 = vshrl.u32 %v2808, 7
      %v2810 = vsub.s32 0, %v2809
      %v2811 = vrot.slane %v2806, %v2810
      %v2813 = vadd.f32 %v2802, %v2811
      %v2814 = vadd.f32 %v2803, %v2811
      %v2815 = vadd.f32 %v2804, %v2811
      %v2816 = vadd.f32 %v2805, %v2811
      %s2817 = scalar_lea.vmem %s3, 1
      %v2818 = vld [vmem:[%s2817] sm:$0x1]
      %s2819 = scalar_lea.vmem %s4, 1
      %v2820 = vld [vmem:[%s2819] sm:$0x1]
      %2821 = vadd.xlane.f32.xlu0 %v2813
      %v2822 = vpop.xlane.xlu0 %2821
      %2823 = vadd.xlane.f32.xlu0 %v2814
      %v2824 = vpop.xlane.xlu0 %2823
      %2825 = vadd.xlane.f32.xlu0 %v2815
      %v2826 = vpop.xlane.xlu0 %2825
      %2827 = vadd.xlane.f32.xlu0 %v2816
      %v2828 = vpop.xlane.xlu0 %2827
      %v2829 = vmul.f32 %v2822, %v742
      %v2830 = vmul.f32 %v2824, %v742
      %v2831 = vmul.f32 %v2826, %v742
      %v2832 = vmul.f32 %v2828, %v742
      %v2833 = vsub.f32 %v2813, %v2829
      %v2834 = vsub.f32 %v2814, %v2830
      %v2835 = vsub.f32 %v2815, %v2831
      %v2836 = vsub.f32 %v2816, %v2832
      %v2837 = vmul.f32 %v2833, %v2833
      %v2838 = vmul.f32 %v2834, %v2834
      %v2839 = vmul.f32 %v2835, %v2835
      %v2840 = vmul.f32 %v2836, %v2836
      %2841 = vadd.xlane.f32.xlu0 %v2837
      %v2842 = vpop.xlane.xlu0 %2841
      %2843 = vadd.xlane.f32.xlu0 %v2838
      %v2844 = vpop.xlane.xlu0 %2843
      %2845 = vadd.xlane.f32.xlu0 %v2839
      %v2846 = vpop.xlane.xlu0 %2845
      %2847 = vadd.xlane.f32.xlu0 %v2840
      %v2848 = vpop.xlane.xlu0 %2847
      %v2849 = vmul.f32 %v2842, %v742
      %v2850 = vmul.f32 %v2844, %v742
      %v2851 = vmul.f32 %v2846, %v742
      %v2852 = vmul.f32 %v2848, %v742
      %v2853 = vadd.f32 %v2849, 1e-12
      %v2854 = vadd.f32 %v2850, 1e-12
      %v2855 = vadd.f32 %v2851, 1e-12
      %v2856 = vadd.f32 %v2852, 1e-12
      %v2857 = vrsqrt.pop %v2853
      %v2858 = vrsqrt.pop %v2854
      %v2859 = vrsqrt.pop %v2855
      %v2860 = vrsqrt.pop %v2856
      %v2861 = vmul.f32 %v2833, %v2857
      %v2862 = vmul.f32 %v2834, %v2858
      %v2863 = vmul.f32 %v2835, %v2859
      %v2864 = vmul.f32 %v2836, %v2860
      %v2866 = vlaneseq
      %v2867 = vshrl.u32 %v2866, 7
      %v2868 = vsub.s32 0, %v2867
      %v2869 = vrot.slane %v2818, %v2868
      %v2871 = vmul.f32 %v2861, %v2869
      %v2872 = vmul.f32 %v2862, %v2869
      %v2873 = vmul.f32 %v2863, %v2869
      %v2874 = vmul.f32 %v2864, %v2869
      %v2876 = vlaneseq
      %v2877 = vshrl.u32 %v2876, 7
      %v2878 = vsub.s32 0, %v2877
      %v2879 = vrot.slane %v2820, %v2878
      %v2881 = vadd.f32 %v2871, %v2879
      %v2882 = vadd.f32 %v2872, %v2879
      %v2883 = vadd.f32 %v2873, %v2879
      %v2884 = vadd.f32 %v2874, %v2879
      %v2885 = vpack.c.bf16 %v2882, %v2881
      %v2886 = vpack.c.bf16 %v2884, %v2883
      %s2887 = scalar_lea.vmem %s5, 192
      %v2888 = vld [vmem:[%s2887] sm:$0xff]
      %v2889 = vld [vmem:[%s2887 + $0x8] sm:$0xf]
      %v2890 = vld [vmem:[%s2887 + $0xc] sm:$0xff]
      %v2891 = vld [vmem:[%s2887 + $0x14] sm:$0xf]
      %v2892 = vld [vmem:[%s2887 + $0x18] sm:$0xff]
      %v2893 = vld [vmem:[%s2887 + $0x20] sm:$0xf]
      %v2894 = vld [vmem:[%s2887 + $0x24] sm:$0xff]
      %v2895 = vld [vmem:[%s2887 + $0x2c] sm:$0xf]
      %v2896 = vld [vmem:[%s2887 + $0x30] sm:$0xff]
      %v2897 = vld [vmem:[%s2887 + $0x38] sm:$0xf]
      %v2898 = vld [vmem:[%s2887 + $0x3c] sm:$0xff]
      %v2899 = vld [vmem:[%s2887 + $0x44] sm:$0xf]
      %v2900 = vld [vmem:[%s2887 + $0x48] sm:$0xff]
      %v2901 = vld [vmem:[%s2887 + $0x50] sm:$0xf]
      %v2902 = vld [vmem:[%s2887 + $0x54] sm:$0xff]
      %v2903 = vld [vmem:[%s2887 + $0x5c] sm:$0xf]
      %v2904 = vld [vmem:[%s2887 + $0x60] sm:$0xff]
      %v2905 = vld [vmem:[%s2887 + $0x68] sm:$0xf]
      %v2906 = vld [vmem:[%s2887 + $0x6c] sm:$0xff]
      %v2907 = vld [vmem:[%s2887 + $0x74] sm:$0xf]
      %v2908 = vld [vmem:[%s2887 + $0x78] sm:$0xff]
      %v2909 = vld [vmem:[%s2887 + $0x80] sm:$0xf]
      %v2910 = vld [vmem:[%s2887 + $0x84] sm:$0xff]
      %v2911 = vld [vmem:[%s2887 + $0x8c] sm:$0xf]
      %v2912 = vld [vmem:[%s2887 + $0x90] sm:$0xff]
      %v2913 = vld [vmem:[%s2887 + $0x98] sm:$0xf]
      %v2914 = vld [vmem:[%s2887 + $0x9c] sm:$0xff]
      %v2915 = vld [vmem:[%s2887 + $0xa4] sm:$0xf]
      %v2916 = vld [vmem:[%s2887 + $0xa8] sm:$0xff]
      %v2917 = vld [vmem:[%s2887 + $0xb0] sm:$0xf]
      %v2918 = vld [vmem:[%s2887 + $0xb4] sm:$0xff]
      %v2919 = vld [vmem:[%s2887 + $0xbc] sm:$0xf]
      %s2920 = scalar_lea.vmem %s6, 3
      %v2921 = vld [vmem:[%s2920] sm:$0x7]
      %v2923 = vlaneseq
      %v2924 = vshrl.u32 %v2923, 7
      %v2925 = vsub.s32 0, %v2924
      %v2926 = vrot.slane %v2921, %v2925
      %v2927 = vlaneseq
      %v2928 = vshrl.u32 %v2927, 7
      %v2929 = vsub.s32 1, %v2928
      %v2930 = vrot.slane %v2921, %v2929
      %v2931 = vlaneseq
      %v2932 = vshrl.u32 %v2931, 7
      %v2933 = vsub.s32 2, %v2932
      %v2934 = vrot.slane %v2921, %v2933
      %v2970 = vunpack.c.l.b16 %v2888
      %v2971 = vunpack.c.h.b16 %v2888
      %v2972 = vunpack.c.l.b16 %v2889
      %v2973 = vunpack.c.l.b16 %v2890
      %v2974 = vunpack.c.h.b16 %v2890
      %v2975 = vunpack.c.l.b16 %v2891
      %v2976 = vunpack.c.l.b16 %v2892
      %v2977 = vunpack.c.h.b16 %v2892
      %v2978 = vunpack.c.l.b16 %v2893
      %v2979 = vunpack.c.l.b16 %v2894
      %v2980 = vunpack.c.h.b16 %v2894
      %v2981 = vunpack.c.l.b16 %v2895
      %v2982 = vunpack.c.l.b16 %v2896
      %v2983 = vunpack.c.h.b16 %v2896
      %v2984 = vunpack.c.l.b16 %v2897
      %v2985 = vunpack.c.l.b16 %v2898
      %v2986 = vunpack.c.h.b16 %v2898
      %v2987 = vunpack.c.l.b16 %v2899
      %v2988 = vunpack.c.l.b16 %v2900
      %v2989 = vunpack.c.h.b16 %v2900
      %v2990 = vunpack.c.l.b16 %v2901
      %v2991 = vunpack.c.l.b16 %v2902
      %v2992 = vunpack.c.h.b16 %v2902
      %v2993 = vunpack.c.l.b16 %v2903
      %v2994 = vunpack.c.l.b16 %v2904
      %v2995 = vunpack.c.h.b16 %v2904
      %v2996 = vunpack.c.l.b16 %v2905
      %v2997 = vunpack.c.l.b16 %v2906
      %v2998 = vunpack.c.h.b16 %v2906
      %v2999 = vunpack.c.l.b16 %v2907
      %v3000 = vunpack.c.l.b16 %v2908
      %v3001 = vunpack.c.h.b16 %v2908
      %v3002 = vunpack.c.l.b16 %v2909
      %v3003 = vunpack.c.l.b16 %v2910
      %v3004 = vunpack.c.h.b16 %v2910
      %v3005 = vunpack.c.l.b16 %v2911
      %v3006 = vunpack.c.l.b16 %v2912
      %v3007 = vunpack.c.h.b16 %v2912
      %v3008 = vunpack.c.l.b16 %v2913
      %v3009 = vunpack.c.l.b16 %v2914
      %v3010 = vunpack.c.h.b16 %v2914
      %v3011 = vunpack.c.l.b16 %v2915
      %v3012 = vunpack.c.l.b16 %v2916
      %v3013 = vunpack.c.h.b16 %v2916
      %v3014 = vunpack.c.l.b16 %v2917
      %v3015 = vunpack.c.l.b16 %v2918
      %v3016 = vunpack.c.h.b16 %v2918
      %v3017 = vunpack.c.l.b16 %v2919
      %v3018 = vpack.c.b16 %v2973, %v2970
      %v3019 = vpack.c.b16 %v2974, %v2971
      %v3020 = vpack.c.b16 %v2975, %v2972
      %v3021 = vpack.c.b16 %v2979, %v2976
      %v3022 = vpack.c.b16 %v2980, %v2977
      %v3023 = vpack.c.b16 %v2981, %v2978
      %v3024 = vpack.c.b16 %v2985, %v2982
      %v3025 = vpack.c.b16 %v2986, %v2983
      %v3026 = vpack.c.b16 %v2987, %v2984
      %v3027 = vpack.c.b16 %v2991, %v2988
      %v3028 = vpack.c.b16 %v2992, %v2989
      %v3029 = vpack.c.b16 %v2993, %v2990
      %v3030 = vpack.c.b16 %v2997, %v2994
      %v3031 = vpack.c.b16 %v2998, %v2995
      %v3032 = vpack.c.b16 %v2999, %v2996
      %v3033 = vpack.c.b16 %v3003, %v3000
      %v3034 = vpack.c.b16 %v3004, %v3001
      %v3035 = vpack.c.b16 %v3005, %v3002
      %v3036 = vpack.c.b16 %v3009, %v3006
      %v3037 = vpack.c.b16 %v3010, %v3007
      %v3038 = vpack.c.b16 %v3011, %v3008
      %v3039 = vpack.c.b16 %v3015, %v3012
      %v3040 = vpack.c.b16 %v3016, %v3013
      %v3041 = vpack.c.b16 %v3017, %v3014
      %3066 = vmatprep.subr.bf16.mxu0 %v3019
      %3067 = vmatpush1.bf16.msra.mxu0 %v3018
      %3068 = vmatprep.subr.bf16.mxu0 %v3022
      %3069 = vmatpush1.bf16.msra.mxu0 %v3021
      %3070 = vmatprep.subr.bf16.mxu0 %v3025
      %3071 = vmatpush1.bf16.msra.mxu0 %v3024
      %3072 = vmatprep.subr.bf16.mxu0 %v3028
      %3073 = vmatpush1.bf16.msra.mxu0 %v3027
      %3074 = vmatprep.subr.bf16.mxu0 %v3031
      %3075 = vmatpush1.bf16.msra.mxu0 %v3030
      %3076 = vmatprep.subr.bf16.mxu0 %v3034
      %3077 = vmatpush1.bf16.msra.mxu0 %v3033
      %3078 = vmatprep.subr.bf16.mxu0 %v3037
      %3079 = vmatpush1.bf16.msra.mxu0 %v3036
      %3080 = vmatprep.subr.bf16.mxu0 %v3040
      %3081 = vmatpush1.bf16.msra.mxu0 %v3039
      %3082 = vmatprep.subr.bf16.mxu0 0
      %3083 = vmatpush1.bf16.msra.mxu0 0
      %3084 = vmatprep.subr.bf16.mxu0 0
      %3085 = vmatpush1.bf16.msra.mxu0 0
      %3086 = vmatprep.subr.bf16.mxu0 0
      %3087 = vmatpush1.bf16.msra.mxu0 0
      %3088 = vmatprep.subr.bf16.mxu0 0
      %3089 = vmatpush1.bf16.msra.mxu0 0
      %3090 = vmatprep.subr.bf16.mxu0 0
      %3091 = vmatpush1.bf16.msra.mxu0 0
      %3092 = vmatprep.subr.bf16.mxu0 0
      %3093 = vmatpush1.bf16.msra.mxu0 0
      %3094 = vmatprep.subr.bf16.mxu0 0
      %3095 = vmatpush1.bf16.msra.mxu0 0
      %3096 = vmatprep.subr.bf16.mxu0 0
      %3097 = vmatpush1.bf16.msra.mxu0 0
      %3098 = vmatprep.mubr.bf16.mxu0 0
      %3099 = vmatmul.mubr.bf16.gmra.mrb[0].mxu0 %v2885
      %v3100 = vpop.f32.mrb[0].mxu0
      %v3101 = vadd.f32 %v2926, %v3100
      %v3102 = vpop.f32.mrb[0].mxu0
      %v3103 = vadd.f32 %v2930, %v3102
      %v3104 = vpop.f32.mrb[0].mxu0
      %v3105 = vadd.f32 %v2926, %v3104
      %v3106 = vpop.f32.mrb[0].mxu0
      %v3107 = vadd.f32 %v2930, %v3106
      %3108 = vmatprep.mubr.bf16.mxu0 0
      %3109 = vmatmul.mubr.bf16.gmra.mrb[0].mxu0 %v2886
      %v3110 = vpop.f32.mrb[0].mxu0
      %v3111 = vadd.f32 %v2926, %v3110
      %v3112 = vpop.f32.mrb[0].mxu0
      %v3113 = vadd.f32 %v2930, %v3112
      %v3114 = vpop.f32.mrb[0].mxu0
      %v3115 = vadd.f32 %v2926, %v3114
      %v3116 = vpop.f32.mrb[0].mxu0
      %v3117 = vadd.f32 %v2930, %v3116
      %3118 = vdwg.mxu0
      %3119 = vmatprep.subr.bf16.mxu0 0
      %3120 = vmatpush1.bf16.msra.mxu0 %v3020
      %3121 = vmatprep.subr.bf16.mxu0 0
      %3122 = vmatpush1.bf16.msra.mxu0 %v3023
      %3123 = vmatprep.subr.bf16.mxu0 0
      %3124 = vmatpush1.bf16.msra.mxu0 %v3026
      %3125 = vmatprep.subr.bf16.mxu0 0
      %3126 = vmatpush1.bf16.msra.mxu0 %v3029
      %3127 = vmatprep.subr.bf16.mxu0 0
      %3128 = vmatpush1.bf16.msra.mxu0 %v3032
      %3129 = vmatprep.subr.bf16.mxu0 0
      %3130 = vmatpush1.bf16.msra.mxu0 %v3035
      %3131 = vmatprep.subr.bf16.mxu0 0
      %3132 = vmatpush1.bf16.msra.mxu0 %v3038
      %3133 = vmatprep.subr.bf16.mxu0 0
      %3134 = vmatpush1.bf16.msra.mxu0 %v3041
      %3135 = vmatprep.subr.bf16.mxu0 0
      %3136 = vmatpush1.bf16.msra.mxu0 0
      %3137 = vmatprep.subr.bf16.mxu0 0
      %3138 = vmatpush1.bf16.msra.mxu0 0
      %3139 = vmatprep.subr.bf16.mxu0 0
      %3140 = vmatpush1.bf16.msra.mxu0 0
      %3141 = vmatprep.subr.bf16.mxu0 0
      %3142 = vmatpush1.bf16.msra.mxu0 0
      %3143 = vmatprep.subr.bf16.mxu0 0
      %3144 = vmatpush1.bf16.msra.mxu0 0
      %3145 = vmatprep.subr.bf16.mxu0 0
      %3146 = vmatpush1.bf16.msra.mxu0 0
      %3147 = vmatprep.subr.bf16.mxu0 0
      %3148 = vmatpush1.bf16.msra.mxu0 0
      %3149 = vmatprep.subr.bf16.mxu0 0
      %3150 = vmatpush1.bf16.msra.mxu0 0
      %3151 = vmatprep.mubr.bf16.mxu0 0
      %3152 = vmatmul.mubr.bf16.gmra.mrb[0].mxu0 %v2885
      %v3153 = vpop.f32.mrb[0].mxu0
      %v3154 = vadd.f32 %v2934, %v3153
      %v3155 = vpop.f32.mrb[0].mxu0
      %v3156 = vpop.f32.mrb[0].mxu0
      %v3157 = vadd.f32 %v2934, %v3156
      %v3158 = vpop.f32.mrb[0].mxu0
      %3159 = vmatprep.mubr.bf16.mxu0 0
      %3160 = vmatmul.mubr.bf16.gmra.mrb[0].mxu0 %v2886
      %v3161 = vpop.f32.mrb[0].mxu0
      %v3162 = vadd.f32 %v2934, %v3161
      %v3163 = vpop.f32.mrb[0].mxu0
      %v3164 = vpop.f32.mrb[0].mxu0
      %v3165 = vadd.f32 %v2934, %v3164
      %v3166 = vpop.f32.mrb[0].mxu0
      %3167 = vdwg.mxu0
      %v3168 = vpack.c.bf16 %v3105, %v3101
      %v3169 = vpack.c.bf16 %v3107, %v3103
      %v3170 = vpack.c.bf16 %v3157, %v3154
      %v3171 = vpack.c.bf16 %v3115, %v3111
      %v3172 = vpack.c.bf16 %v3117, %v3113
      %v3173 = vpack.c.bf16 %v3165, %v3162
      %v3175 = vsel %vm1086, %v3168, 0
      %v3178 = vsel %vm1086, %v3171, 0
      %v3181 = vsel %vm1086, %v3169, 0
      %v3184 = vsel %vm1086, %v3172, 0
      %3186 = vmatprep.subr.bf16.mxu0 0
      %3187 = vmatpush1.bf16.xpose.msra.mxu0 %v3181
      %3188 = vmatprep.subr.bf16.mxu0 0
      %3189 = vmatpush1.bf16.xpose.msra.mxu0 %v3184
      %3190 = vmatprep.subr.bf16.mxu0 0
      %3191 = vmatpush1.bf16.xpose.msra.mxu0 0
      %3192 = vmatprep.subr.bf16.mxu0 0
      %3193 = vmatpush1.bf16.xpose.msra.mxu0 0
      %3194 = vmatprep.subr.bf16.mxu0 0
      %3195 = vmatpush1.bf16.xpose.msra.mxu0 0
      %3196 = vmatprep.subr.bf16.mxu0 0
      %3197 = vmatpush1.bf16.xpose.msra.mxu0 0
      %3198 = vmatprep.subr.bf16.mxu0 0
      %3199 = vmatpush1.bf16.xpose.msra.mxu0 0
      %3200 = vmatprep.subr.bf16.mxu0 0
      %3201 = vmatpush1.bf16.xpose.msra.mxu0 0
      %3202 = vmatprep.subr.bf16.mxu0 0
      %3203 = vmatpush1.bf16.xpose.msra.mxu0 0
      %3204 = vmatprep.subr.bf16.mxu0 0
      %3205 = vmatpush1.bf16.xpose.msra.mxu0 0
      %3206 = vmatprep.subr.bf16.mxu0 0
      %3207 = vmatpush1.bf16.xpose.msra.mxu0 0
      %3208 = vmatprep.subr.bf16.mxu0 0
      %3209 = vmatpush1.bf16.xpose.msra.mxu0 0
      %3210 = vmatprep.subr.bf16.mxu0 0
      %3211 = vmatpush1.bf16.xpose.msra.mxu0 0
      %3212 = vmatprep.subr.bf16.mxu0 0
      %3213 = vmatpush1.bf16.xpose.msra.mxu0 0
      %3214 = vmatprep.subr.bf16.mxu0 0
      %3215 = vmatpush1.bf16.xpose.msra.mxu0 0
      %3216 = vmatprep.subr.bf16.mxu0 0
      %3217 = vmatpush1.bf16.xpose.msra.mxu0 0
      %3218 = vmatprep.mubr.bf16.mxu0 0
      %3219 = vmatmul.mubr.bf16.gmra.mrb[0].mxu0 %v3175
      %v3220 = vpop.f32.mrb[0].mxu0
      %v3221 = vadd.f32 %v553, %v3220
      %v3222 = vpop.f32.mrb[0].mxu0
      %v3223 = vpop.f32.mrb[0].mxu0
      %v3224 = vadd.f32 %v553, %v3223
      %v3225 = vpop.f32.mrb[0].mxu0
      %3226 = vmatprep.mubr.bf16.mxu0 0
      %3227 = vmatmul.mubr.bf16.gmra.mrb[0].mxu0 %v3178
      %v3228 = vpop.f32.mrb[0].mxu0
      %v3229 = vadd.f32 %v553, %v3228
      %v3230 = vpop.f32.mrb[0].mxu0
      %v3231 = vpop.f32.mrb[0].mxu0
      %v3232 = vadd.f32 %v553, %v3231
      %v3233 = vpop.f32.mrb[0].mxu0
      %3234 = vdwg.mxu0
      %v3235 = vsel %vm1086, %v3221, -inf
      %3236 = vmax.xlane.f32.xlu0 %v3235
      %v3237 = vpop.xlane.xlu0 %3236
      %v3238 = vsel %vm1086, %v3224, -inf
      %3239 = vmax.xlane.f32.xlu0 %v3238
      %v3240 = vpop.xlane.xlu0 %3239
      %v3241 = vsel %vm1086, %v3229, -inf
      %3242 = vmax.xlane.f32.xlu0 %v3241
      %v3243 = vpop.xlane.xlu0 %3242
      %v3244 = vsel %vm1086, %v3232, -inf
      %3245 = vmax.xlane.f32.xlu0 %v3244
      %v3246 = vpop.xlane.xlu0 %3245
      %v3247 = vsub.f32 %v3221, %v3237
      %v3248 = vsub.f32 %v3224, %v3240
      %v3249 = vsub.f32 %v3229, %v3243
      %v3250 = vsub.f32 %v3232, %v3246
      %v3251 = vmul.f32 %v3247, 1.442695
      %v3252 = vpow.pop %v3251
      %v3253 = vmul.f32 %v3248, 1.442695
      %v3254 = vpow.pop %v3253
      %v3255 = vmul.f32 %v3249, 1.442695
      %v3256 = vpow.pop %v3255
      %v3257 = vmul.f32 %v3250, 1.442695
      %v3258 = vpow.pop %v3257
      %v3259 = vsel %vm1086, %v3252, 0.0
      %3260 = vadd.xlane.f32.xlu0 %v3259
      %v3261 = vpop.xlane.xlu0 %3260
      %v3262 = vsel %vm1086, %v3254, 0.0
      %3263 = vadd.xlane.f32.xlu0 %v3262
      %v3264 = vpop.xlane.xlu0 %3263
      %v3265 = vsel %vm1086, %v3256, 0.0
      %3266 = vadd.xlane.f32.xlu0 %v3265
      %v3267 = vpop.xlane.xlu0 %3266
      %v3268 = vsel %vm1086, %v3258, 0.0
      %3269 = vadd.xlane.f32.xlu0 %v3268
      %v3270 = vpop.xlane.xlu0 %3269
      %v3271 = vrcp.pop %v3261
      %v3272 = vmul.f32 1.0, %v3271
      %v3273 = vrcp.pop %v3264
      %v3274 = vmul.f32 1.0, %v3273
      %v3275 = vrcp.pop %v3267
      %v3276 = vmul.f32 1.0, %v3275
      %v3277 = vrcp.pop %v3270
      %v3278 = vmul.f32 1.0, %v3277
      %v3279 = vmul.f32 %v3252, %v3272
      %v3280 = vmul.f32 %v3254, %v3274
      %v3281 = vmul.f32 %v3256, %v3276
      %v3282 = vmul.f32 %v3258, %v3278
      %v3283 = vpack.c.bf16 %v3280, %v3279
      %v3284 = vpack.c.bf16 %v3282, %v3281
      %v3286 = vsel %vm1086, %v3283, 0
      %v3289 = vsel %vm1086, %v3284, 0
      %3291 = vmatprep.subr.bf16.mxu0 0
      %3292 = vmatpush1.bf16.msra.mxu0 %v3170
      %3293 = vmatprep.subr.bf16.mxu0 0
      %3294 = vmatpush1.bf16.msra.mxu0 %v3173
      %3295 = vmatprep.subr.bf16.mxu0 0
      %3296 = vmatpush1.bf16.msra.mxu0 0
      %3297 = vmatprep.subr.bf16.mxu0 0
      %3298 = vmatpush1.bf16.msra.mxu0 0
      %3299 = vmatprep.subr.bf16.mxu0 0
      %3300 = vmatpush1.bf16.msra.mxu0 0
      %3301 = vmatprep.subr.bf16.mxu0 0
      %3302 = vmatpush1.bf16.msra.mxu0 0
      %3303 = vmatprep.subr.bf16.mxu0 0
      %3304 = vmatpush1.bf16.msra.mxu0 0
      %3305 = vmatprep.subr.bf16.mxu0 0
      %3306 = vmatpush1.bf16.msra.mxu0 0
      %3307 = vmatprep.subr.bf16.mxu0 0
      %3308 = vmatpush1.bf16.msra.mxu0 0
      %3309 = vmatprep.subr.bf16.mxu0 0
      %3310 = vmatpush1.bf16.msra.mxu0 0
      %3311 = vmatprep.subr.bf16.mxu0 0
      %3312 = vmatpush1.bf16.msra.mxu0 0
      %3313 = vmatprep.subr.bf16.mxu0 0
      %3314 = vmatpush1.bf16.msra.mxu0 0
      %3315 = vmatprep.subr.bf16.mxu0 0
      %3316 = vmatpush1.bf16.msra.mxu0 0
      %3317 = vmatprep.subr.bf16.mxu0 0
      %3318 = vmatpush1.bf16.msra.mxu0 0
      %3319 = vmatprep.subr.bf16.mxu0 0
      %3320 = vmatpush1.bf16.msra.mxu0 0
      %3321 = vmatprep.subr.bf16.mxu0 0
      %3322 = vmatpush1.bf16.msra.mxu0 0
      %3323 = vmatprep.mubr.bf16.mxu0 0
      %3324 = vmatmul.mubr.bf16.gmra.mrb[0].mxu0 %v3286
      %v3325 = vpop.f32.mrb[0].mxu0
      %v3326 = vadd.f32 0.0, %v3325
      %v3327 = vpop.f32.mrb[0].mxu0
      %v3328 = vpop.f32.mrb[0].mxu0
      %v3329 = vadd.f32 0.0, %v3328
      %v3330 = vpop.f32.mrb[0].mxu0
      %3331 = vmatprep.mubr.bf16.mxu0 0
      %3332 = vmatmul.mubr.bf16.gmra.mrb[0].mxu0 %v3289
      %v3333 = vpop.f32.mrb[0].mxu0
      %v3334 = vadd.f32 0.0, %v3333
      %v3335 = vpop.f32.mrb[0].mxu0
      %v3336 = vpop.f32.mrb[0].mxu0
      %v3337 = vadd.f32 0.0, %v3336
      %v3338 = vpop.f32.mrb[0].mxu0
      %3339 = vdwg.mxu0
      %v3340 = vpack.c.bf16 %v3329, %v3326
      %v3341 = vpack.c.bf16 %v3337, %v3334
      %3342 = vst.msk [vmem:[#allocation2] sm:$0xff] %vm1086, %v3340
      %3343 = vst.msk [vmem:[#allocation2 + $0x8] sm:$0xff] %vm1086, %v3341
      %3346 = vrot.lane.b32.xlu0 %v3168, 96
      %v3347 = vpop.permute.xlu0 %3346
      %3348 = vrot.lane.b32.xlu0 %v3171, 96
      %v3349 = vpop.permute.xlu0 %3348
      %3352 = vrot.lane.b32.xlu0 %v3169, 96
      %v3353 = vpop.permute.xlu0 %3352
      %3354 = vrot.lane.b32.xlu0 %v3172, 96
      %v3355 = vpop.permute.xlu0 %3354
      %v3357 = vsel %vm1086, %v3347, 0
      %v3360 = vsel %vm1086, %v3349, 0
      %v3363 = vsel %vm1086, %v3353, 0
      %v3366 = vsel %vm1086, %v3355, 0
      %3368 = vmatprep.subr.bf16.mxu0 0
      %3369 = vmatpush1.bf16.xpose.msra.mxu0 %v3363
      %3370 = vmatprep.subr.bf16.mxu0 0
      %3371 = vmatpush1.bf16.xpose.msra.mxu0 %v3366
      %3372 = vmatprep.subr.bf16.mxu0 0
      %3373 = vmatpush1.bf16.xpose.msra.mxu0 0
      %3374 = vmatprep.subr.bf16.mxu0 0
      %3375 = vmatpush1.bf16.xpose.msra.mxu0 0
      %3376 = vmatprep.subr.bf16.mxu0 0
      %3377 = vmatpush1.bf16.xpose.msra.mxu0 0
      %3378 = vmatprep.subr.bf16.mxu0 0
      %3379 = vmatpush1.bf16.xpose.msra.mxu0 0
      %3380 = vmatprep.subr.bf16.mxu0 0
      %3381 = vmatpush1.bf16.xpose.msra.mxu0 0
      %3382 = vmatprep.subr.bf16.mxu0 0
      %3383 = vmatpush1.bf16.xpose.msra.mxu0 0
      %3384 = vmatprep.subr.bf16.mxu0 0
      %3385 = vmatpush1.bf16.xpose.msra.mxu0 0
      %3386 = vmatprep.subr.bf16.mxu0 0
      %3387 = vmatpush1.bf16.xpose.msra.mxu0 0
      %3388 = vmatprep.subr.bf16.mxu0 0
      %3389 = vmatpush1.bf16.xpose.msra.mxu0 0
      %3390 = vmatprep.subr.bf16.mxu0 0
      %3391 = vmatpush1.bf16.xpose.msra.mxu0 0
      %3392 = vmatprep.subr.bf16.mxu0 0
      %3393 = vmatpush1.bf16.xpose.msra.mxu0 0
      %3394 = vmatprep.subr.bf16.mxu0 0
      %3395 = vmatpush1.bf16.xpose.msra.mxu0 0
      %3396 = vmatprep.subr.bf16.mxu0 0
      %3397 = vmatpush1.bf16.xpose.msra.mxu0 0
      %3398 = vmatprep.subr.bf16.mxu0 0
      %3399 = vmatpush1.bf16.xpose.msra.mxu0 0
      %3400 = vmatprep.mubr.bf16.mxu0 0
      %3401 = vmatmul.mubr.bf16.gmra.mrb[0].mxu0 %v3357
      %v3402 = vpop.f32.mrb[0].mxu0
      %v3403 = vadd.f32 %v553, %v3402
      %v3404 = vpop.f32.mrb[0].mxu0
      %v3405 = vpop.f32.mrb[0].mxu0
      %v3406 = vadd.f32 %v553, %v3405
      %v3407 = vpop.f32.mrb[0].mxu0
      %3408 = vmatprep.mubr.bf16.mxu0 0
      %3409 = vmatmul.mubr.bf16.gmra.mrb[0].mxu0 %v3360
      %v3410 = vpop.f32.mrb[0].mxu0
      %v3411 = vadd.f32 %v553, %v3410
      %v3412 = vpop.f32.mrb[0].mxu0
      %v3413 = vpop.f32.mrb[0].mxu0
      %v3414 = vadd.f32 %v553, %v3413
      %v3415 = vpop.f32.mrb[0].mxu0
      %3416 = vdwg.mxu0
      %v3417 = vsel %vm1086, %v3403, -inf
      %3418 = vmax.xlane.f32.xlu0 %v3417
      %v3419 = vpop.xlane.xlu0 %3418
      %v3420 = vsel %vm1086, %v3406, -inf
      %3421 = vmax.xlane.f32.xlu0 %v3420
      %v3422 = vpop.xlane.xlu0 %3421
      %v3423 = vsel %vm1086, %v3411, -inf
      %3424 = vmax.xlane.f32.xlu0 %v3423
      %v3425 = vpop.xlane.xlu0 %3424
      %v3426 = vsel %vm1086, %v3414, -inf
      %3427 = vmax.xlane.f32.xlu0 %v3426
      %v3428 = vpop.xlane.xlu0 %3427
      %v3429 = vsub.f32 %v3403, %v3419
      %v3430 = vsub.f32 %v3406, %v3422
      %v3431 = vsub.f32 %v3411, %v3425
      %v3432 = vsub.f32 %v3414, %v3428
      %v3433 = vmul.f32 %v3429, 1.442695
      %v3434 = vpow.pop %v3433
      %v3435 = vmul.f32 %v3430, 1.442695
      %v3436 = vpow.pop %v3435
      %v3437 = vmul.f32 %v3431, 1.442695
      %v3438 = vpow.pop %v3437
      %v3439 = vmul.f32 %v3432, 1.442695
      %v3440 = vpow.pop %v3439
      %v3441 = vsel %vm1086, %v3434, 0.0
      %3442 = vadd.xlane.f32.xlu0 %v3441
      %v3443 = vpop.xlane.xlu0 %3442
      %v3444 = vsel %vm1086, %v3436, 0.0
      %3445 = vadd.xlane.f32.xlu0 %v3444
      %v3446 = vpop.xlane.xlu0 %3445
      %v3447 = vsel %vm1086, %v3438, 0.0
      %3448 = vadd.xlane.f32.xlu0 %v3447
      %v3449 = vpop.xlane.xlu0 %3448
      %v3450 = vsel %vm1086, %v3440, 0.0
      %3451 = vadd.xlane.f32.xlu0 %v3450
      %v3452 = vpop.xlane.xlu0 %3451
      %v3453 = vrcp.pop %v3443
      %v3454 = vmul.f32 1.0, %v3453
      %v3455 = vrcp.pop %v3446
      %v3456 = vmul.f32 1.0, %v3455
      %v3457 = vrcp.pop %v3449
      %v3458 = vmul.f32 1.0, %v3457
      %v3459 = vrcp.pop %v3452
      %v3460 = vmul.f32 1.0, %v3459
      %v3461 = vmul.f32 %v3434, %v3454
      %v3462 = vmul.f32 %v3436, %v3456
      %v3463 = vmul.f32 %v3438, %v3458
      %v3464 = vmul.f32 %v3440, %v3460
      %v3465 = vpack.c.bf16 %v3462, %v3461
      %v3466 = vpack.c.bf16 %v3464, %v3463
      %3469 = vrot.lane.b32.xlu0 %v3170, 96
      %v3470 = vpop.permute.xlu0 %3469
      %3471 = vrot.lane.b32.xlu0 %v3173, 96
      %v3472 = vpop.permute.xlu0 %3471
      %v3476 = vsel %vm1086, %v3465, 0
      %v3479 = vsel %vm1086, %v3466, 0
      %3481 = vmatprep.subr.bf16.mxu0 0
      %3482 = vmatpush1.bf16.msra.mxu0 %v3470
      %3483 = vmatprep.subr.bf16.mxu0 0
      %3484 = vmatpush1.bf16.msra.mxu0 %v3472
      %3485 = vmatprep.subr.bf16.mxu0 0
      %3486 = vmatpush1.bf16.msra.mxu0 0
      %3487 = vmatprep.subr.bf16.mxu0 0
      %3488 = vmatpush1.bf16.msra.mxu0 0
      %3489 = vmatprep.subr.bf16.mxu0 0
      %3490 = vmatpush1.bf16.msra.mxu0 0
      %3491 = vmatprep.subr.bf16.mxu0 0
      %3492 = vmatpush1.bf16.msra.mxu0 0
      %3493 = vmatprep.subr.bf16.mxu0 0
      %3494 = vmatpush1.bf16.msra.mxu0 0
      %3495 = vmatprep.subr.bf16.mxu0 0
      %3496 = vmatpush1.bf16.msra.mxu0 0
      %3497 = vmatprep.subr.bf16.mxu0 0
      %3498 = vmatpush1.bf16.msra.mxu0 0
      %3499 = vmatprep.subr.bf16.mxu0 0
      %3500 = vmatpush1.bf16.msra.mxu0 0
      %3501 = vmatprep.subr.bf16.mxu0 0
      %3502 = vmatpush1.bf16.msra.mxu0 0
      %3503 = vmatprep.subr.bf16.mxu0 0
      %3504 = vmatpush1.bf16.msra.mxu0 0
      %3505 = vmatprep.subr.bf16.mxu0 0
      %3506 = vmatpush1.bf16.msra.mxu0 0
      %3507 = vmatprep.subr.bf16.mxu0 0
      %3508 = vmatpush1.bf16.msra.mxu0 0
      %3509 = vmatprep.subr.bf16.mxu0 0
      %3510 = vmatpush1.bf16.msra.mxu0 0
      %3511 = vmatprep.subr.bf16.mxu0 0
      %3512 = vmatpush1.bf16.msra.mxu0 0
      %3513 = vmatprep.mubr.bf16.mxu0 0
      %3514 = vmatmul.mubr.bf16.gmra.mrb[0].mxu0 %v3476
      %v3515 = vpop.f32.mrb[0].mxu0
      %v3516 = vadd.f32 0.0, %v3515
      %v3517 = vpop.f32.mrb[0].mxu0
      %v3518 = vpop.f32.mrb[0].mxu0
      %v3519 = vadd.f32 0.0, %v3518
      %v3520 = vpop.f32.mrb[0].mxu0
      %3521 = vmatprep.mubr.bf16.mxu0 0
      %3522 = vmatmul.mubr.bf16.gmra.mrb[0].mxu0 %v3479
      %v3523 = vpop.f32.mrb[0].mxu0
      %v3524 = vadd.f32 0.0, %v3523
      %v3525 = vpop.f32.mrb[0].mxu0
      %v3526 = vpop.f32.mrb[0].mxu0
      %v3527 = vadd.f32 0.0, %v3526
      %v3528 = vpop.f32.mrb[0].mxu0
      %3529 = vdwg.mxu0
      %v3530 = vpack.c.bf16 %v3519, %v3516
      %v3531 = vpack.c.bf16 %v3527, %v3524
      %3534 = vrot.lane.b32.xlu0 %v3530, 32
      %v3535 = vpop.permute.xlu0 %3534
      %3536 = vrot.lane.b32.xlu0 %v3531, 32
      %v3537 = vpop.permute.xlu0 %3536
      %3540 = vst.msk [vmem:[#allocation2] sm:$0xff] %vm1453, %v3535
      %3541 = vst.msk [vmem:[#allocation2 + $0x8] sm:$0xff] %vm1453, %v3537
      %3542 = vrot.lane.b32.xlu0 %v3168, 64
      %v3543 = vpop.permute.xlu0 %3542
      %3544 = vrot.lane.b32.xlu0 %v3171, 64
      %v3545 = vpop.permute.xlu0 %3544
      %3546 = vrot.lane.b32.xlu0 %v3169, 64
      %v3547 = vpop.permute.xlu0 %3546
      %3548 = vrot.lane.b32.xlu0 %v3172, 64
      %v3549 = vpop.permute.xlu0 %3548
      %v3551 = vsel %vm1086, %v3543, 0
      %v3554 = vsel %vm1086, %v3545, 0
      %v3557 = vsel %vm1086, %v3547, 0
      %v3560 = vsel %vm1086, %v3549, 0
      %3562 = vmatprep.subr.bf16.mxu0 0
      %3563 = vmatpush1.bf16.xpose.msra.mxu0 %v3557
      %3564 = vmatprep.subr.bf16.mxu0 0
      %3565 = vmatpush1.bf16.xpose.msra.mxu0 %v3560
      %3566 = vmatprep.subr.bf16.mxu0 0
      %3567 = vmatpush1.bf16.xpose.msra.mxu0 0
      %3568 = vmatprep.subr.bf16.mxu0 0
      %3569 = vmatpush1.bf16.xpose.msra.mxu0 0
      %3570 = vmatprep.subr.bf16.mxu0 0
      %3571 = vmatpush1.bf16.xpose.msra.mxu0 0
      %3572 = vmatprep.subr.bf16.mxu0 0
      %3573 = vmatpush1.bf16.xpose.msra.mxu0 0
      %3574 = vmatprep.subr.bf16.mxu0 0
      %3575 = vmatpush1.bf16.xpose.msra.mxu0 0
      %3576 = vmatprep.subr.bf16.mxu0 0
      %3577 = vmatpush1.bf16.xpose.msra.mxu0 0
      %3578 = vmatprep.subr.bf16.mxu0 0
      %3579 = vmatpush1.bf16.xpose.msra.mxu0 0
      %3580 = vmatprep.subr.bf16.mxu0 0
      %3581 = vmatpush1.bf16.xpose.msra.mxu0 0
      %3582 = vmatprep.subr.bf16.mxu0 0
      %3583 = vmatpush1.bf16.xpose.msra.mxu0 0
      %3584 = vmatprep.subr.bf16.mxu0 0
      %3585 = vmatpush1.bf16.xpose.msra.mxu0 0
      %3586 = vmatprep.subr.bf16.mxu0 0
      %3587 = vmatpush1.bf16.xpose.msra.mxu0 0
      %3588 = vmatprep.subr.bf16.mxu0 0
      %3589 = vmatpush1.bf16.xpose.msra.mxu0 0
      %3590 = vmatprep.subr.bf16.mxu0 0
      %3591 = vmatpush1.bf16.xpose.msra.mxu0 0
      %3592 = vmatprep.subr.bf16.mxu0 0
      %3593 = vmatpush1.bf16.xpose.msra.mxu0 0
      %3594 = vmatprep.mubr.bf16.mxu0 0
      %3595 = vmatmul.mubr.bf16.gmra.mrb[0].mxu0 %v3551
      %v3596 = vpop.f32.mrb[0].mxu0
      %v3597 = vadd.f32 %v553, %v3596
      %v3598 = vpop.f32.mrb[0].mxu0
      %v3599 = vpop.f32.mrb[0].mxu0
      %v3600 = vadd.f32 %v553, %v3599
      %v3601 = vpop.f32.mrb[0].mxu0
      %3602 = vmatprep.mubr.bf16.mxu0 0
      %3603 = vmatmul.mubr.bf16.gmra.mrb[0].mxu0 %v3554
      %v3604 = vpop.f32.mrb[0].mxu0
      %v3605 = vadd.f32 %v553, %v3604
      %v3606 = vpop.f32.mrb[0].mxu0
      %v3607 = vpop.f32.mrb[0].mxu0
      %v3608 = vadd.f32 %v553, %v3607
      %v3609 = vpop.f32.mrb[0].mxu0
      %3610 = vdwg.mxu0
      %v3611 = vsel %vm1086, %v3597, -inf
      %3612 = vmax.xlane.f32.xlu0 %v3611
      %v3613 = vpop.xlane.xlu0 %3612
      %v3614 = vsel %vm1086, %v3600, -inf
      %3615 = vmax.xlane.f32.xlu0 %v3614
      %v3616 = vpop.xlane.xlu0 %3615
      %v3617 = vsel %vm1086, %v3605, -inf
      %3618 = vmax.xlane.f32.xlu0 %v3617
      %v3619 = vpop.xlane.xlu0 %3618
      %v3620 = vsel %vm1086, %v3608, -inf
      %3621 = vmax.xlane.f32.xlu0 %v3620
      %v3622 = vpop.xlane.xlu0 %3621
      %v3623 = vsub.f32 %v3597, %v3613
      %v3624 = vsub.f32 %v3600, %v3616
      %v3625 = vsub.f32 %v3605, %v3619
      %v3626 = vsub.f32 %v3608, %v3622
      %v3627 = vmul.f32 %v3623, 1.442695
      %v3628 = vpow.pop %v3627
      %v3629 = vmul.f32 %v3624, 1.442695
      %v3630 = vpow.pop %v3629
      %v3631 = vmul.f32 %v3625, 1.442695
      %v3632 = vpow.pop %v3631
      %v3633 = vmul.f32 %v3626, 1.442695
      %v3634 = vpow.pop %v3633
      %v3635 = vsel %vm1086, %v3628, 0.0
      %3636 = vadd.xlane.f32.xlu0 %v3635
      %v3637 = vpop.xlane.xlu0 %3636
      %v3638 = vsel %vm1086, %v3630, 0.0
      %3639 = vadd.xlane.f32.xlu0 %v3638
      %v3640 = vpop.xlane.xlu0 %3639
      %v3641 = vsel %vm1086, %v3632, 0.0
      %3642 = vadd.xlane.f32.xlu0 %v3641
      %v3643 = vpop.xlane.xlu0 %3642
      %v3644 = vsel %vm1086, %v3634, 0.0
      %3645 = vadd.xlane.f32.xlu0 %v3644
      %v3646 = vpop.xlane.xlu0 %3645
      %v3647 = vrcp.pop %v3637
      %v3648 = vmul.f32 1.0, %v3647
      %v3649 = vrcp.pop %v3640
      %v3650 = vmul.f32 1.0, %v3649
      %v3651 = vrcp.pop %v3643
      %v3652 = vmul.f32 1.0, %v3651
      %v3653 = vrcp.pop %v3646
      %v3654 = vmul.f32 1.0, %v3653
      %v3655 = vmul.f32 %v3628, %v3648
      %v3656 = vmul.f32 %v3630, %v3650
      %v3657 = vmul.f32 %v3632, %v3652
      %v3658 = vmul.f32 %v3634, %v3654
      %v3659 = vpack.c.bf16 %v3656, %v3655
      %v3660 = vpack.c.bf16 %v3658, %v3657
      %3661 = vrot.lane.b32.xlu0 %v3170, 64
      %v3662 = vpop.permute.xlu0 %3661
      %3663 = vrot.lane.b32.xlu0 %v3173, 64
      %v3664 = vpop.permute.xlu0 %3663
      %v3668 = vsel %vm1086, %v3659, 0
      %v3671 = vsel %vm1086, %v3660, 0
      %3673 = vmatprep.subr.bf16.mxu0 0
      %3674 = vmatpush1.bf16.msra.mxu0 %v3662
      %3675 = vmatprep.subr.bf16.mxu0 0
      %3676 = vmatpush1.bf16.msra.mxu0 %v3664
      %3677 = vmatprep.subr.bf16.mxu0 0
      %3678 = vmatpush1.bf16.msra.mxu0 0
      %3679 = vmatprep.subr.bf16.mxu0 0
      %3680 = vmatpush1.bf16.msra.mxu0 0
      %3681 = vmatprep.subr.bf16.mxu0 0
      %3682 = vmatpush1.bf16.msra.mxu0 0
      %3683 = vmatprep.subr.bf16.mxu0 0
      %3684 = vmatpush1.bf16.msra.mxu0 0
      %3685 = vmatprep.subr.bf16.mxu0 0
      %3686 = vmatpush1.bf16.msra.mxu0 0
      %3687 = vmatprep.subr.bf16.mxu0 0
      %3688 = vmatpush1.bf16.msra.mxu0 0
      %3689 = vmatprep.subr.bf16.mxu0 0
      %3690 = vmatpush1.bf16.msra.mxu0 0
      %3691 = vmatprep.subr.bf16.mxu0 0
      %3692 = vmatpush1.bf16.msra.mxu0 0
      %3693 = vmatprep.subr.bf16.mxu0 0
      %3694 = vmatpush1.bf16.msra.mxu0 0
      %3695 = vmatprep.subr.bf16.mxu0 0
      %3696 = vmatpush1.bf16.msra.mxu0 0
      %3697 = vmatprep.subr.bf16.mxu0 0
      %3698 = vmatpush1.bf16.msra.mxu0 0
      %3699 = vmatprep.subr.bf16.mxu0 0
      %3700 = vmatpush1.bf16.msra.mxu0 0
      %3701 = vmatprep.subr.bf16.mxu0 0
      %3702 = vmatpush1.bf16.msra.mxu0 0
      %3703 = vmatprep.subr.bf16.mxu0 0
      %3704 = vmatpush1.bf16.msra.mxu0 0
      %3705 = vmatprep.mubr.bf16.mxu0 0
      %3706 = vmatmul.mubr.bf16.gmra.mrb[0].mxu0 %v3668
      %v3707 = vpop.f32.mrb[0].mxu0
      %v3708 = vadd.f32 0.0, %v3707
      %v3709 = vpop.f32.mrb[0].mxu0
      %v3710 = vpop.f32.mrb[0].mxu0
      %v3711 = vadd.f32 0.0, %v3710
      %v3712 = vpop.f32.mrb[0].mxu0
      %3713 = vmatprep.mubr.bf16.mxu0 0
      %3714 = vmatmul.mubr.bf16.gmra.mrb[0].mxu0 %v3671
      %v3715 = vpop.f32.mrb[0].mxu0
      %v3716 = vadd.f32 0.0, %v3715
      %v3717 = vpop.f32.mrb[0].mxu0
      %v3718 = vpop.f32.mrb[0].mxu0
      %v3719 = vadd.f32 0.0, %v3718
      %v3720 = vpop.f32.mrb[0].mxu0
      %3721 = vdwg.mxu0
      %v3722 = vpack.c.bf16 %v3711, %v3708
      %v3723 = vpack.c.bf16 %v3719, %v3716
      %3726 = vrot.lane.b32.xlu0 %v3722, 64
      %v3727 = vpop.permute.xlu0 %3726
      %3728 = vrot.lane.b32.xlu0 %v3723, 64
      %v3729 = vpop.permute.xlu0 %3728
      %3732 = vst.msk [vmem:[#allocation2] sm:$0xff] %vm1646, %v3727
      %3733 = vst.msk [vmem:[#allocation2 + $0x8] sm:$0xff] %vm1646, %v3729
      %3734 = vrot.lane.b32.xlu0 %v3168, 32
      %v3735 = vpop.permute.xlu0 %3734
      %3736 = vrot.lane.b32.xlu0 %v3171, 32
      %v3737 = vpop.permute.xlu0 %3736
      %3738 = vrot.lane.b32.xlu0 %v3169, 32
      %v3739 = vpop.permute.xlu0 %3738
      %3740 = vrot.lane.b32.xlu0 %v3172, 32
      %v3741 = vpop.permute.xlu0 %3740
      %v3743 = vsel %vm1086, %v3735, 0
      %v3746 = vsel %vm1086, %v3737, 0
      %v3749 = vsel %vm1086, %v3739, 0
      %v3752 = vsel %vm1086, %v3741, 0
      %3754 = vmatprep.subr.bf16.mxu0 0
      %3755 = vmatpush1.bf16.xpose.msra.mxu0 %v3749
      %3756 = vmatprep.subr.bf16.mxu0 0
      %3757 = vmatpush1.bf16.xpose.msra.mxu0 %v3752
      %3758 = vmatprep.subr.bf16.mxu0 0
      %3759 = vmatpush1.bf16.xpose.msra.mxu0 0
      %3760 = vmatprep.subr.bf16.mxu0 0
      %3761 = vmatpush1.bf16.xpose.msra.mxu0 0
      %3762 = vmatprep.subr.bf16.mxu0 0
      %3763 = vmatpush1.bf16.xpose.msra.mxu0 0
      %3764 = vmatprep.subr.bf16.mxu0 0
      %3765 = vmatpush1.bf16.xpose.msra.mxu0 0
      %3766 = vmatprep.subr.bf16.mxu0 0
      %3767 = vmatpush1.bf16.xpose.msra.mxu0 0
      %3768 = vmatprep.subr.bf16.mxu0 0
      %3769 = vmatpush1.bf16.xpose.msra.mxu0 0
      %3770 = vmatprep.subr.bf16.mxu0 0
      %3771 = vmatpush1.bf16.xpose.msra.mxu0 0
      %3772 = vmatprep.subr.bf16.mxu0 0
      %3773 = vmatpush1.bf16.xpose.msra.mxu0 0
      %3774 = vmatprep.subr.bf16.mxu0 0
      %3775 = vmatpush1.bf16.xpose.msra.mxu0 0
      %3776 = vmatprep.subr.bf16.mxu0 0
      %3777 = vmatpush1.bf16.xpose.msra.mxu0 0
      %3778 = vmatprep.subr.bf16.mxu0 0
      %3779 = vmatpush1.bf16.xpose.msra.mxu0 0
      %3780 = vmatprep.subr.bf16.mxu0 0
      %3781 = vmatpush1.bf16.xpose.msra.mxu0 0
      %3782 = vmatprep.subr.bf16.mxu0 0
      %3783 = vmatpush1.bf16.xpose.msra.mxu0 0
      %3784 = vmatprep.subr.bf16.mxu0 0
      %3785 = vmatpush1.bf16.xpose.msra.mxu0 0
      %3786 = vmatprep.mubr.bf16.mxu0 0
      %3787 = vmatmul.mubr.bf16.gmra.mrb[0].mxu0 %v3743
      %v3788 = vpop.f32.mrb[0].mxu0
      %v3789 = vadd.f32 %v553, %v3788
      %v3790 = vpop.f32.mrb[0].mxu0
      %v3791 = vpop.f32.mrb[0].mxu0
      %v3792 = vadd.f32 %v553, %v3791
      %v3793 = vpop.f32.mrb[0].mxu0
      %3794 = vmatprep.mubr.bf16.mxu0 0
      %3795 = vmatmul.mubr.bf16.gmra.mrb[0].mxu0 %v3746
      %v3796 = vpop.f32.mrb[0].mxu0
      %v3797 = vadd.f32 %v553, %v3796
      %v3798 = vpop.f32.mrb[0].mxu0
      %v3799 = vpop.f32.mrb[0].mxu0
      %v3800 = vadd.f32 %v553, %v3799
      %v3801 = vpop.f32.mrb[0].mxu0
      %3802 = vdwg.mxu0
      %v3803 = vsel %vm1086, %v3789, -inf
      %3804 = vmax.xlane.f32.xlu0 %v3803
      %v3805 = vpop.xlane.xlu0 %3804
      %v3806 = vsel %vm1086, %v3792, -inf
      %3807 = vmax.xlane.f32.xlu0 %v3806
      %v3808 = vpop.xlane.xlu0 %3807
      %v3809 = vsel %vm1086, %v3797, -inf
      %3810 = vmax.xlane.f32.xlu0 %v3809
      %v3811 = vpop.xlane.xlu0 %3810
      %v3812 = vsel %vm1086, %v3800, -inf
      %3813 = vmax.xlane.f32.xlu0 %v3812
      %v3814 = vpop.xlane.xlu0 %3813
      %v3815 = vsub.f32 %v3789, %v3805
      %v3816 = vsub.f32 %v3792, %v3808
      %v3817 = vsub.f32 %v3797, %v3811
      %v3818 = vsub.f32 %v3800, %v3814
      %v3819 = vmul.f32 %v3815, 1.442695
      %v3820 = vpow.pop %v3819
      %v3821 = vmul.f32 %v3816, 1.442695
      %v3822 = vpow.pop %v3821
      %v3823 = vmul.f32 %v3817, 1.442695
      %v3824 = vpow.pop %v3823
      %v3825 = vmul.f32 %v3818, 1.442695
      %v3826 = vpow.pop %v3825
      %v3827 = vsel %vm1086, %v3820, 0.0
      %3828 = vadd.xlane.f32.xlu0 %v3827
      %v3829 = vpop.xlane.xlu0 %3828
      %v3830 = vsel %vm1086, %v3822, 0.0
      %3831 = vadd.xlane.f32.xlu0 %v3830
      %v3832 = vpop.xlane.xlu0 %3831
      %v3833 = vsel %vm1086, %v3824, 0.0
      %3834 = vadd.xlane.f32.xlu0 %v3833
      %v3835 = vpop.xlane.xlu0 %3834
      %v3836 = vsel %vm1086, %v3826, 0.0
      %3837 = vadd.xlane.f32.xlu0 %v3836
      %v3838 = vpop.xlane.xlu0 %3837
      %v3839 = vrcp.pop %v3829
      %v3840 = vmul.f32 1.0, %v3839
      %v3841 = vrcp.pop %v3832
      %v3842 = vmul.f32 1.0, %v3841
      %v3843 = vrcp.pop %v3835
      %v3844 = vmul.f32 1.0, %v3843
      %v3845 = vrcp.pop %v3838
      %v3846 = vmul.f32 1.0, %v3845
      %v3847 = vmul.f32 %v3820, %v3840
      %v3848 = vmul.f32 %v3822, %v3842
      %v3849 = vmul.f32 %v3824, %v3844
      %v3850 = vmul.f32 %v3826, %v3846
      %v3851 = vpack.c.bf16 %v3848, %v3847
      %v3852 = vpack.c.bf16 %v3850, %v3849
      %3853 = vrot.lane.b32.xlu0 %v3170, 32
      %v3854 = vpop.permute.xlu0 %3853
      %3855 = vrot.lane.b32.xlu0 %v3173, 32
      %v3856 = vpop.permute.xlu0 %3855
      %v3860 = vsel %vm1086, %v3851, 0
      %v3863 = vsel %vm1086, %v3852, 0
      %3865 = vmatprep.subr.bf16.mxu0 0
      %3866 = vmatpush1.bf16.msra.mxu0 %v3854
      %3867 = vmatprep.subr.bf16.mxu0 0
      %3868 = vmatpush1.bf16.msra.mxu0 %v3856
      %3869 = vmatprep.subr.bf16.mxu0 0
      %3870 = vmatpush1.bf16.msra.mxu0 0
      %3871 = vmatprep.subr.bf16.mxu0 0
      %3872 = vmatpush1.bf16.msra.mxu0 0
      %3873 = vmatprep.subr.bf16.mxu0 0
      %3874 = vmatpush1.bf16.msra.mxu0 0
      %3875 = vmatprep.subr.bf16.mxu0 0
      %3876 = vmatpush1.bf16.msra.mxu0 0
      %3877 = vmatprep.subr.bf16.mxu0 0
      %3878 = vmatpush1.bf16.msra.mxu0 0
      %3879 = vmatprep.subr.bf16.mxu0 0
      %3880 = vmatpush1.bf16.msra.mxu0 0
      %3881 = vmatprep.subr.bf16.mxu0 0
      %3882 = vmatpush1.bf16.msra.mxu0 0
      %3883 = vmatprep.subr.bf16.mxu0 0
      %3884 = vmatpush1.bf16.msra.mxu0 0
      %3885 = vmatprep.subr.bf16.mxu0 0
      %3886 = vmatpush1.bf16.msra.mxu0 0
      %3887 = vmatprep.subr.bf16.mxu0 0
      %3888 = vmatpush1.bf16.msra.mxu0 0
      %3889 = vmatprep.subr.bf16.mxu0 0
      %3890 = vmatpush1.bf16.msra.mxu0 0
      %3891 = vmatprep.subr.bf16.mxu0 0
      %3892 = vmatpush1.bf16.msra.mxu0 0
      %3893 = vmatprep.subr.bf16.mxu0 0
      %3894 = vmatpush1.bf16.msra.mxu0 0
      %3895 = vmatprep.subr.bf16.mxu0 0
      %3896 = vmatpush1.bf16.msra.mxu0 0
      %3897 = vmatprep.mubr.bf16.mxu0 0
      %3898 = vmatmul.mubr.bf16.gmra.mrb[0].mxu0 %v3860
      %v3899 = vpop.f32.mrb[0].mxu0
      %v3900 = vadd.f32 0.0, %v3899
      %v3901 = vpop.f32.mrb[0].mxu0
      %v3902 = vpop.f32.mrb[0].mxu0
      %v3903 = vadd.f32 0.0, %v3902
      %v3904 = vpop.f32.mrb[0].mxu0
      %3905 = vmatprep.mubr.bf16.mxu0 0
      %3906 = vmatmul.mubr.bf16.gmra.mrb[0].mxu0 %v3863
      %v3907 = vpop.f32.mrb[0].mxu0
      %v3908 = vadd.f32 0.0, %v3907
      %v3909 = vpop.f32.mrb[0].mxu0
      %v3910 = vpop.f32.mrb[0].mxu0
      %v3911 = vadd.f32 0.0, %v3910
      %v3912 = vpop.f32.mrb[0].mxu0
      %3913 = vdwg.mxu0
      %v3914 = vpack.c.bf16 %v3903, %v3900
      %v3915 = vpack.c.bf16 %v3911, %v3908
      %3918 = vrot.lane.b32.xlu0 %v3914, 96
      %v3919 = vpop.permute.xlu0 %3918
      %3920 = vrot.lane.b32.xlu0 %v3915, 96
      %v3921 = vpop.permute.xlu0 %3920
      %3924 = vst.msk [vmem:[#allocation2] sm:$0xff] %vm1839, %v3919
      %3925 = vst.msk [vmem:[#allocation2 + $0x8] sm:$0xff] %vm1839, %v3921
      %v3926 = vld [vmem:[#allocation2] sm:$0xff]
      %v3927 = vld [vmem:[#allocation2 + $0x8] sm:$0xff]
      %s3928 = scalar_lea.vmem %s7, 64
      %v3929 = vld [vmem:[%s3928] sm:$0xf]
      %v3930 = vld [vmem:[%s3928 + $0x4] sm:$0xf]
      %v3931 = vld [vmem:[%s3928 + $0x8] sm:$0xf]
      %v3932 = vld [vmem:[%s3928 + $0xc] sm:$0xf]
      %v3933 = vld [vmem:[%s3928 + $0x10] sm:$0xf]
      %v3934 = vld [vmem:[%s3928 + $0x14] sm:$0xf]
      %v3935 = vld [vmem:[%s3928 + $0x18] sm:$0xf]
      %v3936 = vld [vmem:[%s3928 + $0x1c] sm:$0xf]
      %v3937 = vld [vmem:[%s3928 + $0x20] sm:$0xf]
      %v3938 = vld [vmem:[%s3928 + $0x24] sm:$0xf]
      %v3939 = vld [vmem:[%s3928 + $0x28] sm:$0xf]
      %v3940 = vld [vmem:[%s3928 + $0x2c] sm:$0xf]
      %v3941 = vld [vmem:[%s3928 + $0x30] sm:$0xf]
      %v3942 = vld [vmem:[%s3928 + $0x34] sm:$0xf]
      %v3943 = vld [vmem:[%s3928 + $0x38] sm:$0xf]
      %v3944 = vld [vmem:[%s3928 + $0x3c] sm:$0xf]
      %v3961 = vunpack.c.l.b16 %v3929
      %v3962 = vunpack.c.l.b16 %v3930
      %v3963 = vunpack.c.l.b16 %v3931
      %v3964 = vunpack.c.l.b16 %v3932
      %v3965 = vunpack.c.l.b16 %v3933
      %v3966 = vunpack.c.l.b16 %v3934
      %v3967 = vunpack.c.l.b16 %v3935
      %v3968 = vunpack.c.l.b16 %v3936
      %v3969 = vunpack.c.l.b16 %v3937
      %v3970 = vunpack.c.l.b16 %v3938
      %v3971 = vunpack.c.l.b16 %v3939
      %v3972 = vunpack.c.l.b16 %v3940
      %v3973 = vunpack.c.l.b16 %v3941
      %v3974 = vunpack.c.l.b16 %v3942
      %v3975 = vunpack.c.l.b16 %v3943
      %v3976 = vunpack.c.l.b16 %v3944
      %v3977 = vpack.c.b16 %v3962, %v3961
      %v3978 = vpack.c.b16 %v3964, %v3963
      %v3979 = vpack.c.b16 %v3966, %v3965
      %v3980 = vpack.c.b16 %v3968, %v3967
      %v3981 = vpack.c.b16 %v3970, %v3969
      %v3982 = vpack.c.b16 %v3972, %v3971
      %v3983 = vpack.c.b16 %v3974, %v3973
      %v3984 = vpack.c.b16 %v3976, %v3975
      %3993 = vmatprep.subr.bf16.mxu0 0
      %3994 = vmatpush1.bf16.msra.mxu0 %v3977
      %3995 = vmatprep.subr.bf16.mxu0 0
      %3996 = vmatpush1.bf16.msra.mxu0 %v3978
      %3997 = vmatprep.subr.bf16.mxu0 0
      %3998 = vmatpush1.bf16.msra.mxu0 %v3979
      %3999 = vmatprep.subr.bf16.mxu0 0
      %4000 = vmatpush1.bf16.msra.mxu0 %v3980
      %4001 = vmatprep.subr.bf16.mxu0 0
      %4002 = vmatpush1.bf16.msra.mxu0 %v3981
      %4003 = vmatprep.subr.bf16.mxu0 0
      %4004 = vmatpush1.bf16.msra.mxu0 %v3982
      %4005 = vmatprep.subr.bf16.mxu0 0
      %4006 = vmatpush1.bf16.msra.mxu0 %v3983
      %4007 = vmatprep.subr.bf16.mxu0 0
      %4008 = vmatpush1.bf16.msra.mxu0 %v3984
      %4009 = vmatprep.subr.bf16.mxu0 0
      %4010 = vmatpush1.bf16.msra.mxu0 0
      %4011 = vmatprep.subr.bf16.mxu0 0
      %4012 = vmatpush1.bf16.msra.mxu0 0
      %4013 = vmatprep.subr.bf16.mxu0 0
      %4014 = vmatpush1.bf16.msra.mxu0 0
      %4015 = vmatprep.subr.bf16.mxu0 0
      %4016 = vmatpush1.bf16.msra.mxu0 0
      %4017 = vmatprep.subr.bf16.mxu0 0
      %4018 = vmatpush1.bf16.msra.mxu0 0
      %4019 = vmatprep.subr.bf16.mxu0 0
      %4020 = vmatpush1.bf16.msra.mxu0 0
      %4021 = vmatprep.subr.bf16.mxu0 0
      %4022 = vmatpush1.bf16.msra.mxu0 0
      %4023 = vmatprep.subr.bf16.mxu0 0
      %4024 = vmatpush1.bf16.msra.mxu0 0
      %4025 = vmatprep.mubr.bf16.mxu0 0
      %4026 = vmatmul.mubr.bf16.gmra.mrb[0].mxu0 %v3926
      %v4027 = vpop.f32.mrb[0].mxu0
      %v4028 = vadd.f32 0.0, %v4027
      %v4029 = vpop.f32.mrb[0].mxu0
      %v4030 = vpop.f32.mrb[0].mxu0
      %v4031 = vadd.f32 0.0, %v4030
      %v4032 = vpop.f32.mrb[0].mxu0
      %4033 = vmatprep.mubr.bf16.mxu0 0
      %4034 = vmatmul.mubr.bf16.gmra.mrb[0].mxu0 %v3927
      %v4035 = vpop.f32.mrb[0].mxu0
      %v4036 = vadd.f32 0.0, %v4035
      %v4037 = vpop.f32.mrb[0].mxu0
      %v4038 = vpop.f32.mrb[0].mxu0
      %v4039 = vadd.f32 0.0, %v4038
      %v4040 = vpop.f32.mrb[0].mxu0
      %4041 = vdwg.mxu0
      %v4042 = vadd.f32 %v2813, %v4028
      %v4043 = vadd.f32 %v2814, %v4031
      %v4044 = vadd.f32 %v2815, %v4036
      %v4045 = vadd.f32 %v2816, %v4039
      %s4046 = scalar_lea.vmem %s8, 1
      %v4047 = vld [vmem:[%s4046] sm:$0x1]
      %v4049 = vlaneseq
      %v4050 = vshrl.u32 %v4049, 7
      %v4051 = vsub.s32 0, %v4050
      %v4052 = vrot.slane %v4047, %v4051
      %v4054 = vadd.f32 %v4042, %v4052
      %v4055 = vadd.f32 %v4043, %v4052
      %v4056 = vadd.f32 %v4044, %v4052
      %v4057 = vadd.f32 %v4045, %v4052
      %s4058 = scalar_lea.vmem %s9, 1
      %v4059 = vld [vmem:[%s4058] sm:$0x1]
      %s4060 = scalar_lea.vmem %s10, 1
      %v4061 = vld [vmem:[%s4060] sm:$0x1]
      %4062 = vadd.xlane.f32.xlu0 %v4054
      %v4063 = vpop.xlane.xlu0 %4062
      %4064 = vadd.xlane.f32.xlu0 %v4055
      %v4065 = vpop.xlane.xlu0 %4064
      %4066 = vadd.xlane.f32.xlu0 %v4056
      %v4067 = vpop.xlane.xlu0 %4066
      %4068 = vadd.xlane.f32.xlu0 %v4057
      %v4069 = vpop.xlane.xlu0 %4068
      %v4070 = vmul.f32 %v4063, %v742
      %v4071 = vmul.f32 %v4065, %v742
      %v4072 = vmul.f32 %v4067, %v742
      %v4073 = vmul.f32 %v4069, %v742
      %v4074 = vsub.f32 %v4054, %v4070
      %v4075 = vsub.f32 %v4055, %v4071
      %v4076 = vsub.f32 %v4056, %v4072
      %v4077 = vsub.f32 %v4057, %v4073
      %v4078 = vmul.f32 %v4074, %v4074
      %v4079 = vmul.f32 %v4075, %v4075
      %v4080 = vmul.f32 %v4076, %v4076
      %v4081 = vmul.f32 %v4077, %v4077
      %4082 = vadd.xlane.f32.xlu0 %v4078
      %v4083 = vpop.xlane.xlu0 %4082
      %4084 = vadd.xlane.f32.xlu0 %v4079
      %v4085 = vpop.xlane.xlu0 %4084
      %4086 = vadd.xlane.f32.xlu0 %v4080
      %v4087 = vpop.xlane.xlu0 %4086
      %4088 = vadd.xlane.f32.xlu0 %v4081
      %v4089 = vpop.xlane.xlu0 %4088
      %v4090 = vmul.f32 %v4083, %v742
      %v4091 = vmul.f32 %v4085, %v742
      %v4092 = vmul.f32 %v4087, %v742
      %v4093 = vmul.f32 %v4089, %v742
      %v4094 = vadd.f32 %v4090, 1e-12
      %v4095 = vadd.f32 %v4091, 1e-12
      %v4096 = vadd.f32 %v4092, 1e-12
      %v4097 = vadd.f32 %v4093, 1e-12
      %v4098 = vrsqrt.pop %v4094
      %v4099 = vrsqrt.pop %v4095
      %v4100 = vrsqrt.pop %v4096
      %v4101 = vrsqrt.pop %v4097
      %v4102 = vmul.f32 %v4074, %v4098
      %v4103 = vmul.f32 %v4075, %v4099
      %v4104 = vmul.f32 %v4076, %v4100
      %v4105 = vmul.f32 %v4077, %v4101
      %v4107 = vlaneseq
      %v4108 = vshrl.u32 %v4107, 7
      %v4109 = vsub.s32 0, %v4108
      %v4110 = vrot.slane %v4059, %v4109
      %v4112 = vmul.f32 %v4102, %v4110
      %v4113 = vmul.f32 %v4103, %v4110
      %v4114 = vmul.f32 %v4104, %v4110
      %v4115 = vmul.f32 %v4105, %v4110
      %v4117 = vlaneseq
      %v4118 = vshrl.u32 %v4117, 7
      %v4119 = vsub.s32 0, %v4118
      %v4120 = vrot.slane %v4061, %v4119
      %v4122 = vadd.f32 %v4112, %v4120
      %v4123 = vadd.f32 %v4113, %v4120
      %v4124 = vadd.f32 %v4114, %v4120
      %v4125 = vadd.f32 %v4115, %v4120
      %v4126 = vpack.c.bf16 %v4123, %v4122
      %v4127 = vpack.c.bf16 %v4125, %v4124
      %s4128 = scalar_lea.vmem %s11, 256
      %v4129 = vld [vmem:[%s4128] sm:$0xff]
      %v4130 = vld [vmem:[%s4128 + $0x8] sm:$0xff]
      %v4131 = vld [vmem:[%s4128 + $0x10] sm:$0xff]
      %v4132 = vld [vmem:[%s4128 + $0x18] sm:$0xff]
      %v4133 = vld [vmem:[%s4128 + $0x20] sm:$0xff]
      %v4134 = vld [vmem:[%s4128 + $0x28] sm:$0xff]
      %v4135 = vld [vmem:[%s4128 + $0x30] sm:$0xff]
      %v4136 = vld [vmem:[%s4128 + $0x38] sm:$0xff]
      %v4137 = vld [vmem:[%s4128 + $0x40] sm:$0xff]
      %v4138 = vld [vmem:[%s4128 + $0x48] sm:$0xff]
      %v4139 = vld [vmem:[%s4128 + $0x50] sm:$0xff]
      %v4140 = vld [vmem:[%s4128 + $0x58] sm:$0xff]
      %v4141 = vld [vmem:[%s4128 + $0x60] sm:$0xff]
      %v4142 = vld [vmem:[%s4128 + $0x68] sm:$0xff]
      %v4143 = vld [vmem:[%s4128 + $0x70] sm:$0xff]
      %v4144 = vld [vmem:[%s4128 + $0x78] sm:$0xff]
      %v4145 = vld [vmem:[%s4128 + $0x80] sm:$0xff]
      %v4146 = vld [vmem:[%s4128 + $0x88] sm:$0xff]
      %v4147 = vld [vmem:[%s4128 + $0x90] sm:$0xff]
      %v4148 = vld [vmem:[%s4128 + $0x98] sm:$0xff]
      %v4149 = vld [vmem:[%s4128 + $0xa0] sm:$0xff]
      %v4150 = vld [vmem:[%s4128 + $0xa8] sm:$0xff]
      %v4151 = vld [vmem:[%s4128 + $0xb0] sm:$0xff]
      %v4152 = vld [vmem:[%s4128 + $0xb8] sm:$0xff]
      %v4153 = vld [vmem:[%s4128 + $0xc0] sm:$0xff]
      %v4154 = vld [vmem:[%s4128 + $0xc8] sm:$0xff]
      %v4155 = vld [vmem:[%s4128 + $0xd0] sm:$0xff]
      %v4156 = vld [vmem:[%s4128 + $0xd8] sm:$0xff]
      %v4157 = vld [vmem:[%s4128 + $0xe0] sm:$0xff]
      %v4158 = vld [vmem:[%s4128 + $0xe8] sm:$0xff]
      %v4159 = vld [vmem:[%s4128 + $0xf0] sm:$0xff]
      %v4160 = vld [vmem:[%s4128 + $0xf8] sm:$0xff]
      %s4161 = scalar_lea.vmem %s12, 4
      %v4162 = vld [vmem:[%s4161] sm:$0xf]
      %v4164 = vlaneseq
      %v4165 = vshrl.u32 %v4164, 7
      %v4166 = vsub.s32 0, %v4165
      %v4167 = vrot.slane %v4162, %v4166
      %v4168 = vlaneseq
      %v4169 = vshrl.u32 %v4168, 7
      %v4170 = vsub.s32 1, %v4169
      %v4171 = vrot.slane %v4162, %v4170
      %v4172 = vlaneseq
      %v4173 = vshrl.u32 %v4172, 7
      %v4174 = vsub.s32 2, %v4173
      %v4175 = vrot.slane %v4162, %v4174
      %v4176 = vlaneseq
      %v4177 = vshrl.u32 %v4176, 7
      %v4178 = vsub.s32 3, %v4177
      %v4179 = vrot.slane %v4162, %v4178
      %v4216 = vunpack.c.l.b16 %v4129
      %v4217 = vunpack.c.h.b16 %v4129
      %v4218 = vunpack.c.l.b16 %v4130
      %v4219 = vunpack.c.h.b16 %v4130
      %v4220 = vunpack.c.l.b16 %v4131
      %v4221 = vunpack.c.h.b16 %v4131
      %v4222 = vunpack.c.l.b16 %v4132
      %v4223 = vunpack.c.h.b16 %v4132
      %v4224 = vunpack.c.l.b16 %v4133
      %v4225 = vunpack.c.h.b16 %v4133
      %v4226 = vunpack.c.l.b16 %v4134
      %v4227 = vunpack.c.h.b16 %v4134
      %v4228 = vunpack.c.l.b16 %v4135
      %v4229 = vunpack.c.h.b16 %v4135
      %v4230 = vunpack.c.l.b16 %v4136
      %v4231 = vunpack.c.h.b16 %v4136
      %v4232 = vunpack.c.l.b16 %v4137
      %v4233 = vunpack.c.h.b16 %v4137
      %v4234 = vunpack.c.l.b16 %v4138
      %v4235 = vunpack.c.h.b16 %v4138
      %v4236 = vunpack.c.l.b16 %v4139
      %v4237 = vunpack.c.h.b16 %v4139
      %v4238 = vunpack.c.l.b16 %v4140
      %v4239 = vunpack.c.h.b16 %v4140
      %v4240 = vunpack.c.l.b16 %v4141
      %v4241 = vunpack.c.h.b16 %v4141
      %v4242 = vunpack.c.l.b16 %v4142
      %v4243 = vunpack.c.h.b16 %v4142
      %v4244 = vunpack.c.l.b16 %v4143
      %v4245 = vunpack.c.h.b16 %v4143
      %v4246 = vunpack.c.l.b16 %v4144
      %v4247 = vunpack.c.h.b16 %v4144
      %v4248 = vunpack.c.l.b16 %v4145
      %v4249 = vunpack.c.h.b16 %v4145
      %v4250 = vunpack.c.l.b16 %v4146
      %v4251 = vunpack.c.h.b16 %v4146
      %v4252 = vunpack.c.l.b16 %v4147
      %v4253 = vunpack.c.h.b16 %v4147
      %v4254 = vunpack.c.l.b16 %v4148
      %v4255 = vunpack.c.h.b16 %v4148
      %v4256 = vunpack.c.l.b16 %v4149
      %v4257 = vunpack.c.h.b16 %v4149
      %v4258 = vunpack.c.l.b16 %v4150
      %v4259 = vunpack.c.h.b16 %v4150
      %v4260 = vunpack.c.l.b16 %v4151
      %v4261 = vunpack.c.h.b16 %v4151
      %v4262 = vunpack.c.l.b16 %v4152
      %v4263 = vunpack.c.h.b16 %v4152
      %v4264 = vunpack.c.l.b16 %v4153
      %v4265 = vunpack.c.h.b16 %v4153
      %v4266 = vunpack.c.l.b16 %v4154
      %v4267 = vunpack.c.h.b16 %v4154
      %v4268 = vunpack.c.l.b16 %v4155
      %v4269 = vunpack.c.h.b16 %v4155
      %v4270 = vunpack.c.l.b16 %v4156
      %v4271 = vunpack.c.h.b16 %v4156
      %v4272 = vunpack.c.l.b16 %v4157
      %v4273 = vunpack.c.h.b16 %v4157
      %v4274 = vunpack.c.l.b16 %v4158
      %v4275 = vunpack.c.h.b16 %v4158
      %v4276 = vunpack.c.l.b16 %v4159
      %v4277 = vunpack.c.h.b16 %v4159
      %v4278 = vunpack.c.l.b16 %v4160
      %v4279 = vunpack.c.h.b16 %v4160
      %v4280 = vpack.c.b16 %v4220, %v4216
      %v4281 = vpack.c.b16 %v4221, %v4217
      %v4282 = vpack.c.b16 %v4222, %v4218
      %v4283 = vpack.c.b16 %v4223, %v4219
      %v4284 = vpack.c.b16 %v4228, %v4224
      %v4285 = vpack.c.b16 %v4229, %v4225
      %v4286 = vpack.c.b16 %v4230, %v4226
      %v4287 = vpack.c.b16 %v4231, %v4227
      %v4288 = vpack.c.b16 %v4236, %v4232
      %v4289 = vpack.c.b16 %v4237, %v4233
      %v4290 = vpack.c.b16 %v4238, %v4234
      %v4291 = vpack.c.b16 %v4239, %v4235
      %v4292 = vpack.c.b16 %v4244, %v4240
      %v4293 = vpack.c.b16 %v4245, %v4241
      %v4294 = vpack.c.b16 %v4246, %v4242
      %v4295 = vpack.c.b16 %v4247, %v4243
      %v4296 = vpack.c.b16 %v4252, %v4248
      %v4297 = vpack.c.b16 %v4253, %v4249
      %v4298 = vpack.c.b16 %v4254, %v4250
      %v4299 = vpack.c.b16 %v4255, %v4251
      %v4300 = vpack.c.b16 %v4260, %v4256
      %v4301 = vpack.c.b16 %v4261, %v4257
      %v4302 = vpack.c.b16 %v4262, %v4258
      %v4303 = vpack.c.b16 %v4263, %v4259
      %v4304 = vpack.c.b16 %v4268, %v4264
      %v4305 = vpack.c.b16 %v4269, %v4265
      %v4306 = vpack.c.b16 %v4270, %v4266
      %v4307 = vpack.c.b16 %v4271, %v4267
      %v4308 = vpack.c.b16 %v4276, %v4272
      %v4309 = vpack.c.b16 %v4277, %v4273
      %v4310 = vpack.c.b16 %v4278, %v4274
      %v4311 = vpack.c.b16 %v4279, %v4275
      %4344 = vmatprep.subr.bf16.mxu0 %v4281
      %4345 = vmatpush1.bf16.msra.mxu0 %v4280
      %4346 = vmatprep.subr.bf16.mxu0 %v4285
      %4347 = vmatpush1.bf16.msra.mxu0 %v4284
      %4348 = vmatprep.subr.bf16.mxu0 %v4289
      %4349 = vmatpush1.bf16.msra.mxu0 %v4288
      %4350 = vmatprep.subr.bf16.mxu0 %v4293
      %4351 = vmatpush1.bf16.msra.mxu0 %v4292
      %4352 = vmatprep.subr.bf16.mxu0 %v4297
      %4353 = vmatpush1.bf16.msra.mxu0 %v4296
      %4354 = vmatprep.subr.bf16.mxu0 %v4301
      %4355 = vmatpush1.bf16.msra.mxu0 %v4300
      %4356 = vmatprep.subr.bf16.mxu0 %v4305
      %4357 = vmatpush1.bf16.msra.mxu0 %v4304
      %4358 = vmatprep.subr.bf16.mxu0 %v4309
      %4359 = vmatpush1.bf16.msra.mxu0 %v4308
      %4360 = vmatprep.subr.bf16.mxu0 0
      %4361 = vmatpush1.bf16.msra.mxu0 0
      %4362 = vmatprep.subr.bf16.mxu0 0
      %4363 = vmatpush1.bf16.msra.mxu0 0
      %4364 = vmatprep.subr.bf16.mxu0 0
      %4365 = vmatpush1.bf16.msra.mxu0 0
      %4366 = vmatprep.subr.bf16.mxu0 0
      %4367 = vmatpush1.bf16.msra.mxu0 0
      %4368 = vmatprep.subr.bf16.mxu0 0
      %4369 = vmatpush1.bf16.msra.mxu0 0
      %4370 = vmatprep.subr.bf16.mxu0 0
      %4371 = vmatpush1.bf16.msra.mxu0 0
      %4372 = vmatprep.subr.bf16.mxu0 0
      %4373 = vmatpush1.bf16.msra.mxu0 0
      %4374 = vmatprep.subr.bf16.mxu0 0
      %4375 = vmatpush1.bf16.msra.mxu0 0
      %4376 = vmatprep.mubr.bf16.mxu0 0
      %4377 = vmatmul.mubr.bf16.gmra.mrb[0].mxu0 %v4126
      %v4378 = vpop.f32.mrb[0].mxu0
      %v4379 = vadd.f32 %v4167, %v4378
      %v4380 = vpop.f32.mrb[0].mxu0
      %v4381 = vadd.f32 %v4171, %v4380
      %v4382 = vpop.f32.mrb[0].mxu0
      %v4383 = vadd.f32 %v4167, %v4382
      %v4384 = vpop.f32.mrb[0].mxu0
      %v4385 = vadd.f32 %v4171, %v4384
      %4386 = vmatprep.mubr.bf16.mxu0 0
      %4387 = vmatmul.mubr.bf16.gmra.mrb[0].mxu0 %v4127
      %v4388 = vpop.f32.mrb[0].mxu0
      %v4389 = vadd.f32 %v4167, %v4388
      %v4390 = vpop.f32.mrb[0].mxu0
      %v4391 = vadd.f32 %v4171, %v4390
      %v4392 = vpop.f32.mrb[0].mxu0
      %v4393 = vadd.f32 %v4167, %v4392
      %v4394 = vpop.f32.mrb[0].mxu0
      %v4395 = vadd.f32 %v4171, %v4394
      %4396 = vdwg.mxu0
      %4397 = vmatprep.subr.bf16.mxu0 %v4283
      %4398 = vmatpush1.bf16.msra.mxu0 %v4282
      %4399 = vmatprep.subr.bf16.mxu0 %v4287
      %4400 = vmatpush1.bf16.msra.mxu0 %v4286
      %4401 = vmatprep.subr.bf16.mxu0 %v4291
      %4402 = vmatpush1.bf16.msra.mxu0 %v4290
      %4403 = vmatprep.subr.bf16.mxu0 %v4295
      %4404 = vmatpush1.bf16.msra.mxu0 %v4294
      %4405 = vmatprep.subr.bf16.mxu0 %v4299
      %4406 = vmatpush1.bf16.msra.mxu0 %v4298
      %4407 = vmatprep.subr.bf16.mxu0 %v4303
      %4408 = vmatpush1.bf16.msra.mxu0 %v4302
      %4409 = vmatprep.subr.bf16.mxu0 %v4307
      %4410 = vmatpush1.bf16.msra.mxu0 %v4306
      %4411 = vmatprep.subr.bf16.mxu0 %v4311
      %4412 = vmatpush1.bf16.msra.mxu0 %v4310
      %4413 = vmatprep.subr.bf16.mxu0 0
      %4414 = vmatpush1.bf16.msra.mxu0 0
      %4415 = vmatprep.subr.bf16.mxu0 0
      %4416 = vmatpush1.bf16.msra.mxu0 0
      %4417 = vmatprep.subr.bf16.mxu0 0
      %4418 = vmatpush1.bf16.msra.mxu0 0
      %4419 = vmatprep.subr.bf16.mxu0 0
      %4420 = vmatpush1.bf16.msra.mxu0 0
      %4421 = vmatprep.subr.bf16.mxu0 0
      %4422 = vmatpush1.bf16.msra.mxu0 0
      %4423 = vmatprep.subr.bf16.mxu0 0
      %4424 = vmatpush1.bf16.msra.mxu0 0
      %4425 = vmatprep.subr.bf16.mxu0 0
      %4426 = vmatpush1.bf16.msra.mxu0 0
      %4427 = vmatprep.subr.bf16.mxu0 0
      %4428 = vmatpush1.bf16.msra.mxu0 0
      %4429 = vmatprep.mubr.bf16.mxu0 0
      %4430 = vmatmul.mubr.bf16.gmra.mrb[0].mxu0 %v4126
      %v4431 = vpop.f32.mrb[0].mxu0
      %v4432 = vadd.f32 %v4175, %v4431
      %v4433 = vpop.f32.mrb[0].mxu0
      %v4434 = vadd.f32 %v4179, %v4433
      %v4435 = vpop.f32.mrb[0].mxu0
      %v4436 = vadd.f32 %v4175, %v4435
      %v4437 = vpop.f32.mrb[0].mxu0
      %v4438 = vadd.f32 %v4179, %v4437
      %4439 = vmatprep.mubr.bf16.mxu0 0
      %4440 = vmatmul.mubr.bf16.gmra.mrb[0].mxu0 %v4127
      %v4441 = vpop.f32.mrb[0].mxu0
      %v4442 = vadd.f32 %v4175, %v4441
      %v4443 = vpop.f32.mrb[0].mxu0
      %v4444 = vadd.f32 %v4179, %v4443
      %v4445 = vpop.f32.mrb[0].mxu0
      %v4446 = vadd.f32 %v4175, %v4445
      %v4447 = vpop.f32.mrb[0].mxu0
      %v4448 = vadd.f32 %v4179, %v4447
      %4449 = vdwg.mxu0
      %v4450 = vmul.f32 %v4379, 0.5
      %v4451 = vmul.f32 %v4381, 0.5
      %v4452 = vmul.f32 %v4432, 0.5
      %v4453 = vmul.f32 %v4434, 0.5
      %v4454 = vmul.f32 %v4383, 0.5
      %v4455 = vmul.f32 %v4385, 0.5
      %v4456 = vmul.f32 %v4436, 0.5
      %v4457 = vmul.f32 %v4438, 0.5
      %v4458 = vmul.f32 %v4389, 0.5
      %v4459 = vmul.f32 %v4391, 0.5
      %v4460 = vmul.f32 %v4442, 0.5
      %v4461 = vmul.f32 %v4444, 0.5
      %v4462 = vmul.f32 %v4393, 0.5
      %v4463 = vmul.f32 %v4395, 0.5
      %v4464 = vmul.f32 %v4446, 0.5
      %v4465 = vmul.f32 %v4448, 0.5
      %v4466 = vmul.f32 %v4379, 0.70710677
      %v4467 = vmul.f32 %v4381, 0.70710677
      %v4468 = vmul.f32 %v4432, 0.70710677
      %v4469 = vmul.f32 %v4434, 0.70710677
      %v4470 = vmul.f32 %v4383, 0.70710677
      %v4471 = vmul.f32 %v4385, 0.70710677
      %v4472 = vmul.f32 %v4436, 0.70710677
      %v4473 = vmul.f32 %v4438, 0.70710677
      %v4474 = vmul.f32 %v4389, 0.70710677
      %v4475 = vmul.f32 %v4391, 0.70710677
      %v4476 = vmul.f32 %v4442, 0.70710677
      %v4477 = vmul.f32 %v4444, 0.70710677
      %v4478 = vmul.f32 %v4393, 0.70710677
      %v4479 = vmul.f32 %v4395, 0.70710677
      %v4480 = vmul.f32 %v4446, 0.70710677
      %v4481 = vmul.f32 %v4448, 0.70710677
      %v4482 = verf.f32.pop %v4466
      %v4483 = verf.f32.pop %v4467
      %v4484 = verf.f32.pop %v4468
      %v4485 = verf.f32.pop %v4469
      %v4486 = verf.f32.pop %v4470
      %v4487 = verf.f32.pop %v4471
      %v4488 = verf.f32.pop %v4472
      %v4489 = verf.f32.pop %v4473
      %v4490 = verf.f32.pop %v4474
      %v4491 = verf.f32.pop %v4475
      %v4492 = verf.f32.pop %v4476
      %v4493 = verf.f32.pop %v4477
      %v4494 = verf.f32.pop %v4478
      %v4495 = verf.f32.pop %v4479
      %v4496 = verf.f32.pop %v4480
      %v4497 = verf.f32.pop %v4481
      %v4498 = vadd.f32 %v4482, 1.0
      %v4499 = vadd.f32 %v4483, 1.0
      %v4500 = vadd.f32 %v4484, 1.0
      %v4501 = vadd.f32 %v4485, 1.0
      %v4502 = vadd.f32 %v4486, 1.0
      %v4503 = vadd.f32 %v4487, 1.0
      %v4504 = vadd.f32 %v4488, 1.0
      %v4505 = vadd.f32 %v4489, 1.0
      %v4506 = vadd.f32 %v4490, 1.0
      %v4507 = vadd.f32 %v4491, 1.0
      %v4508 = vadd.f32 %v4492, 1.0
      %v4509 = vadd.f32 %v4493, 1.0
      %v4510 = vadd.f32 %v4494, 1.0
      %v4511 = vadd.f32 %v4495, 1.0
      %v4512 = vadd.f32 %v4496, 1.0
      %v4513 = vadd.f32 %v4497, 1.0
      %v4514 = vmul.f32 %v4450, %v4498
      %v4515 = vmul.f32 %v4451, %v4499
      %v4516 = vmul.f32 %v4452, %v4500
      %v4517 = vmul.f32 %v4453, %v4501
      %v4518 = vmul.f32 %v4454, %v4502
      %v4519 = vmul.f32 %v4455, %v4503
      %v4520 = vmul.f32 %v4456, %v4504
      %v4521 = vmul.f32 %v4457, %v4505
      %v4522 = vmul.f32 %v4458, %v4506
      %v4523 = vmul.f32 %v4459, %v4507
      %v4524 = vmul.f32 %v4460, %v4508
      %v4525 = vmul.f32 %v4461, %v4509
      %v4526 = vmul.f32 %v4462, %v4510
      %v4527 = vmul.f32 %v4463, %v4511
      %v4528 = vmul.f32 %v4464, %v4512
      %v4529 = vmul.f32 %v4465, %v4513
      %v4530 = vpack.c.bf16 %v4518, %v4514
      %v4531 = vpack.c.bf16 %v4519, %v4515
      %v4532 = vpack.c.bf16 %v4520, %v4516
      %v4533 = vpack.c.bf16 %v4521, %v4517
      %v4534 = vpack.c.bf16 %v4526, %v4522
      %v4535 = vpack.c.bf16 %v4527, %v4523
      %v4536 = vpack.c.bf16 %v4528, %v4524
      %v4537 = vpack.c.bf16 %v4529, %v4525
      %s4538 = scalar_lea.vmem %s13, 256
      %v4539 = vld [vmem:[%s4538] sm:$0xf]
      %v4540 = vld [vmem:[%s4538 + $0x4] sm:$0xf]
      %v4541 = vld [vmem:[%s4538 + $0x8] sm:$0xf]
      %v4542 = vld [vmem:[%s4538 + $0xc] sm:$0xf]
      %v4543 = vld [vmem:[%s4538 + $0x10] sm:$0xf]
      %v4544 = vld [vmem:[%s4538 + $0x14] sm:$0xf]
      %v4545 = vld [vmem:[%s4538 + $0x18] sm:$0xf]
      %v4546 = vld [vmem:[%s4538 + $0x1c] sm:$0xf]
      %v4547 = vld [vmem:[%s4538 + $0x20] sm:$0xf]
      %v4548 = vld [vmem:[%s4538 + $0x24] sm:$0xf]
      %v4549 = vld [vmem:[%s4538 + $0x28] sm:$0xf]
      %v4550 = vld [vmem:[%s4538 + $0x2c] sm:$0xf]
      %v4551 = vld [vmem:[%s4538 + $0x30] sm:$0xf]
      %v4552 = vld [vmem:[%s4538 + $0x34] sm:$0xf]
      %v4553 = vld [vmem:[%s4538 + $0x38] sm:$0xf]
      %v4554 = vld [vmem:[%s4538 + $0x3c] sm:$0xf]
      %v4555 = vld [vmem:[%s4538 + $0x40] sm:$0xf]
      %v4556 = vld [vmem:[%s4538 + $0x44] sm:$0xf]
      %v4557 = vld [vmem:[%s4538 + $0x48] sm:$0xf]
      %v4558 = vld [vmem:[%s4538 + $0x4c] sm:$0xf]
      %v4559 = vld [vmem:[%s4538 + $0x50] sm:$0xf]
      %v4560 = vld [vmem:[%s4538 + $0x54] sm:$0xf]
      %v4561 = vld [vmem:[%s4538 + $0x58] sm:$0xf]
      %v4562 = vld [vmem:[%s4538 + $0x5c] sm:$0xf]
      %v4563 = vld [vmem:[%s4538 + $0x60] sm:$0xf]
      %v4564 = vld [vmem:[%s4538 + $0x64] sm:$0xf]
      %v4565 = vld [vmem:[%s4538 + $0x68] sm:$0xf]
      %v4566 = vld [vmem:[%s4538 + $0x6c] sm:$0xf]
      %v4567 = vld [vmem:[%s4538 + $0x70] sm:$0xf]
      %v4568 = vld [vmem:[%s4538 + $0x74] sm:$0xf]
      %v4569 = vld [vmem:[%s4538 + $0x78] sm:$0xf]
      %v4570 = vld [vmem:[%s4538 + $0x7c] sm:$0xf]
      %v4571 = vld [vmem:[%s4538 + $0x80] sm:$0xf]
      %v4572 = vld [vmem:[%s4538 + $0x84] sm:$0xf]
      %v4573 = vld [vmem:[%s4538 + $0x88] sm:$0xf]
      %v4574 = vld [vmem:[%s4538 + $0x8c] sm:$0xf]
      %v4575 = vld [vmem:[%s4538 + $0x90] sm:$0xf]
      %v4576 = vld [vmem:[%s4538 + $0x94] sm:$0xf]
      %v4577 = vld [vmem:[%s4538 + $0x98] sm:$0xf]
      %v4578 = vld [vmem:[%s4538 + $0x9c] sm:$0xf]
      %v4579 = vld [vmem:[%s4538 + $0xa0] sm:$0xf]
      %v4580 = vld [vmem:[%s4538 + $0xa4] sm:$0xf]
      %v4581 = vld [vmem:[%s4538 + $0xa8] sm:$0xf]
      %v4582 = vld [vmem:[%s4538 + $0xac] sm:$0xf]
      %v4583 = vld [vmem:[%s4538 + $0xb0] sm:$0xf]
      %v4584 = vld [vmem:[%s4538 + $0xb4] sm:$0xf]
      %v4585 = vld [vmem:[%s4538 + $0xb8] sm:$0xf]
      %v4586 = vld [vmem:[%s4538 + $0xbc] sm:$0xf]
      %v4587 = vld [vmem:[%s4538 + $0xc0] sm:$0xf]
      %v4588 = vld [vmem:[%s4538 + $0xc4] sm:$0xf]
      %v4589 = vld [vmem:[%s4538 + $0xc8] sm:$0xf]
      %v4590 = vld [vmem:[%s4538 + $0xcc] sm:$0xf]
      %v4591 = vld [vmem:[%s4538 + $0xd0] sm:$0xf]
      %v4592 = vld [vmem:[%s4538 + $0xd4] sm:$0xf]
      %v4593 = vld [vmem:[%s4538 + $0xd8] sm:$0xf]
      %v4594 = vld [vmem:[%s4538 + $0xdc] sm:$0xf]
      %v4595 = vld [vmem:[%s4538 + $0xe0] sm:$0xf]
      %v4596 = vld [vmem:[%s4538 + $0xe4] sm:$0xf]
      %v4597 = vld [vmem:[%s4538 + $0xe8] sm:$0xf]
      %v4598 = vld [vmem:[%s4538 + $0xec] sm:$0xf]
      %v4599 = vld [vmem:[%s4538 + $0xf0] sm:$0xf]
      %v4600 = vld [vmem:[%s4538 + $0xf4] sm:$0xf]
      %v4601 = vld [vmem:[%s4538 + $0xf8] sm:$0xf]
      %v4602 = vld [vmem:[%s4538 + $0xfc] sm:$0xf]
      %v4667 = vunpack.c.l.b16 %v4539
      %v4668 = vunpack.c.l.b16 %v4540
      %v4669 = vunpack.c.l.b16 %v4541
      %v4670 = vunpack.c.l.b16 %v4542
      %v4671 = vunpack.c.l.b16 %v4543
      %v4672 = vunpack.c.l.b16 %v4544
      %v4673 = vunpack.c.l.b16 %v4545
      %v4674 = vunpack.c.l.b16 %v4546
      %v4675 = vunpack.c.l.b16 %v4547
      %v4676 = vunpack.c.l.b16 %v4548
      %v4677 = vunpack.c.l.b16 %v4549
      %v4678 = vunpack.c.l.b16 %v4550
      %v4679 = vunpack.c.l.b16 %v4551
      %v4680 = vunpack.c.l.b16 %v4552
      %v4681 = vunpack.c.l.b16 %v4553
      %v4682 = vunpack.c.l.b16 %v4554
      %v4683 = vunpack.c.l.b16 %v4555
      %v4684 = vunpack.c.l.b16 %v4556
      %v4685 = vunpack.c.l.b16 %v4557
      %v4686 = vunpack.c.l.b16 %v4558
      %v4687 = vunpack.c.l.b16 %v4559
      %v4688 = vunpack.c.l.b16 %v4560
      %v4689 = vunpack.c.l.b16 %v4561
      %v4690 = vunpack.c.l.b16 %v4562
      %v4691 = vunpack.c.l.b16 %v4563
      %v4692 = vunpack.c.l.b16 %v4564
      %v4693 = vunpack.c.l.b16 %v4565
      %v4694 = vunpack.c.l.b16 %v4566
      %v4695 = vunpack.c.l.b16 %v4567
      %v4696 = vunpack.c.l.b16 %v4568
      %v4697 = vunpack.c.l.b16 %v4569
      %v4698 = vunpack.c.l.b16 %v4570
      %v4699 = vunpack.c.l.b16 %v4571
      %v4700 = vunpack.c.l.b16 %v4572
      %v4701 = vunpack.c.l.b16 %v4573
      %v4702 = vunpack.c.l.b16 %v4574
      %v4703 = vunpack.c.l.b16 %v4575
      %v4704 = vunpack.c.l.b16 %v4576
      %v4705 = vunpack.c.l.b16 %v4577
      %v4706 = vunpack.c.l.b16 %v4578
      %v4707 = vunpack.c.l.b16 %v4579
      %v4708 = vunpack.c.l.b16 %v4580
      %v4709 = vunpack.c.l.b16 %v4581
      %v4710 = vunpack.c.l.b16 %v4582
      %v4711 = vunpack.c.l.b16 %v4583
      %v4712 = vunpack.c.l.b16 %v4584
      %v4713 = vunpack.c.l.b16 %v4585
      %v4714 = vunpack.c.l.b16 %v4586
      %v4715 = vunpack.c.l.b16 %v4587
      %v4716 = vunpack.c.l.b16 %v4588
      %v4717 = vunpack.c.l.b16 %v4589
      %v4718 = vunpack.c.l.b16 %v4590
      %v4719 = vunpack.c.l.b16 %v4591
      %v4720 = vunpack.c.l.b16 %v4592
      %v4721 = vunpack.c.l.b16 %v4593
      %v4722 = vunpack.c.l.b16 %v4594
      %v4723 = vunpack.c.l.b16 %v4595
      %v4724 = vunpack.c.l.b16 %v4596
      %v4725 = vunpack.c.l.b16 %v4597
      %v4726 = vunpack.c.l.b16 %v4598
      %v4727 = vunpack.c.l.b16 %v4599
      %v4728 = vunpack.c.l.b16 %v4600
      %v4729 = vunpack.c.l.b16 %v4601
      %v4730 = vunpack.c.l.b16 %v4602
      %v4731 = vpack.c.b16 %v4668, %v4667
      %v4732 = vpack.c.b16 %v4670, %v4669
      %v4733 = vpack.c.b16 %v4672, %v4671
      %v4734 = vpack.c.b16 %v4674, %v4673
      %v4735 = vpack.c.b16 %v4676, %v4675
      %v4736 = vpack.c.b16 %v4678, %v4677
      %v4737 = vpack.c.b16 %v4680, %v4679
      %v4738 = vpack.c.b16 %v4682, %v4681
      %v4739 = vpack.c.b16 %v4684, %v4683
      %v4740 = vpack.c.b16 %v4686, %v4685
      %v4741 = vpack.c.b16 %v4688, %v4687
      %v4742 = vpack.c.b16 %v4690, %v4689
      %v4743 = vpack.c.b16 %v4692, %v4691
      %v4744 = vpack.c.b16 %v4694, %v4693
      %v4745 = vpack.c.b16 %v4696, %v4695
      %v4746 = vpack.c.b16 %v4698, %v4697
      %v4747 = vpack.c.b16 %v4700, %v4699
      %v4748 = vpack.c.b16 %v4702, %v4701
      %v4749 = vpack.c.b16 %v4704, %v4703
      %v4750 = vpack.c.b16 %v4706, %v4705
      %v4751 = vpack.c.b16 %v4708, %v4707
      %v4752 = vpack.c.b16 %v4710, %v4709
      %v4753 = vpack.c.b16 %v4712, %v4711
      %v4754 = vpack.c.b16 %v4714, %v4713
      %v4755 = vpack.c.b16 %v4716, %v4715
      %v4756 = vpack.c.b16 %v4718, %v4717
      %v4757 = vpack.c.b16 %v4720, %v4719
      %v4758 = vpack.c.b16 %v4722, %v4721
      %v4759 = vpack.c.b16 %v4724, %v4723
      %v4760 = vpack.c.b16 %v4726, %v4725
      %v4761 = vpack.c.b16 %v4728, %v4727
      %v4762 = vpack.c.b16 %v4730, %v4729
      %4795 = vmatprep.subr.bf16.mxu0 0
      %4796 = vmatpush1.bf16.msra.mxu0 %v4731
      %4797 = vmatprep.subr.bf16.mxu0 0
      %4798 = vmatpush1.bf16.msra.mxu0 %v4732
      %4799 = vmatprep.subr.bf16.mxu0 0
      %4800 = vmatpush1.bf16.msra.mxu0 %v4733
      %4801 = vmatprep.subr.bf16.mxu0 0
      %4802 = vmatpush1.bf16.msra.mxu0 %v4734
      %4803 = vmatprep.subr.bf16.mxu0 0
      %4804 = vmatpush1.bf16.msra.mxu0 %v4735
      %4805 = vmatprep.subr.bf16.mxu0 0
      %4806 = vmatpush1.bf16.msra.mxu0 %v4736
      %4807 = vmatprep.subr.bf16.mxu0 0
      %4808 = vmatpush1.bf16.msra.mxu0 %v4737
      %4809 = vmatprep.subr.bf16.mxu0 0
      %4810 = vmatpush1.bf16.msra.mxu0 %v4738
      %4811 = vmatprep.subr.bf16.mxu0 0
      %4812 = vmatpush1.bf16.msra.mxu0 %v4739
      %4813 = vmatprep.subr.bf16.mxu0 0
      %4814 = vmatpush1.bf16.msra.mxu0 %v4740
      %4815 = vmatprep.subr.bf16.mxu0 0
      %4816 = vmatpush1.bf16.msra.mxu0 %v4741
      %4817 = vmatprep.subr.bf16.mxu0 0
      %4818 = vmatpush1.bf16.msra.mxu0 %v4742
      %4819 = vmatprep.subr.bf16.mxu0 0
      %4820 = vmatpush1.bf16.msra.mxu0 %v4743
      %4821 = vmatprep.subr.bf16.mxu0 0
      %4822 = vmatpush1.bf16.msra.mxu0 %v4744
      %4823 = vmatprep.subr.bf16.mxu0 0
      %4824 = vmatpush1.bf16.msra.mxu0 %v4745
      %4825 = vmatprep.subr.bf16.mxu0 0
      %4826 = vmatpush1.bf16.msra.mxu0 %v4746
      %4827 = vmatprep.mubr.bf16.mxu0 %v4531
      %4828 = vmatmul.mubr.bf16.gmra.mrb[0].mxu0 %v4530
      %v4829 = vpop.f32.mrb[0].mxu0
      %v4830 = vadd.f32 0.0, %v4829
      %v4831 = vpop.f32.mrb[0].mxu0
      %v4832 = vpop.f32.mrb[0].mxu0
      %v4833 = vadd.f32 0.0, %v4832
      %v4834 = vpop.f32.mrb[0].mxu0
      %4835 = vmatprep.mubr.bf16.mxu0 %v4535
      %4836 = vmatmul.mubr.bf16.gmra.mrb[0].mxu0 %v4534
      %v4837 = vpop.f32.mrb[0].mxu0
      %v4838 = vadd.f32 0.0, %v4837
      %v4839 = vpop.f32.mrb[0].mxu0
      %v4840 = vpop.f32.mrb[0].mxu0
      %v4841 = vadd.f32 0.0, %v4840
      %v4842 = vpop.f32.mrb[0].mxu0
      %4843 = vdwg.mxu0
      %4844 = vmatprep.subr.bf16.mxu0 0
      %4845 = vmatpush1.bf16.msra.mxu0 %v4747
      %4846 = vmatprep.subr.bf16.mxu0 0
      %4847 = vmatpush1.bf16.msra.mxu0 %v4748
      %4848 = vmatprep.subr.bf16.mxu0 0
      %4849 = vmatpush1.bf16.msra.mxu0 %v4749
      %4850 = vmatprep.subr.bf16.mxu0 0
      %4851 = vmatpush1.bf16.msra.mxu0 %v4750
      %4852 = vmatprep.subr.bf16.mxu0 0
      %4853 = vmatpush1.bf16.msra.mxu0 %v4751
      %4854 = vmatprep.subr.bf16.mxu0 0
      %4855 = vmatpush1.bf16.msra.mxu0 %v4752
      %4856 = vmatprep.subr.bf16.mxu0 0
      %4857 = vmatpush1.bf16.msra.mxu0 %v4753
      %4858 = vmatprep.subr.bf16.mxu0 0
      %4859 = vmatpush1.bf16.msra.mxu0 %v4754
      %4860 = vmatprep.subr.bf16.mxu0 0
      %4861 = vmatpush1.bf16.msra.mxu0 %v4755
      %4862 = vmatprep.subr.bf16.mxu0 0
      %4863 = vmatpush1.bf16.msra.mxu0 %v4756
      %4864 = vmatprep.subr.bf16.mxu0 0
      %4865 = vmatpush1.bf16.msra.mxu0 %v4757
      %4866 = vmatprep.subr.bf16.mxu0 0
      %4867 = vmatpush1.bf16.msra.mxu0 %v4758
      %4868 = vmatprep.subr.bf16.mxu0 0
      %4869 = vmatpush1.bf16.msra.mxu0 %v4759
      %4870 = vmatprep.subr.bf16.mxu0 0
      %4871 = vmatpush1.bf16.msra.mxu0 %v4760
      %4872 = vmatprep.subr.bf16.mxu0 0
      %4873 = vmatpush1.bf16.msra.mxu0 %v4761
      %4874 = vmatprep.subr.bf16.mxu0 0
      %4875 = vmatpush1.bf16.msra.mxu0 %v4762
      %4876 = vmatprep.mubr.bf16.mxu0 %v4533
      %4877 = vmatmul.mubr.bf16.gmra.mrb[0].mxu0 %v4532
      %v4878 = vpop.f32.mrb[0].mxu0
      %v4879 = vadd.f32 %v4830, %v4878
      %v4880 = vpop.f32.mrb[0].mxu0
      %v4881 = vpop.f32.mrb[0].mxu0
      %v4882 = vadd.f32 %v4833, %v4881
      %v4883 = vpop.f32.mrb[0].mxu0
      %4884 = vmatprep.mubr.bf16.mxu0 %v4537
      %4885 = vmatmul.mubr.bf16.gmra.mrb[0].mxu0 %v4536
      %v4886 = vpop.f32.mrb[0].mxu0
      %v4887 = vadd.f32 %v4838, %v4886
      %v4888 = vpop.f32.mrb[0].mxu0
      %v4889 = vpop.f32.mrb[0].mxu0
      %v4890 = vadd.f32 %v4841, %v4889
      %v4891 = vpop.f32.mrb[0].mxu0
      %4892 = vdwg.mxu0
      %v4893 = vadd.f32 %v4054, %v4879
      %v4894 = vadd.f32 %v4055, %v4882
      %v4895 = vadd.f32 %v4056, %v4887
      %v4896 = vadd.f32 %v4057, %v4890
      %s4897 = scalar_lea.vmem %s14, 1
      %v4898 = vld [vmem:[%s4897] sm:$0x1]
      %v4900 = vlaneseq
      %v4901 = vshrl.u32 %v4900, 7
      %v4902 = vsub.s32 0, %v4901
      %v4903 = vrot.slane %v4898, %v4902
      %v4905 = vadd.f32 %v4893, %v4903
      %v4906 = vadd.f32 %v4894, %v4903
      %v4907 = vadd.f32 %v4895, %v4903
      %v4908 = vadd.f32 %v4896, %v4903
      %v4909 = vld [vmem:[%s15] sm:$0x1]
      %v4910 = vld [vmem:[%s16] sm:$0x1]
      %4911 = vadd.xlane.f32.xlu0 %v4905
      %v4912 = vpop.xlane.xlu0 %4911
      %4913 = vadd.xlane.f32.xlu0 %v4906
      %v4914 = vpop.xlane.xlu0 %4913
      %4915 = vadd.xlane.f32.xlu0 %v4907
      %v4916 = vpop.xlane.xlu0 %4915
      %4917 = vadd.xlane.f32.xlu0 %v4908
      %v4918 = vpop.xlane.xlu0 %4917
      %v4919 = vmul.f32 %v4912, %v742
      %v4920 = vmul.f32 %v4914, %v742
      %v4921 = vmul.f32 %v4916, %v742
      %v4922 = vmul.f32 %v4918, %v742
      %v4923 = vsub.f32 %v4905, %v4919
      %v4924 = vsub.f32 %v4906, %v4920
      %v4925 = vsub.f32 %v4907, %v4921
      %v4926 = vsub.f32 %v4908, %v4922
      %v4927 = vmul.f32 %v4923, %v4923
      %v4928 = vmul.f32 %v4924, %v4924
      %v4929 = vmul.f32 %v4925, %v4925
      %v4930 = vmul.f32 %v4926, %v4926
      %4931 = vadd.xlane.f32.xlu0 %v4927
      %v4932 = vpop.xlane.xlu0 %4931
      %4933 = vadd.xlane.f32.xlu0 %v4928
      %v4934 = vpop.xlane.xlu0 %4933
      %4935 = vadd.xlane.f32.xlu0 %v4929
      %v4936 = vpop.xlane.xlu0 %4935
      %4937 = vadd.xlane.f32.xlu0 %v4930
      %v4938 = vpop.xlane.xlu0 %4937
      %v4939 = vmul.f32 %v4932, %v742
      %v4940 = vmul.f32 %v4934, %v742
      %v4941 = vmul.f32 %v4936, %v742
      %v4942 = vmul.f32 %v4938, %v742
      %v4943 = vadd.f32 %v4939, 1e-12
      %v4944 = vadd.f32 %v4940, 1e-12
      %v4945 = vadd.f32 %v4941, 1e-12
      %v4946 = vadd.f32 %v4942, 1e-12
      %v4947 = vrsqrt.pop %v4943
      %v4948 = vrsqrt.pop %v4944
      %v4949 = vrsqrt.pop %v4945
      %v4950 = vrsqrt.pop %v4946
      %v4951 = vmul.f32 %v4923, %v4947
      %v4952 = vmul.f32 %v4924, %v4948
      %v4953 = vmul.f32 %v4925, %v4949
      %v4954 = vmul.f32 %v4926, %v4950
      %v4956 = vlaneseq
      %v4957 = vshrl.u32 %v4956, 7
      %v4958 = vsub.s32 0, %v4957
      %v4959 = vrot.slane %v4909, %v4958
      %v4961 = vmul.f32 %v4951, %v4959
      %v4962 = vmul.f32 %v4952, %v4959
      %v4963 = vmul.f32 %v4953, %v4959
      %v4964 = vmul.f32 %v4954, %v4959
      %v4966 = vlaneseq
      %v4967 = vshrl.u32 %v4966, 7
      %v4968 = vsub.s32 0, %v4967
      %v4969 = vrot.slane %v4910, %v4968
      %v4971 = vadd.f32 %v4961, %v4969
      %v4972 = vadd.f32 %v4962, %v4969
      %v4973 = vadd.f32 %v4963, %v4969
      %v4974 = vadd.f32 %v4964, %v4969
      %4975 = vst [vmem:[%s548] sm:$0xff] %v4971
      %4976 = vst [vmem:[%s548 + $0x8] sm:$0xff] %v4972
      %4977 = vst [vmem:[%s548 + $0x10] sm:$0xff] %v4973
      %4978 = vst [vmem:[%s548 + $0x18] sm:$0xff] %v4974
      %p4979 = scmp.lt.s32.totalorder %s28, 1
      %s4980 = scalar_select %p4979, %s28, 1
      %s4981 = smul.addr %s4980, 4
      %s4982 = smul.addr %s4981, 8
      %s4983 = scalar_lea.vmem %s17, %s4982
      // Predicated region
      $region89: #{_forward_padded.1} parent=87 // pred_check
        %p4984 = pneg %p408
      $region90: #{_forward_padded.1} parent=87 // pred_check_branch
        %4986 = sbr.rel (%p4984) target = $region92
      $region91: #{_forward_padded.1} parent=87 // pred_region
        _
      $region92: #{_forward_padded.1} parent=87 // pred_fallthru
        _
    $region88: #{_forward_padded.1} parent=5 // pred_fallthru
      _
    %p4987 = scmp.le.s32.totalorder 2, %s23
    // Predicated region
    $region93: #{_forward_padded.1} parent=5 // pred_check
      %p4988 = pneg %p4987
    $region94: #{_forward_padded.1} parent=5 // pred_check_branch
      %4990 = sbr.rel (%p4988) target = $region96
    $region95: #{_forward_padded.1} parent=5 // pred_region
      %s4991 = ssub.s32 %s23, 2
      // Predicated region
      $region97: #{_forward_padded.1} parent=95 // pred_check
        %p4992 = pneg %p414
      $region98: #{_forward_padded.1} parent=95 // pred_check_branch
        %4994 = sbr.rel (%p4992) target = $region100
      $region99: #{_forward_padded.1} parent=95 // pred_region
        %p4995 = scmp.lt.s32.totalorder %s29, 1
        %s4996 = scalar_select %p4995, %s29, 1
        %s4997 = smul.addr %s4996, 4
        %s4998 = smul.addr %s4997, 8
        %s4999 = scalar_lea.vmem %s17, %s4998
      $region100: #{_forward_padded.1} parent=95 // pred_fallthru
        _
    $region96: #{_forward_padded.1} parent=5 // pred_fallthru
      _
  $region6: #{_forward_padded.1} parent=0 // loop_footer
    %s27 = sadd.s32 1, %s23
  $region7: #{_forward_padded.1} parent=0 // loop_footer_branch
    %22 = sbr.rel target = $region3
  $region8: #{_forward_padded.1} parent=0 // loop_exit
    _

</llo_original>
